<compile_context>
chip_gen: v6e
topology: v6e:2x2x1
jax: 0.10.0
libtpu: 0.0.40
codegen_flags: <defaults>
</compile_context>

<pallas_src>
import functools

import jax
import jax.numpy as jnp
from jax import lax
from jax.experimental import pallas as pl
from jax.experimental.pallas import tpu as pltpu


def _layer_norm(x, gamma, beta, eps):
    mean = jnp.mean(x, axis=-1, keepdims=True)
    var = jnp.mean((x - mean) ** 2, axis=-1, keepdims=True)
    return (x - mean) * lax.rsqrt(var + eps) * gamma + beta


# ----------------------------------------------------------------------------
# Fused decoder-layer kernel: one grid step = one batch tile of TB sequences.
# ----------------------------------------------------------------------------
def _decoder_layer_kernel(
        dec_ref, enc_ref,
        wqkv1_ref, bqkv1_ref, wfc1_ref, bfc1_ref, g1_ref, bt1_ref,
        wqk2_ref, bqk2_ref, wv2_ref, bv2_ref, wfc2_ref, bfc2_ref, g2_ref, bt2_ref,
        wf1_ref, bf1_ref, wf2_ref, bf2_ref, g3_ref, bt3_ref,
        out_ref, slf_attn_ref, enc_attn_ref,
        ctx_ref,
        *, n_head, d_k, d_v):
    TB, L, Dm = dec_ref.shape
    M = TB * L
    nq = n_head * d_k
    inv_temp = 1.0 / (d_k ** 0.5)

    row = lax.broadcasted_iota(jnp.int32, (L, L), 0)
    col = lax.broadcasted_iota(jnp.int32, (L, L), 1)

    def attention(qp, kp, vp, current, attn_ref):
        # qp/kp: (M, H*d_k)   vp: (M, H*d_v)   -> ctx written to ctx_ref (M, H*d_v)
        # In-kernel mask: torch.tril(ones(L, L), diagonal=-current) == (row-col >= current)
        mask_b = jnp.broadcast_to(((row - col) >= current)[None], (TB, L, L))
        mask_f = mask_b.astype(jnp.float32)
        if current == 1:
            zero_row = jnp.broadcast_to((row == 0)[None], (TB, L, L))
        for h in range(n_head):  # static unroll; matmuls are batched over TB
            qh = (qp[:, h * d_k:(h + 1) * d_k] * inv_temp).reshape(TB, L, d_k)
            kh = kp[:, h * d_k:(h + 1) * d_k].reshape(TB, L, d_k)
            vh = vp[:, h * d_v:(h + 1) * d_v].reshape(TB, L, d_v)
            # q . k^T with the transpose folded into the contraction spec
            scores = lax.dot_general(
                qh, kh, dimension_numbers=(((2,), (2,)), ((0,), (0,))),
                preferred_element_type=jnp.float32)                  # (TB, L, L)
            scores = jnp.where(mask_b, scores, -1e32)
            m = jnp.max(scores, axis=-1, keepdims=True)
            e = jnp.exp(scores - m)
            attn = e * pl.reciprocal(jnp.sum(e, axis=-1, keepdims=True),
                                     approx=True)                    # softmax (dropout = id)
            if current == 1:
                # torch: cat([zeros row, attn[:, :, 1:, :]]) -> zero query row 0
                attn = jnp.where(zero_row, 0.0, attn)
            attn = attn * mask_f
            attn_ref[:, h, :, :] = attn
            ctx_ref[:, h * d_v:(h + 1) * d_v] = lax.dot_general(
                attn, vh, dimension_numbers=(((2,), (1,)), ((0,), (0,))),
                preferred_element_type=jnp.float32).reshape(M, d_v)
        return ctx_ref[...]

    x_dec = dec_ref[...].reshape(M, Dm)     # residual for MHA1
    x_enc = enc_ref[...].reshape(M, Dm)

    # ---- MHA 1: self-attention (q = k = v = dec_input, current = 0) --------
    qkv = jnp.dot(x_dec, wqkv1_ref[...],
                  preferred_element_type=jnp.float32) + bqkv1_ref[...]
    ctx = attention(qkv[:, :nq], qkv[:, nq:2 * nq], qkv[:, 2 * nq:],
                    0, slf_attn_ref)
    o = jnp.dot(ctx, wfc1_ref[...],
                preferred_element_type=jnp.float32) + bfc1_ref[...]
    dec1 = _layer_norm(o + x_dec, g1_ref[...], bt1_ref[...], 1e-5)

    # ---- MHA 2: q = k = dec1, v = enc_output, current = 1 -------------------
    qk = jnp.dot(dec1, wqk2_ref[...],
                 preferred_element_type=jnp.float32) + bqk2_ref[...]
    vp = jnp.dot(x_enc, wv2_ref[...],
                 preferred_element_type=jnp.float32) + bv2_ref[...]
    ctx2 = attention(qk[:, :nq], qk[:, nq:], vp, 1, enc_attn_ref)
    o2 = jnp.dot(ctx2, wfc2_ref[...],
                 preferred_element_type=jnp.float32) + bfc2_ref[...]
    dec2 = _layer_norm(o2 + dec1, g2_ref[...], bt2_ref[...], 1e-5)

    # ---- Position-wise FFN ---------------------------------------------------
    h1 = jnp.dot(dec2, wf1_ref[...],
                 preferred_element_type=jnp.float32) + bf1_ref[...]
    h1 = jnp.maximum(h1, 0.0)
    y = jnp.dot(h1, wf2_ref[...],
                preferred_element_type=jnp.float32) + bf2_ref[...]
    dec3 = _layer_norm(y + dec2, g3_ref[...], bt3_ref[...], 1e-6)

    out_ref[...] = dec3.reshape(TB, L, Dm)


# ----------------------------------------------------------------------------
# Wrapper
# ----------------------------------------------------------------------------
def _full_spec(shape):
    # whole array as one block, same block for every grid step
    return pl.BlockSpec(shape, lambda b: (0,) * len(shape))


def _pick_batch_tile(B, max_tile=8):
    # Fold several batch rows into the matmul M-dim, but keep >=2 grid steps
    # when possible so both v7x TensorCores get a "parallel" share.
    if B == 1:
        return 1
    candidates = [tb for tb in range(1, min(B, max_tile) + 1)
                  if B % tb == 0 and B // tb >= 2]
    return max(candidates) if candidates else 1


def decoder_layer(dec_input, enc_output, params, *, batch_tile=None):
    B, L, Dm = dec_input.shape
    slf, enc, ffn = params["slf"], params["enc"], params["ffn"]
    H, dk, dv = slf["n_head"], slf["d_k"], slf["d_v"]

    TB = batch_tile if batch_tile is not None else _pick_batch_tile(B)
    assert B % TB == 0, "batch must be divisible by the batch tile"

    # Host-side weight fusion: single MXU pass / single DMA per projection group.
    wqkv1 = jnp.concatenate([slf["wq"], slf["wk"], slf["wv"]], axis=1)
    bqkv1 = jnp.concatenate([slf["bq"], slf["bk"], slf["bv"]], axis=1)
    wqk2 = jnp.concatenate([enc["wq"], enc["wk"]], axis=1)
    bqk2 = jnp.concatenate([enc["bq"], enc["bk"]], axis=1)

    weights = (wqkv1, bqkv1, slf["wfc"], slf["bfc"], slf["gamma"], slf["beta"],
               wqk2, bqk2, enc["wv"], enc["bv"], enc["wfc"], enc["bfc"],
               enc["gamma"], enc["beta"],
               ffn["w1"], ffn["b1"], ffn["w2"], ffn["b2"],
               ffn["gamma"], ffn["beta"])

    kernel = functools.partial(_decoder_layer_kernel, n_head=H, d_k=dk, d_v=dv)

    in_specs = [pl.BlockSpec((TB, L, Dm), lambda b: (b, 0, 0)),
                pl.BlockSpec((TB, L, Dm), lambda b: (b, 0, 0))]
    in_specs += [_full_spec(w.shape) for w in weights]

    out_specs = [
        pl.BlockSpec((TB, L, Dm), lambda b: (b, 0, 0)),
        pl.BlockSpec((TB, H, L, L), lambda b: (b, 0, 0, 0)),
        pl.BlockSpec((TB, H, L, L), lambda b: (b, 0, 0, 0)),
    ]
    out_shape = [
        jax.ShapeDtypeStruct((B, L, Dm), jnp.float32),
        jax.ShapeDtypeStruct((B, H, L, L), jnp.float32),
        jax.ShapeDtypeStruct((B, H, L, L), jnp.float32),
    ]

    dec_out, slf_attn, enc_attn = pl.pallas_call(
        kernel,
        out_shape=out_shape,
        grid=(B // TB,),
        in_specs=in_specs,
        out_specs=out_specs,
        scratch_shapes=[pltpu.VMEM((TB * L, H * dv), jnp.float32)],
        compiler_params=pltpu.CompilerParams(
            dimension_semantics=("parallel",)),
    )(dec_input, enc_output, *weights)
    return dec_out, slf_attn, enc_attn


# ----------------------------------------------------------------------------
# Deterministic parameter initialization (xavier-uniform style weights,
# zero biases, unit LayerNorm scale).  Linear weights are stored pre-transposed
# as (in_features, out_features).
# ----------------------------------------------------------------------------
def _init_linear(key, fan_in, fan_out):
    limit = (6.0 / (fan_in + fan_out)) ** 0.5
    w = jax.random.uniform(key, (fan_in, fan_out), jnp.float32, -limit, limit)
    b = jnp.zeros((1, fan_out), jnp.float32)
    return w, b


def init_mha_params(key, d_model, n_head, d_k, d_v):
    ks = jax.random.split(key, 4)
    wq, bq = _init_linear(ks[0], d_model, n_head * d_k)
    wk, bk = _init_linear(ks[1], d_model, n_head * d_k)
    wv, bv = _init_linear(ks[2], d_model, n_head * d_v)
    wfc, bfc = _init_linear(ks[3], n_head * d_v, d_model)
    return dict(n_head=n_head, d_k=d_k, d_v=d_v,
                wq=wq, bq=bq, wk=wk, bk=bk, wv=wv, bv=bv, wfc=wfc, bfc=bfc,
                gamma=jnp.ones((1, d_model), jnp.float32),
                beta=jnp.zeros((1, d_model), jnp.float32))


def init_ffn_params(key, d_model, d_inner):
    k1, k2 = jax.random.split(key)
    w1, b1 = _init_linear(k1, d_model, d_inner)
    w2, b2 = _init_linear(k2, d_inner, d_model)
    return dict(w1=w1, b1=b1, w2=w2, b2=b2,
                gamma=jnp.ones((1, d_model), jnp.float32),
                beta=jnp.zeros((1, d_model), jnp.float32))


if __name__ == "__main__":
    B, L = 2, 8
    d_model, d_inner, n_head, d_k, d_v = 32, 64, 4, 8, 8

    root = jax.random.PRNGKey(0)
    k_slf, k_enc, k_ffn, k_x, k_e = jax.random.split(root, 5)
    params = dict(
        slf=init_mha_params(k_slf, d_model, n_head, d_k, d_v),
        enc=init_mha_params(k_enc, d_model, n_head, d_k, d_v),
        ffn=init_ffn_params(k_ffn, d_model, d_inner),
    )

    dec_input = jax.random.normal(k_x, (B, L, d_model), jnp.float32)
    enc_output = jax.random.normal(k_e, (B, L, d_model), jnp.float32)

    dec_out, slf_attn, enc_attn = decoder_layer(dec_input, enc_output, params)
    jax.block_until_ready((dec_out, slf_attn, enc_attn))

    assert dec_out.shape == (B, L, d_model)
    assert slf_attn.shape == (B, n_head, L, L)
    assert enc_attn.shape == (B, n_head, L, L)
    assert bool(jnp.all(jnp.isfinite(dec_out)))
    print("KERNEL_OK")
</pallas_src>

<mosaic_0001>
module attributes {stable_mosaic.version = 11 : i64} {
  func.func @_decoder_layer_kernel(%arg0: i32, %arg1: memref<1x8x32xf32, #tpu.memory_space<vmem>>, %arg2: memref<1x8x32xf32, #tpu.memory_space<vmem>>, %arg3: memref<32x96xf32, #tpu.memory_space<vmem>>, %arg4: memref<1x96xf32, #tpu.memory_space<vmem>>, %arg5: memref<32x32xf32, #tpu.memory_space<vmem>>, %arg6: memref<1x32xf32, #tpu.memory_space<vmem>>, %arg7: memref<1x32xf32, #tpu.memory_space<vmem>>, %arg8: memref<1x32xf32, #tpu.memory_space<vmem>>, %arg9: memref<32x64xf32, #tpu.memory_space<vmem>>, %arg10: memref<1x64xf32, #tpu.memory_space<vmem>>, %arg11: memref<32x32xf32, #tpu.memory_space<vmem>>, %arg12: memref<1x32xf32, #tpu.memory_space<vmem>>, %arg13: memref<32x32xf32, #tpu.memory_space<vmem>>, %arg14: memref<1x32xf32, #tpu.memory_space<vmem>>, %arg15: memref<1x32xf32, #tpu.memory_space<vmem>>, %arg16: memref<1x32xf32, #tpu.memory_space<vmem>>, %arg17: memref<32x64xf32, #tpu.memory_space<vmem>>, %arg18: memref<1x64xf32, #tpu.memory_space<vmem>>, %arg19: memref<64x32xf32, #tpu.memory_space<vmem>>, %arg20: memref<1x32xf32, #tpu.memory_space<vmem>>, %arg21: memref<1x32xf32, #tpu.memory_space<vmem>>, %arg22: memref<1x32xf32, #tpu.memory_space<vmem>>, %arg23: memref<1x8x32xf32, #tpu.memory_space<vmem>>, %arg24: memref<1x4x8x8xf32, #tpu.memory_space<vmem>>, %arg25: memref<1x4x8x8xf32, #tpu.memory_space<vmem>>, %arg26: memref<8x32xf32, #tpu.memory_space<vmem>>) attributes {dimension_semantics = [#tpu.dimension_semantics<parallel>], iteration_bounds = array<i64: 2>, scalar_prefetch = 0 : i64, scratch_operands = 1 : i64, tpu.core_type = #tpu.core_type<tc>, window_params = [{transform_indices = @transform_0, window_bounds = array<i64: 1, 8, 32>}, {transform_indices = @transform_1, window_bounds = array<i64: 1, 8, 32>}, {pipeline_mode = #tpu.pipeline_mode<synchronous>, transform_indices = @transform_2, window_bounds = array<i64: 32, 96>}, {pipeline_mode = #tpu.pipeline_mode<synchronous>, transform_indices = @transform_3, window_bounds = array<i64: 1, 96>}, {pipeline_mode = #tpu.pipeline_mode<synchronous>, transform_indices = @transform_4, window_bounds = array<i64: 32, 32>}, {pipeline_mode = #tpu.pipeline_mode<synchronous>, transform_indices = @transform_5, window_bounds = array<i64: 1, 32>}, {pipeline_mode = #tpu.pipeline_mode<synchronous>, transform_indices = @transform_6, window_bounds = array<i64: 1, 32>}, {pipeline_mode = #tpu.pipeline_mode<synchronous>, transform_indices = @transform_7, window_bounds = array<i64: 1, 32>}, {pipeline_mode = #tpu.pipeline_mode<synchronous>, transform_indices = @transform_8, window_bounds = array<i64: 32, 64>}, {pipeline_mode = #tpu.pipeline_mode<synchronous>, transform_indices = @transform_9, window_bounds = array<i64: 1, 64>}, {pipeline_mode = #tpu.pipeline_mode<synchronous>, transform_indices = @transform_10, window_bounds = array<i64: 32, 32>}, {pipeline_mode = #tpu.pipeline_mode<synchronous>, transform_indices = @transform_11, window_bounds = array<i64: 1, 32>}, {pipeline_mode = #tpu.pipeline_mode<synchronous>, transform_indices = @transform_12, window_bounds = array<i64: 32, 32>}, {pipeline_mode = #tpu.pipeline_mode<synchronous>, transform_indices = @transform_13, window_bounds = array<i64: 1, 32>}, {pipeline_mode = #tpu.pipeline_mode<synchronous>, transform_indices = @transform_14, window_bounds = array<i64: 1, 32>}, {pipeline_mode = #tpu.pipeline_mode<synchronous>, transform_indices = @transform_15, window_bounds = array<i64: 1, 32>}, {pipeline_mode = #tpu.pipeline_mode<synchronous>, transform_indices = @transform_16, window_bounds = array<i64: 32, 64>}, {pipeline_mode = #tpu.pipeline_mode<synchronous>, transform_indices = @transform_17, window_bounds = array<i64: 1, 64>}, {pipeline_mode = #tpu.pipeline_mode<synchronous>, transform_indices = @transform_18, window_bounds = array<i64: 64, 32>}, {pipeline_mode = #tpu.pipeline_mode<synchronous>, transform_indices = @transform_19, window_bounds = array<i64: 1, 32>}, {pipeline_mode = #tpu.pipeline_mode<synchronous>, transform_indices = @transform_20, window_bounds = array<i64: 1, 32>}, {pipeline_mode = #tpu.pipeline_mode<synchronous>, transform_indices = @transform_21, window_bounds = array<i64: 1, 32>}, {transform_indices = @transform_22, window_bounds = array<i64: 1, 8, 32>}, {transform_indices = @transform_23, window_bounds = array<i64: 1, 4, 8, 8>}, {transform_indices = @transform_24, window_bounds = array<i64: 1, 4, 8, 8>}]} {
    %0 = tpu.iota {dimensions = array<i32: 0>} : vector<8x8xi32>
    %1 = tpu.iota {dimensions = array<i32: 1>} : vector<8x8xi32>
    %c0 = arith.constant 0 : index
    %c0_0 = arith.constant 0 : index
    %c0_1 = arith.constant 0 : index
    %2 = vector.load %arg1[%c0, %c0_0, %c0_1] : memref<1x8x32xf32, #tpu.memory_space<vmem>>, vector<1x8x32xf32>
    %3 = vector.shape_cast %2 : vector<1x8x32xf32> to vector<8x32xf32>
    %c0_2 = arith.constant 0 : index
    %c0_3 = arith.constant 0 : index
    %c0_4 = arith.constant 0 : index
    %4 = vector.load %arg2[%c0_2, %c0_3, %c0_4] : memref<1x8x32xf32, #tpu.memory_space<vmem>>, vector<1x8x32xf32>
    %5 = vector.shape_cast %4 : vector<1x8x32xf32> to vector<8x32xf32>
    %c0_5 = arith.constant 0 : index
    %c0_6 = arith.constant 0 : index
    %6 = vector.load %arg3[%c0_5, %c0_6] : memref<32x96xf32, #tpu.memory_space<vmem>>, vector<32x96xf32>
    %cst = arith.constant dense<0.000000e+00> : vector<8x96xf32>
    %7 = tpu.matmul %3, %6, %cst {dimension_numbers = #tpu.dot_dimension_numbers<[1], [0], [0], [1], [0, 0, 1, 1], [], []>} : vector<8x32xf32>, vector<32x96xf32>, vector<8x96xf32> -> vector<8x96xf32>
    %c0_7 = arith.constant 0 : index
    %c0_8 = arith.constant 0 : index
    %8 = vector.load %arg4[%c0_7, %c0_8] : memref<1x96xf32, #tpu.memory_space<vmem>>, vector<1x96xf32>
    %9 = vector.broadcast %8 : vector<1x96xf32> to vector<8x96xf32>
    %10 = arith.addf %7, %9 : vector<8x96xf32>
    %11 = vector.extract_strided_slice %10 {offsets = [0, 0], sizes = [8, 32], strides = [1, 1]} : vector<8x96xf32> to vector<8x32xf32>
    %12 = vector.extract_strided_slice %10 {offsets = [0, 32], sizes = [8, 32], strides = [1, 1]} : vector<8x96xf32> to vector<8x32xf32>
    %13 = vector.extract_strided_slice %10 {offsets = [0, 64], sizes = [8, 32], strides = [1, 1]} : vector<8x96xf32> to vector<8x32xf32>
    %14 = arith.subi %0, %1 : vector<8x8xi32>
    %c0_i32 = arith.constant 0 : i32
    %15 = vector.broadcast %c0_i32 : i32 to vector<8x8xi32>
    %16 = arith.cmpi sge, %14, %15 : vector<8x8xi32>
    %17 = vector.shape_cast %16 : vector<8x8xi1> to vector<1x8x8xi1>
    %18 = arith.extui %17 : vector<1x8x8xi1> to vector<1x8x8xi32>
    %19 = arith.sitofp %18 : vector<1x8x8xi32> to vector<1x8x8xf32>
    %20 = vector.extract_strided_slice %11 {offsets = [0, 0], sizes = [8, 8], strides = [1, 1]} : vector<8x32xf32> to vector<8x8xf32>
    %cst_9 = arith.constant 0.353553385 : f32
    %21 = vector.broadcast %cst_9 : f32 to vector<8x8xf32>
    %22 = arith.mulf %20, %21 : vector<8x8xf32>
    %23 = vector.shape_cast %22 : vector<8x8xf32> to vector<1x8x8xf32>
    %24 = vector.extract_strided_slice %12 {offsets = [0, 0], sizes = [8, 8], strides = [1, 1]} : vector<8x32xf32> to vector<8x8xf32>
    %25 = vector.shape_cast %24 : vector<8x8xf32> to vector<1x8x8xf32>
    %26 = vector.extract_strided_slice %13 {offsets = [0, 0], sizes = [8, 8], strides = [1, 1]} : vector<8x32xf32> to vector<8x8xf32>
    %27 = vector.shape_cast %26 : vector<8x8xf32> to vector<1x8x8xf32>
    %cst_10 = arith.constant dense<0.000000e+00> : vector<1x8x8xf32>
    %28 = tpu.matmul %23, %25, %cst_10 {dimension_numbers = #tpu.dot_dimension_numbers<[2], [2], [1], [1], [0, 0, 0, 1, 1, 1], [0], [0]>} : vector<1x8x8xf32>, vector<1x8x8xf32>, vector<1x8x8xf32> -> vector<1x8x8xf32>
    %cst_11 = arith.constant -1.000000e+32 : f32
    %29 = vector.broadcast %cst_11 : f32 to vector<1x8x8xf32>
    %30 = arith.select %17, %28, %29 : vector<1x8x8xi1>, vector<1x8x8xf32>
    %cst_12 = arith.constant dense<0xFF800000> : vector<1x8xf32>
    %31 = vector.multi_reduction <maximumf>, %30, %cst_12 [2] : vector<1x8x8xf32> to vector<1x8xf32>
    %32 = vector.shape_cast %31 : vector<1x8xf32> to vector<1x8x1xf32>
    %33 = vector.broadcast %32 : vector<1x8x1xf32> to vector<1x8x8xf32>
    %34 = arith.subf %30, %33 : vector<1x8x8xf32>
    %35 = math.exp %34 : vector<1x8x8xf32>
    %cst_13 = arith.constant dense<0.000000e+00> : vector<1x8xf32>
    %36 = vector.multi_reduction <add>, %35, %cst_13 [2] : vector<1x8x8xf32> to vector<1x8xf32>
    %37 = vector.shape_cast %36 : vector<1x8xf32> to vector<1x8x1xf32>
    %38 = tpu.reciprocal %37 {approx = true} : vector<1x8x1xf32> -> vector<1x8x1xf32>
    %39 = vector.broadcast %38 : vector<1x8x1xf32> to vector<1x8x8xf32>
    %40 = arith.mulf %35, %39 : vector<1x8x8xf32>
    %41 = arith.mulf %40, %19 : vector<1x8x8xf32>
    %c0_14 = arith.constant 0 : index
    %c0_15 = arith.constant 0 : index
    %c0_16 = arith.constant 0 : index
    %c0_17 = arith.constant 0 : index
    %42 = vector.load %arg24[%c0_14, %c0_15, %c0_16, %c0_17] : memref<1x4x8x8xf32, #tpu.memory_space<vmem>>, vector<1x1x8x8xf32>
    %43 = vector.shape_cast %42 : vector<1x1x8x8xf32> to vector<1x8x8xf32>
    %44 = vector.shape_cast %41 : vector<1x8x8xf32> to vector<1x1x8x8xf32>
    tpu.vector_store %arg24[%c0_14, %c0_15, %c0_16, %c0_17], %44 {strides = array<i32>} : memref<1x4x8x8xf32, #tpu.memory_space<vmem>>, vector<1x1x8x8xf32>,
    %cst_18 = arith.constant dense<0.000000e+00> : vector<1x8x8xf32>
    %45 = tpu.matmul %41, %27, %cst_18 {dimension_numbers = #tpu.dot_dimension_numbers<[2], [1], [1], [2], [0, 0, 0, 1, 1, 2], [0], [0]>} : vector<1x8x8xf32>, vector<1x8x8xf32>, vector<1x8x8xf32> -> vector<1x8x8xf32>
    %46 = vector.shape_cast %45 : vector<1x8x8xf32> to vector<8x8xf32>
    %c0_19 = arith.constant 0 : index
    %c0_20 = arith.constant 0 : index
    %47 = vector.load %arg26[%c0_19, %c0_20] : memref<8x32xf32, #tpu.memory_space<vmem>>, vector<8x8xf32>
    tpu.vector_store %arg26[%c0_19, %c0_20], %46 {strides = array<i32>} : memref<8x32xf32, #tpu.memory_space<vmem>>, vector<8x8xf32>,
    %48 = vector.extract_strided_slice %11 {offsets = [0, 8], sizes = [8, 8], strides = [1, 1]} : vector<8x32xf32> to vector<8x8xf32>
    %cst_21 = arith.constant 0.353553385 : f32
    %49 = vector.broadcast %cst_21 : f32 to vector<8x8xf32>
    %50 = arith.mulf %48, %49 : vector<8x8xf32>
    %51 = vector.shape_cast %50 : vector<8x8xf32> to vector<1x8x8xf32>
    %52 = vector.extract_strided_slice %12 {offsets = [0, 8], sizes = [8, 8], strides = [1, 1]} : vector<8x32xf32> to vector<8x8xf32>
    %53 = vector.shape_cast %52 : vector<8x8xf32> to vector<1x8x8xf32>
    %54 = vector.extract_strided_slice %13 {offsets = [0, 8], sizes = [8, 8], strides = [1, 1]} : vector<8x32xf32> to vector<8x8xf32>
    %55 = vector.shape_cast %54 : vector<8x8xf32> to vector<1x8x8xf32>
    %cst_22 = arith.constant dense<0.000000e+00> : vector<1x8x8xf32>
    %56 = tpu.matmul %51, %53, %cst_22 {dimension_numbers = #tpu.dot_dimension_numbers<[2], [2], [1], [1], [0, 0, 0, 1, 1, 1], [0], [0]>} : vector<1x8x8xf32>, vector<1x8x8xf32>, vector<1x8x8xf32> -> vector<1x8x8xf32>
    %cst_23 = arith.constant -1.000000e+32 : f32
    %57 = vector.broadcast %cst_23 : f32 to vector<1x8x8xf32>
    %58 = arith.select %17, %56, %57 : vector<1x8x8xi1>, vector<1x8x8xf32>
    %cst_24 = arith.constant dense<0xFF800000> : vector<1x8xf32>
    %59 = vector.multi_reduction <maximumf>, %58, %cst_24 [2] : vector<1x8x8xf32> to vector<1x8xf32>
    %60 = vector.shape_cast %59 : vector<1x8xf32> to vector<1x8x1xf32>
    %61 = vector.broadcast %60 : vector<1x8x1xf32> to vector<1x8x8xf32>
    %62 = arith.subf %58, %61 : vector<1x8x8xf32>
    %63 = math.exp %62 : vector<1x8x8xf32>
    %cst_25 = arith.constant dense<0.000000e+00> : vector<1x8xf32>
    %64 = vector.multi_reduction <add>, %63, %cst_25 [2] : vector<1x8x8xf32> to vector<1x8xf32>
    %65 = vector.shape_cast %64 : vector<1x8xf32> to vector<1x8x1xf32>
    %66 = tpu.reciprocal %65 {approx = true} : vector<1x8x1xf32> -> vector<1x8x1xf32>
    %67 = vector.broadcast %66 : vector<1x8x1xf32> to vector<1x8x8xf32>
    %68 = arith.mulf %63, %67 : vector<1x8x8xf32>
    %69 = arith.mulf %68, %19 : vector<1x8x8xf32>
    %c0_26 = arith.constant 0 : index
    %c1 = arith.constant 1 : index
    %c0_27 = arith.constant 0 : index
    %c0_28 = arith.constant 0 : index
    %70 = vector.load %arg24[%c0_26, %c1, %c0_27, %c0_28] : memref<1x4x8x8xf32, #tpu.memory_space<vmem>>, vector<1x1x8x8xf32>
    %71 = vector.shape_cast %70 : vector<1x1x8x8xf32> to vector<1x8x8xf32>
    %72 = vector.shape_cast %69 : vector<1x8x8xf32> to vector<1x1x8x8xf32>
    tpu.vector_store %arg24[%c0_26, %c1, %c0_27, %c0_28], %72 {strides = array<i32>} : memref<1x4x8x8xf32, #tpu.memory_space<vmem>>, vector<1x1x8x8xf32>,
    %cst_29 = arith.constant dense<0.000000e+00> : vector<1x8x8xf32>
    %73 = tpu.matmul %69, %55, %cst_29 {dimension_numbers = #tpu.dot_dimension_numbers<[2], [1], [1], [2], [0, 0, 0, 1, 1, 2], [0], [0]>} : vector<1x8x8xf32>, vector<1x8x8xf32>, vector<1x8x8xf32> -> vector<1x8x8xf32>
    %74 = vector.shape_cast %73 : vector<1x8x8xf32> to vector<8x8xf32>
    %c0_30 = arith.constant 0 : index
    %c8 = arith.constant 8 : index
    %75 = vector.load %arg26[%c0_30, %c8] : memref<8x32xf32, #tpu.memory_space<vmem>>, vector<8x8xf32>
    tpu.vector_store %arg26[%c0_30, %c8], %74 {strides = array<i32>} : memref<8x32xf32, #tpu.memory_space<vmem>>, vector<8x8xf32>,
    %76 = vector.extract_strided_slice %11 {offsets = [0, 16], sizes = [8, 8], strides = [1, 1]} : vector<8x32xf32> to vector<8x8xf32>
    %cst_31 = arith.constant 0.353553385 : f32
    %77 = vector.broadcast %cst_31 : f32 to vector<8x8xf32>
    %78 = arith.mulf %76, %77 : vector<8x8xf32>
    %79 = vector.shape_cast %78 : vector<8x8xf32> to vector<1x8x8xf32>
    %80 = vector.extract_strided_slice %12 {offsets = [0, 16], sizes = [8, 8], strides = [1, 1]} : vector<8x32xf32> to vector<8x8xf32>
    %81 = vector.shape_cast %80 : vector<8x8xf32> to vector<1x8x8xf32>
    %82 = vector.extract_strided_slice %13 {offsets = [0, 16], sizes = [8, 8], strides = [1, 1]} : vector<8x32xf32> to vector<8x8xf32>
    %83 = vector.shape_cast %82 : vector<8x8xf32> to vector<1x8x8xf32>
    %cst_32 = arith.constant dense<0.000000e+00> : vector<1x8x8xf32>
    %84 = tpu.matmul %79, %81, %cst_32 {dimension_numbers = #tpu.dot_dimension_numbers<[2], [2], [1], [1], [0, 0, 0, 1, 1, 1], [0], [0]>} : vector<1x8x8xf32>, vector<1x8x8xf32>, vector<1x8x8xf32> -> vector<1x8x8xf32>
    %cst_33 = arith.constant -1.000000e+32 : f32
    %85 = vector.broadcast %cst_33 : f32 to vector<1x8x8xf32>
    %86 = arith.select %17, %84, %85 : vector<1x8x8xi1>, vector<1x8x8xf32>
    %cst_34 = arith.constant dense<0xFF800000> : vector<1x8xf32>
    %87 = vector.multi_reduction <maximumf>, %86, %cst_34 [2] : vector<1x8x8xf32> to vector<1x8xf32>
    %88 = vector.shape_cast %87 : vector<1x8xf32> to vector<1x8x1xf32>
    %89 = vector.broadcast %88 : vector<1x8x1xf32> to vector<1x8x8xf32>
    %90 = arith.subf %86, %89 : vector<1x8x8xf32>
    %91 = math.exp %90 : vector<1x8x8xf32>
    %cst_35 = arith.constant dense<0.000000e+00> : vector<1x8xf32>
    %92 = vector.multi_reduction <add>, %91, %cst_35 [2] : vector<1x8x8xf32> to vector<1x8xf32>
    %93 = vector.shape_cast %92 : vector<1x8xf32> to vector<1x8x1xf32>
    %94 = tpu.reciprocal %93 {approx = true} : vector<1x8x1xf32> -> vector<1x8x1xf32>
    %95 = vector.broadcast %94 : vector<1x8x1xf32> to vector<1x8x8xf32>
    %96 = arith.mulf %91, %95 : vector<1x8x8xf32>
    %97 = arith.mulf %96, %19 : vector<1x8x8xf32>
    %c0_36 = arith.constant 0 : index
    %c2 = arith.constant 2 : index
    %c0_37 = arith.constant 0 : index
    %c0_38 = arith.constant 0 : index
    %98 = vector.load %arg24[%c0_36, %c2, %c0_37, %c0_38] : memref<1x4x8x8xf32, #tpu.memory_space<vmem>>, vector<1x1x8x8xf32>
    %99 = vector.shape_cast %98 : vector<1x1x8x8xf32> to vector<1x8x8xf32>
    %100 = vector.shape_cast %97 : vector<1x8x8xf32> to vector<1x1x8x8xf32>
    tpu.vector_store %arg24[%c0_36, %c2, %c0_37, %c0_38], %100 {strides = array<i32>} : memref<1x4x8x8xf32, #tpu.memory_space<vmem>>, vector<1x1x8x8xf32>,
    %cst_39 = arith.constant dense<0.000000e+00> : vector<1x8x8xf32>
    %101 = tpu.matmul %97, %83, %cst_39 {dimension_numbers = #tpu.dot_dimension_numbers<[2], [1], [1], [2], [0, 0, 0, 1, 1, 2], [0], [0]>} : vector<1x8x8xf32>, vector<1x8x8xf32>, vector<1x8x8xf32> -> vector<1x8x8xf32>
    %102 = vector.shape_cast %101 : vector<1x8x8xf32> to vector<8x8xf32>
    %c0_40 = arith.constant 0 : index
    %c16 = arith.constant 16 : index
    %103 = vector.load %arg26[%c0_40, %c16] : memref<8x32xf32, #tpu.memory_space<vmem>>, vector<8x8xf32>
    tpu.vector_store %arg26[%c0_40, %c16], %102 {strides = array<i32>} : memref<8x32xf32, #tpu.memory_space<vmem>>, vector<8x8xf32>,
    %104 = vector.extract_strided_slice %11 {offsets = [0, 24], sizes = [8, 8], strides = [1, 1]} : vector<8x32xf32> to vector<8x8xf32>
    %cst_41 = arith.constant 0.353553385 : f32
    %105 = vector.broadcast %cst_41 : f32 to vector<8x8xf32>
    %106 = arith.mulf %104, %105 : vector<8x8xf32>
    %107 = vector.shape_cast %106 : vector<8x8xf32> to vector<1x8x8xf32>
    %108 = vector.extract_strided_slice %12 {offsets = [0, 24], sizes = [8, 8], strides = [1, 1]} : vector<8x32xf32> to vector<8x8xf32>
    %109 = vector.shape_cast %108 : vector<8x8xf32> to vector<1x8x8xf32>
    %110 = vector.extract_strided_slice %13 {offsets = [0, 24], sizes = [8, 8], strides = [1, 1]} : vector<8x32xf32> to vector<8x8xf32>
    %111 = vector.shape_cast %110 : vector<8x8xf32> to vector<1x8x8xf32>
    %cst_42 = arith.constant dense<0.000000e+00> : vector<1x8x8xf32>
    %112 = tpu.matmul %107, %109, %cst_42 {dimension_numbers = #tpu.dot_dimension_numbers<[2], [2], [1], [1], [0, 0, 0, 1, 1, 1], [0], [0]>} : vector<1x8x8xf32>, vector<1x8x8xf32>, vector<1x8x8xf32> -> vector<1x8x8xf32>
    %cst_43 = arith.constant -1.000000e+32 : f32
    %113 = vector.broadcast %cst_43 : f32 to vector<1x8x8xf32>
    %114 = arith.select %17, %112, %113 : vector<1x8x8xi1>, vector<1x8x8xf32>
    %cst_44 = arith.constant dense<0xFF800000> : vector<1x8xf32>
    %115 = vector.multi_reduction <maximumf>, %114, %cst_44 [2] : vector<1x8x8xf32> to vector<1x8xf32>
    %116 = vector.shape_cast %115 : vector<1x8xf32> to vector<1x8x1xf32>
    %117 = vector.broadcast %116 : vector<1x8x1xf32> to vector<1x8x8xf32>
    %118 = arith.subf %114, %117 : vector<1x8x8xf32>
    %119 = math.exp %118 : vector<1x8x8xf32>
    %cst_45 = arith.constant dense<0.000000e+00> : vector<1x8xf32>
    %120 = vector.multi_reduction <add>, %119, %cst_45 [2] : vector<1x8x8xf32> to vector<1x8xf32>
    %121 = vector.shape_cast %120 : vector<1x8xf32> to vector<1x8x1xf32>
    %122 = tpu.reciprocal %121 {approx = true} : vector<1x8x1xf32> -> vector<1x8x1xf32>
    %123 = vector.broadcast %122 : vector<1x8x1xf32> to vector<1x8x8xf32>
    %124 = arith.mulf %119, %123 : vector<1x8x8xf32>
    %125 = arith.mulf %124, %19 : vector<1x8x8xf32>
    %c0_46 = arith.constant 0 : index
    %c3 = arith.constant 3 : index
    %c0_47 = arith.constant 0 : index
    %c0_48 = arith.constant 0 : index
    %126 = vector.load %arg24[%c0_46, %c3, %c0_47, %c0_48] : memref<1x4x8x8xf32, #tpu.memory_space<vmem>>, vector<1x1x8x8xf32>
    %127 = vector.shape_cast %126 : vector<1x1x8x8xf32> to vector<1x8x8xf32>
    %128 = vector.shape_cast %125 : vector<1x8x8xf32> to vector<1x1x8x8xf32>
    tpu.vector_store %arg24[%c0_46, %c3, %c0_47, %c0_48], %128 {strides = array<i32>} : memref<1x4x8x8xf32, #tpu.memory_space<vmem>>, vector<1x1x8x8xf32>,
    %cst_49 = arith.constant dense<0.000000e+00> : vector<1x8x8xf32>
    %129 = tpu.matmul %125, %111, %cst_49 {dimension_numbers = #tpu.dot_dimension_numbers<[2], [1], [1], [2], [0, 0, 0, 1, 1, 2], [0], [0]>} : vector<1x8x8xf32>, vector<1x8x8xf32>, vector<1x8x8xf32> -> vector<1x8x8xf32>
    %130 = vector.shape_cast %129 : vector<1x8x8xf32> to vector<8x8xf32>
    %c0_50 = arith.constant 0 : index
    %c24 = arith.constant 24 : index
    %131 = vector.load %arg26[%c0_50, %c24] : memref<8x32xf32, #tpu.memory_space<vmem>>, vector<8x8xf32>
    tpu.vector_store %arg26[%c0_50, %c24], %130 {strides = array<i32>} : memref<8x32xf32, #tpu.memory_space<vmem>>, vector<8x8xf32>,
    %c0_51 = arith.constant 0 : index
    %c0_52 = arith.constant 0 : index
    %132 = vector.load %arg26[%c0_51, %c0_52] : memref<8x32xf32, #tpu.memory_space<vmem>>, vector<8x32xf32>
    %c0_53 = arith.constant 0 : index
    %c0_54 = arith.constant 0 : index
    %133 = vector.load %arg5[%c0_53, %c0_54] : memref<32x32xf32, #tpu.memory_space<vmem>>, vector<32x32xf32>
    %cst_55 = arith.constant dense<0.000000e+00> : vector<8x32xf32>
    %134 = tpu.matmul %132, %133, %cst_55 {dimension_numbers = #tpu.dot_dimension_numbers<[1], [0], [0], [1], [0, 0, 1, 1], [], []>} : vector<8x32xf32>, vector<32x32xf32>, vector<8x32xf32> -> vector<8x32xf32>
    %c0_56 = arith.constant 0 : index
    %c0_57 = arith.constant 0 : index
    %135 = vector.load %arg6[%c0_56, %c0_57] : memref<1x32xf32, #tpu.memory_space<vmem>>, vector<1x32xf32>
    %136 = vector.broadcast %135 : vector<1x32xf32> to vector<8x32xf32>
    %137 = arith.addf %134, %136 : vector<8x32xf32>
    %138 = arith.addf %137, %3 : vector<8x32xf32>
    %c0_58 = arith.constant 0 : index
    %c0_59 = arith.constant 0 : index
    %139 = vector.load %arg7[%c0_58, %c0_59] : memref<1x32xf32, #tpu.memory_space<vmem>>, vector<1x32xf32>
    %c0_60 = arith.constant 0 : index
    %c0_61 = arith.constant 0 : index
    %140 = vector.load %arg8[%c0_60, %c0_61] : memref<1x32xf32, #tpu.memory_space<vmem>>, vector<1x32xf32>
    %cst_62 = arith.constant dense<0.000000e+00> : vector<8xf32>
    %141 = vector.multi_reduction <add>, %138, %cst_62 [1] : vector<8x32xf32> to vector<8xf32>
    %142 = vector.shape_cast %141 : vector<8xf32> to vector<8x1xf32>
    %cst_63 = arith.constant 3.200000e+01 : f32
    %143 = vector.broadcast %cst_63 : f32 to vector<8x1xf32>
    %144 = arith.divf %142, %143 : vector<8x1xf32>
    %145 = vector.broadcast %144 : vector<8x1xf32> to vector<8x32xf32>
    %146 = arith.subf %138, %145 : vector<8x32xf32>
    %147 = arith.mulf %146, %146 : vector<8x32xf32>
    %cst_64 = arith.constant dense<0.000000e+00> : vector<8xf32>
    %148 = vector.multi_reduction <add>, %147, %cst_64 [1] : vector<8x32xf32> to vector<8xf32>
    %149 = vector.shape_cast %148 : vector<8xf32> to vector<8x1xf32>
    %cst_65 = arith.constant 3.200000e+01 : f32
    %150 = vector.broadcast %cst_65 : f32 to vector<8x1xf32>
    %151 = arith.divf %149, %150 : vector<8x1xf32>
    %152 = vector.broadcast %144 : vector<8x1xf32> to vector<8x32xf32>
    %153 = arith.subf %138, %152 : vector<8x32xf32>
    %cst_66 = arith.constant 9.99999974E-6 : f32
    %154 = vector.broadcast %cst_66 : f32 to vector<8x1xf32>
    %155 = arith.addf %151, %154 : vector<8x1xf32>
    %156 = math.rsqrt %155 : vector<8x1xf32>
    %157 = vector.broadcast %156 : vector<8x1xf32> to vector<8x32xf32>
    %158 = arith.mulf %153, %157 : vector<8x32xf32>
    %159 = vector.broadcast %139 : vector<1x32xf32> to vector<8x32xf32>
    %160 = arith.mulf %158, %159 : vector<8x32xf32>
    %161 = vector.broadcast %140 : vector<1x32xf32> to vector<8x32xf32>
    %162 = arith.addf %160, %161 : vector<8x32xf32>
    %c0_67 = arith.constant 0 : index
    %c0_68 = arith.constant 0 : index
    %163 = vector.load %arg9[%c0_67, %c0_68] : memref<32x64xf32, #tpu.memory_space<vmem>>, vector<32x64xf32>
    %cst_69 = arith.constant dense<0.000000e+00> : vector<8x64xf32>
    %164 = tpu.matmul %162, %163, %cst_69 {dimension_numbers = #tpu.dot_dimension_numbers<[1], [0], [0], [1], [0, 0, 1, 1], [], []>} : vector<8x32xf32>, vector<32x64xf32>, vector<8x64xf32> -> vector<8x64xf32>
    %c0_70 = arith.constant 0 : index
    %c0_71 = arith.constant 0 : index
    %165 = vector.load %arg10[%c0_70, %c0_71] : memref<1x64xf32, #tpu.memory_space<vmem>>, vector<1x64xf32>
    %166 = vector.broadcast %165 : vector<1x64xf32> to vector<8x64xf32>
    %167 = arith.addf %164, %166 : vector<8x64xf32>
    %c0_72 = arith.constant 0 : index
    %c0_73 = arith.constant 0 : index
    %168 = vector.load %arg11[%c0_72, %c0_73] : memref<32x32xf32, #tpu.memory_space<vmem>>, vector<32x32xf32>
    %cst_74 = arith.constant dense<0.000000e+00> : vector<8x32xf32>
    %169 = tpu.matmul %5, %168, %cst_74 {dimension_numbers = #tpu.dot_dimension_numbers<[1], [0], [0], [1], [0, 0, 1, 1], [], []>} : vector<8x32xf32>, vector<32x32xf32>, vector<8x32xf32> -> vector<8x32xf32>
    %c0_75 = arith.constant 0 : index
    %c0_76 = arith.constant 0 : index
    %170 = vector.load %arg12[%c0_75, %c0_76] : memref<1x32xf32, #tpu.memory_space<vmem>>, vector<1x32xf32>
    %171 = vector.broadcast %170 : vector<1x32xf32> to vector<8x32xf32>
    %172 = arith.addf %169, %171 : vector<8x32xf32>
    %173 = vector.extract_strided_slice %167 {offsets = [0, 0], sizes = [8, 32], strides = [1, 1]} : vector<8x64xf32> to vector<8x32xf32>
    %174 = vector.extract_strided_slice %167 {offsets = [0, 32], sizes = [8, 32], strides = [1, 1]} : vector<8x64xf32> to vector<8x32xf32>
    %175 = arith.subi %0, %1 : vector<8x8xi32>
    %c1_i32 = arith.constant 1 : i32
    %176 = vector.broadcast %c1_i32 : i32 to vector<8x8xi32>
    %177 = arith.cmpi sge, %175, %176 : vector<8x8xi32>
    %178 = vector.shape_cast %177 : vector<8x8xi1> to vector<1x8x8xi1>
    %179 = arith.extui %178 : vector<1x8x8xi1> to vector<1x8x8xi32>
    %180 = arith.sitofp %179 : vector<1x8x8xi32> to vector<1x8x8xf32>
    %c0_i32_77 = arith.constant 0 : i32
    %181 = vector.broadcast %c0_i32_77 : i32 to vector<8x8xi32>
    %182 = arith.cmpi eq, %0, %181 : vector<8x8xi32>
    %183 = vector.shape_cast %182 : vector<8x8xi1> to vector<1x8x8xi1>
    %184 = vector.extract_strided_slice %173 {offsets = [0, 0], sizes = [8, 8], strides = [1, 1]} : vector<8x32xf32> to vector<8x8xf32>
    %cst_78 = arith.constant 0.353553385 : f32
    %185 = vector.broadcast %cst_78 : f32 to vector<8x8xf32>
    %186 = arith.mulf %184, %185 : vector<8x8xf32>
    %187 = vector.shape_cast %186 : vector<8x8xf32> to vector<1x8x8xf32>
    %188 = vector.extract_strided_slice %174 {offsets = [0, 0], sizes = [8, 8], strides = [1, 1]} : vector<8x32xf32> to vector<8x8xf32>
    %189 = vector.shape_cast %188 : vector<8x8xf32> to vector<1x8x8xf32>
    %190 = vector.extract_strided_slice %172 {offsets = [0, 0], sizes = [8, 8], strides = [1, 1]} : vector<8x32xf32> to vector<8x8xf32>
    %191 = vector.shape_cast %190 : vector<8x8xf32> to vector<1x8x8xf32>
    %cst_79 = arith.constant dense<0.000000e+00> : vector<1x8x8xf32>
    %192 = tpu.matmul %187, %189, %cst_79 {dimension_numbers = #tpu.dot_dimension_numbers<[2], [2], [1], [1], [0, 0, 0, 1, 1, 1], [0], [0]>} : vector<1x8x8xf32>, vector<1x8x8xf32>, vector<1x8x8xf32> -> vector<1x8x8xf32>
    %cst_80 = arith.constant -1.000000e+32 : f32
    %193 = vector.broadcast %cst_80 : f32 to vector<1x8x8xf32>
    %194 = arith.select %178, %192, %193 : vector<1x8x8xi1>, vector<1x8x8xf32>
    %cst_81 = arith.constant dense<0xFF800000> : vector<1x8xf32>
    %195 = vector.multi_reduction <maximumf>, %194, %cst_81 [2] : vector<1x8x8xf32> to vector<1x8xf32>
    %196 = vector.shape_cast %195 : vector<1x8xf32> to vector<1x8x1xf32>
    %197 = vector.broadcast %196 : vector<1x8x1xf32> to vector<1x8x8xf32>
    %198 = arith.subf %194, %197 : vector<1x8x8xf32>
    %199 = math.exp %198 : vector<1x8x8xf32>
    %cst_82 = arith.constant dense<0.000000e+00> : vector<1x8xf32>
    %200 = vector.multi_reduction <add>, %199, %cst_82 [2] : vector<1x8x8xf32> to vector<1x8xf32>
    %201 = vector.shape_cast %200 : vector<1x8xf32> to vector<1x8x1xf32>
    %202 = tpu.reciprocal %201 {approx = true} : vector<1x8x1xf32> -> vector<1x8x1xf32>
    %203 = vector.broadcast %202 : vector<1x8x1xf32> to vector<1x8x8xf32>
    %204 = arith.mulf %199, %203 : vector<1x8x8xf32>
    %cst_83 = arith.constant 0.000000e+00 : f32
    %205 = vector.broadcast %cst_83 : f32 to vector<1x8x8xf32>
    %206 = arith.select %183, %205, %204 : vector<1x8x8xi1>, vector<1x8x8xf32>
    %207 = arith.mulf %206, %180 : vector<1x8x8xf32>
    %c0_84 = arith.constant 0 : index
    %c0_85 = arith.constant 0 : index
    %c0_86 = arith.constant 0 : index
    %c0_87 = arith.constant 0 : index
    %208 = vector.load %arg25[%c0_84, %c0_85, %c0_86, %c0_87] : memref<1x4x8x8xf32, #tpu.memory_space<vmem>>, vector<1x1x8x8xf32>
    %209 = vector.shape_cast %208 : vector<1x1x8x8xf32> to vector<1x8x8xf32>
    %210 = vector.shape_cast %207 : vector<1x8x8xf32> to vector<1x1x8x8xf32>
    tpu.vector_store %arg25[%c0_84, %c0_85, %c0_86, %c0_87], %210 {strides = array<i32>} : memref<1x4x8x8xf32, #tpu.memory_space<vmem>>, vector<1x1x8x8xf32>,
    %cst_88 = arith.constant dense<0.000000e+00> : vector<1x8x8xf32>
    %211 = tpu.matmul %207, %191, %cst_88 {dimension_numbers = #tpu.dot_dimension_numbers<[2], [1], [1], [2], [0, 0, 0, 1, 1, 2], [0], [0]>} : vector<1x8x8xf32>, vector<1x8x8xf32>, vector<1x8x8xf32> -> vector<1x8x8xf32>
    %212 = vector.shape_cast %211 : vector<1x8x8xf32> to vector<8x8xf32>
    %c0_89 = arith.constant 0 : index
    %c0_90 = arith.constant 0 : index
    %213 = vector.load %arg26[%c0_89, %c0_90] : memref<8x32xf32, #tpu.memory_space<vmem>>, vector<8x8xf32>
    tpu.vector_store %arg26[%c0_89, %c0_90], %212 {strides = array<i32>} : memref<8x32xf32, #tpu.memory_space<vmem>>, vector<8x8xf32>,
    %214 = vector.extract_strided_slice %173 {offsets = [0, 8], sizes = [8, 8], strides = [1, 1]} : vector<8x32xf32> to vector<8x8xf32>
    %cst_91 = arith.constant 0.353553385 : f32
    %215 = vector.broadcast %cst_91 : f32 to vector<8x8xf32>
    %216 = arith.mulf %214, %215 : vector<8x8xf32>
    %217 = vector.shape_cast %216 : vector<8x8xf32> to vector<1x8x8xf32>
    %218 = vector.extract_strided_slice %174 {offsets = [0, 8], sizes = [8, 8], strides = [1, 1]} : vector<8x32xf32> to vector<8x8xf32>
    %219 = vector.shape_cast %218 : vector<8x8xf32> to vector<1x8x8xf32>
    %220 = vector.extract_strided_slice %172 {offsets = [0, 8], sizes = [8, 8], strides = [1, 1]} : vector<8x32xf32> to vector<8x8xf32>
    %221 = vector.shape_cast %220 : vector<8x8xf32> to vector<1x8x8xf32>
    %cst_92 = arith.constant dense<0.000000e+00> : vector<1x8x8xf32>
    %222 = tpu.matmul %217, %219, %cst_92 {dimension_numbers = #tpu.dot_dimension_numbers<[2], [2], [1], [1], [0, 0, 0, 1, 1, 1], [0], [0]>} : vector<1x8x8xf32>, vector<1x8x8xf32>, vector<1x8x8xf32> -> vector<1x8x8xf32>
    %cst_93 = arith.constant -1.000000e+32 : f32
    %223 = vector.broadcast %cst_93 : f32 to vector<1x8x8xf32>
    %224 = arith.select %178, %222, %223 : vector<1x8x8xi1>, vector<1x8x8xf32>
    %cst_94 = arith.constant dense<0xFF800000> : vector<1x8xf32>
    %225 = vector.multi_reduction <maximumf>, %224, %cst_94 [2] : vector<1x8x8xf32> to vector<1x8xf32>
    %226 = vector.shape_cast %225 : vector<1x8xf32> to vector<1x8x1xf32>
    %227 = vector.broadcast %226 : vector<1x8x1xf32> to vector<1x8x8xf32>
    %228 = arith.subf %224, %227 : vector<1x8x8xf32>
    %229 = math.exp %228 : vector<1x8x8xf32>
    %cst_95 = arith.constant dense<0.000000e+00> : vector<1x8xf32>
    %230 = vector.multi_reduction <add>, %229, %cst_95 [2] : vector<1x8x8xf32> to vector<1x8xf32>
    %231 = vector.shape_cast %230 : vector<1x8xf32> to vector<1x8x1xf32>
    %232 = tpu.reciprocal %231 {approx = true} : vector<1x8x1xf32> -> vector<1x8x1xf32>
    %233 = vector.broadcast %232 : vector<1x8x1xf32> to vector<1x8x8xf32>
    %234 = arith.mulf %229, %233 : vector<1x8x8xf32>
    %cst_96 = arith.constant 0.000000e+00 : f32
    %235 = vector.broadcast %cst_96 : f32 to vector<1x8x8xf32>
    %236 = arith.select %183, %235, %234 : vector<1x8x8xi1>, vector<1x8x8xf32>
    %237 = arith.mulf %236, %180 : vector<1x8x8xf32>
    %c0_97 = arith.constant 0 : index
    %c1_98 = arith.constant 1 : index
    %c0_99 = arith.constant 0 : index
    %c0_100 = arith.constant 0 : index
    %238 = vector.load %arg25[%c0_97, %c1_98, %c0_99, %c0_100] : memref<1x4x8x8xf32, #tpu.memory_space<vmem>>, vector<1x1x8x8xf32>
    %239 = vector.shape_cast %238 : vector<1x1x8x8xf32> to vector<1x8x8xf32>
    %240 = vector.shape_cast %237 : vector<1x8x8xf32> to vector<1x1x8x8xf32>
    tpu.vector_store %arg25[%c0_97, %c1_98, %c0_99, %c0_100], %240 {strides = array<i32>} : memref<1x4x8x8xf32, #tpu.memory_space<vmem>>, vector<1x1x8x8xf32>,
    %cst_101 = arith.constant dense<0.000000e+00> : vector<1x8x8xf32>
    %241 = tpu.matmul %237, %221, %cst_101 {dimension_numbers = #tpu.dot_dimension_numbers<[2], [1], [1], [2], [0, 0, 0, 1, 1, 2], [0], [0]>} : vector<1x8x8xf32>, vector<1x8x8xf32>, vector<1x8x8xf32> -> vector<1x8x8xf32>
    %242 = vector.shape_cast %241 : vector<1x8x8xf32> to vector<8x8xf32>
    %c0_102 = arith.constant 0 : index
    %c8_103 = arith.constant 8 : index
    %243 = vector.load %arg26[%c0_102, %c8_103] : memref<8x32xf32, #tpu.memory_space<vmem>>, vector<8x8xf32>
    tpu.vector_store %arg26[%c0_102, %c8_103], %242 {strides = array<i32>} : memref<8x32xf32, #tpu.memory_space<vmem>>, vector<8x8xf32>,
    %244 = vector.extract_strided_slice %173 {offsets = [0, 16], sizes = [8, 8], strides = [1, 1]} : vector<8x32xf32> to vector<8x8xf32>
    %cst_104 = arith.constant 0.353553385 : f32
    %245 = vector.broadcast %cst_104 : f32 to vector<8x8xf32>
    %246 = arith.mulf %244, %245 : vector<8x8xf32>
    %247 = vector.shape_cast %246 : vector<8x8xf32> to vector<1x8x8xf32>
    %248 = vector.extract_strided_slice %174 {offsets = [0, 16], sizes = [8, 8], strides = [1, 1]} : vector<8x32xf32> to vector<8x8xf32>
    %249 = vector.shape_cast %248 : vector<8x8xf32> to vector<1x8x8xf32>
    %250 = vector.extract_strided_slice %172 {offsets = [0, 16], sizes = [8, 8], strides = [1, 1]} : vector<8x32xf32> to vector<8x8xf32>
    %251 = vector.shape_cast %250 : vector<8x8xf32> to vector<1x8x8xf32>
    %cst_105 = arith.constant dense<0.000000e+00> : vector<1x8x8xf32>
    %252 = tpu.matmul %247, %249, %cst_105 {dimension_numbers = #tpu.dot_dimension_numbers<[2], [2], [1], [1], [0, 0, 0, 1, 1, 1], [0], [0]>} : vector<1x8x8xf32>, vector<1x8x8xf32>, vector<1x8x8xf32> -> vector<1x8x8xf32>
    %cst_106 = arith.constant -1.000000e+32 : f32
    %253 = vector.broadcast %cst_106 : f32 to vector<1x8x8xf32>
    %254 = arith.select %178, %252, %253 : vector<1x8x8xi1>, vector<1x8x8xf32>
    %cst_107 = arith.constant dense<0xFF800000> : vector<1x8xf32>
    %255 = vector.multi_reduction <maximumf>, %254, %cst_107 [2] : vector<1x8x8xf32> to vector<1x8xf32>
    %256 = vector.shape_cast %255 : vector<1x8xf32> to vector<1x8x1xf32>
    %257 = vector.broadcast %256 : vector<1x8x1xf32> to vector<1x8x8xf32>
    %258 = arith.subf %254, %257 : vector<1x8x8xf32>
    %259 = math.exp %258 : vector<1x8x8xf32>
    %cst_108 = arith.constant dense<0.000000e+00> : vector<1x8xf32>
    %260 = vector.multi_reduction <add>, %259, %cst_108 [2] : vector<1x8x8xf32> to vector<1x8xf32>
    %261 = vector.shape_cast %260 : vector<1x8xf32> to vector<1x8x1xf32>
    %262 = tpu.reciprocal %261 {approx = true} : vector<1x8x1xf32> -> vector<1x8x1xf32>
    %263 = vector.broadcast %262 : vector<1x8x1xf32> to vector<1x8x8xf32>
    %264 = arith.mulf %259, %263 : vector<1x8x8xf32>
    %cst_109 = arith.constant 0.000000e+00 : f32
    %265 = vector.broadcast %cst_109 : f32 to vector<1x8x8xf32>
    %266 = arith.select %183, %265, %264 : vector<1x8x8xi1>, vector<1x8x8xf32>
    %267 = arith.mulf %266, %180 : vector<1x8x8xf32>
    %c0_110 = arith.constant 0 : index
    %c2_111 = arith.constant 2 : index
    %c0_112 = arith.constant 0 : index
    %c0_113 = arith.constant 0 : index
    %268 = vector.load %arg25[%c0_110, %c2_111, %c0_112, %c0_113] : memref<1x4x8x8xf32, #tpu.memory_space<vmem>>, vector<1x1x8x8xf32>
    %269 = vector.shape_cast %268 : vector<1x1x8x8xf32> to vector<1x8x8xf32>
    %270 = vector.shape_cast %267 : vector<1x8x8xf32> to vector<1x1x8x8xf32>
    tpu.vector_store %arg25[%c0_110, %c2_111, %c0_112, %c0_113], %270 {strides = array<i32>} : memref<1x4x8x8xf32, #tpu.memory_space<vmem>>, vector<1x1x8x8xf32>,
    %cst_114 = arith.constant dense<0.000000e+00> : vector<1x8x8xf32>
    %271 = tpu.matmul %267, %251, %cst_114 {dimension_numbers = #tpu.dot_dimension_numbers<[2], [1], [1], [2], [0, 0, 0, 1, 1, 2], [0], [0]>} : vector<1x8x8xf32>, vector<1x8x8xf32>, vector<1x8x8xf32> -> vector<1x8x8xf32>
    %272 = vector.shape_cast %271 : vector<1x8x8xf32> to vector<8x8xf32>
    %c0_115 = arith.constant 0 : index
    %c16_116 = arith.constant 16 : index
    %273 = vector.load %arg26[%c0_115, %c16_116] : memref<8x32xf32, #tpu.memory_space<vmem>>, vector<8x8xf32>
    tpu.vector_store %arg26[%c0_115, %c16_116], %272 {strides = array<i32>} : memref<8x32xf32, #tpu.memory_space<vmem>>, vector<8x8xf32>,
    %274 = vector.extract_strided_slice %173 {offsets = [0, 24], sizes = [8, 8], strides = [1, 1]} : vector<8x32xf32> to vector<8x8xf32>
    %cst_117 = arith.constant 0.353553385 : f32
    %275 = vector.broadcast %cst_117 : f32 to vector<8x8xf32>
    %276 = arith.mulf %274, %275 : vector<8x8xf32>
    %277 = vector.shape_cast %276 : vector<8x8xf32> to vector<1x8x8xf32>
    %278 = vector.extract_strided_slice %174 {offsets = [0, 24], sizes = [8, 8], strides = [1, 1]} : vector<8x32xf32> to vector<8x8xf32>
    %279 = vector.shape_cast %278 : vector<8x8xf32> to vector<1x8x8xf32>
    %280 = vector.extract_strided_slice %172 {offsets = [0, 24], sizes = [8, 8], strides = [1, 1]} : vector<8x32xf32> to vector<8x8xf32>
    %281 = vector.shape_cast %280 : vector<8x8xf32> to vector<1x8x8xf32>
    %cst_118 = arith.constant dense<0.000000e+00> : vector<1x8x8xf32>
    %282 = tpu.matmul %277, %279, %cst_118 {dimension_numbers = #tpu.dot_dimension_numbers<[2], [2], [1], [1], [0, 0, 0, 1, 1, 1], [0], [0]>} : vector<1x8x8xf32>, vector<1x8x8xf32>, vector<1x8x8xf32> -> vector<1x8x8xf32>
    %cst_119 = arith.constant -1.000000e+32 : f32
    %283 = vector.broadcast %cst_119 : f32 to vector<1x8x8xf32>
    %284 = arith.select %178, %282, %283 : vector<1x8x8xi1>, vector<1x8x8xf32>
    %cst_120 = arith.constant dense<0xFF800000> : vector<1x8xf32>
    %285 = vector.multi_reduction <maximumf>, %284, %cst_120 [2] : vector<1x8x8xf32> to vector<1x8xf32>
    %286 = vector.shape_cast %285 : vector<1x8xf32> to vector<1x8x1xf32>
    %287 = vector.broadcast %286 : vector<1x8x1xf32> to vector<1x8x8xf32>
    %288 = arith.subf %284, %287 : vector<1x8x8xf32>
    %289 = math.exp %288 : vector<1x8x8xf32>
    %cst_121 = arith.constant dense<0.000000e+00> : vector<1x8xf32>
    %290 = vector.multi_reduction <add>, %289, %cst_121 [2] : vector<1x8x8xf32> to vector<1x8xf32>
    %291 = vector.shape_cast %290 : vector<1x8xf32> to vector<1x8x1xf32>
    %292 = tpu.reciprocal %291 {approx = true} : vector<1x8x1xf32> -> vector<1x8x1xf32>
    %293 = vector.broadcast %292 : vector<1x8x1xf32> to vector<1x8x8xf32>
    %294 = arith.mulf %289, %293 : vector<1x8x8xf32>
    %cst_122 = arith.constant 0.000000e+00 : f32
    %295 = vector.broadcast %cst_122 : f32 to vector<1x8x8xf32>
    %296 = arith.select %183, %295, %294 : vector<1x8x8xi1>, vector<1x8x8xf32>
    %297 = arith.mulf %296, %180 : vector<1x8x8xf32>
    %c0_123 = arith.constant 0 : index
    %c3_124 = arith.constant 3 : index
    %c0_125 = arith.constant 0 : index
    %c0_126 = arith.constant 0 : index
    %298 = vector.load %arg25[%c0_123, %c3_124, %c0_125, %c0_126] : memref<1x4x8x8xf32, #tpu.memory_space<vmem>>, vector<1x1x8x8xf32>
    %299 = vector.shape_cast %298 : vector<1x1x8x8xf32> to vector<1x8x8xf32>
    %300 = vector.shape_cast %297 : vector<1x8x8xf32> to vector<1x1x8x8xf32>
    tpu.vector_store %arg25[%c0_123, %c3_124, %c0_125, %c0_126], %300 {strides = array<i32>} : memref<1x4x8x8xf32, #tpu.memory_space<vmem>>, vector<1x1x8x8xf32>,
    %cst_127 = arith.constant dense<0.000000e+00> : vector<1x8x8xf32>
    %301 = tpu.matmul %297, %281, %cst_127 {dimension_numbers = #tpu.dot_dimension_numbers<[2], [1], [1], [2], [0, 0, 0, 1, 1, 2], [0], [0]>} : vector<1x8x8xf32>, vector<1x8x8xf32>, vector<1x8x8xf32> -> vector<1x8x8xf32>
    %302 = vector.shape_cast %301 : vector<1x8x8xf32> to vector<8x8xf32>
    %c0_128 = arith.constant 0 : index
    %c24_129 = arith.constant 24 : index
    %303 = vector.load %arg26[%c0_128, %c24_129] : memref<8x32xf32, #tpu.memory_space<vmem>>, vector<8x8xf32>
    tpu.vector_store %arg26[%c0_128, %c24_129], %302 {strides = array<i32>} : memref<8x32xf32, #tpu.memory_space<vmem>>, vector<8x8xf32>,
    %c0_130 = arith.constant 0 : index
    %c0_131 = arith.constant 0 : index
    %304 = vector.load %arg26[%c0_130, %c0_131] : memref<8x32xf32, #tpu.memory_space<vmem>>, vector<8x32xf32>
    %c0_132 = arith.constant 0 : index
    %c0_133 = arith.constant 0 : index
    %305 = vector.load %arg13[%c0_132, %c0_133] : memref<32x32xf32, #tpu.memory_space<vmem>>, vector<32x32xf32>
    %cst_134 = arith.constant dense<0.000000e+00> : vector<8x32xf32>
    %306 = tpu.matmul %304, %305, %cst_134 {dimension_numbers = #tpu.dot_dimension_numbers<[1], [0], [0], [1], [0, 0, 1, 1], [], []>} : vector<8x32xf32>, vector<32x32xf32>, vector<8x32xf32> -> vector<8x32xf32>
    %c0_135 = arith.constant 0 : index
    %c0_136 = arith.constant 0 : index
    %307 = vector.load %arg14[%c0_135, %c0_136] : memref<1x32xf32, #tpu.memory_space<vmem>>, vector<1x32xf32>
    %308 = vector.broadcast %307 : vector<1x32xf32> to vector<8x32xf32>
    %309 = arith.addf %306, %308 : vector<8x32xf32>
    %310 = arith.addf %309, %162 : vector<8x32xf32>
    %c0_137 = arith.constant 0 : index
    %c0_138 = arith.constant 0 : index
    %311 = vector.load %arg15[%c0_137, %c0_138] : memref<1x32xf32, #tpu.memory_space<vmem>>, vector<1x32xf32>
    %c0_139 = arith.constant 0 : index
    %c0_140 = arith.constant 0 : index
    %312 = vector.load %arg16[%c0_139, %c0_140] : memref<1x32xf32, #tpu.memory_space<vmem>>, vector<1x32xf32>
    %cst_141 = arith.constant dense<0.000000e+00> : vector<8xf32>
    %313 = vector.multi_reduction <add>, %310, %cst_141 [1] : vector<8x32xf32> to vector<8xf32>
    %314 = vector.shape_cast %313 : vector<8xf32> to vector<8x1xf32>
    %cst_142 = arith.constant 3.200000e+01 : f32
    %315 = vector.broadcast %cst_142 : f32 to vector<8x1xf32>
    %316 = arith.divf %314, %315 : vector<8x1xf32>
    %317 = vector.broadcast %316 : vector<8x1xf32> to vector<8x32xf32>
    %318 = arith.subf %310, %317 : vector<8x32xf32>
    %319 = arith.mulf %318, %318 : vector<8x32xf32>
    %cst_143 = arith.constant dense<0.000000e+00> : vector<8xf32>
    %320 = vector.multi_reduction <add>, %319, %cst_143 [1] : vector<8x32xf32> to vector<8xf32>
    %321 = vector.shape_cast %320 : vector<8xf32> to vector<8x1xf32>
    %cst_144 = arith.constant 3.200000e+01 : f32
    %322 = vector.broadcast %cst_144 : f32 to vector<8x1xf32>
    %323 = arith.divf %321, %322 : vector<8x1xf32>
    %324 = vector.broadcast %316 : vector<8x1xf32> to vector<8x32xf32>
    %325 = arith.subf %310, %324 : vector<8x32xf32>
    %cst_145 = arith.constant 9.99999974E-6 : f32
    %326 = vector.broadcast %cst_145 : f32 to vector<8x1xf32>
    %327 = arith.addf %323, %326 : vector<8x1xf32>
    %328 = math.rsqrt %327 : vector<8x1xf32>
    %329 = vector.broadcast %328 : vector<8x1xf32> to vector<8x32xf32>
    %330 = arith.mulf %325, %329 : vector<8x32xf32>
    %331 = vector.broadcast %311 : vector<1x32xf32> to vector<8x32xf32>
    %332 = arith.mulf %330, %331 : vector<8x32xf32>
    %333 = vector.broadcast %312 : vector<1x32xf32> to vector<8x32xf32>
    %334 = arith.addf %332, %333 : vector<8x32xf32>
    %c0_146 = arith.constant 0 : index
    %c0_147 = arith.constant 0 : index
    %335 = vector.load %arg17[%c0_146, %c0_147] : memref<32x64xf32, #tpu.memory_space<vmem>>, vector<32x64xf32>
    %cst_148 = arith.constant dense<0.000000e+00> : vector<8x64xf32>
    %336 = tpu.matmul %334, %335, %cst_148 {dimension_numbers = #tpu.dot_dimension_numbers<[1], [0], [0], [1], [0, 0, 1, 1], [], []>} : vector<8x32xf32>, vector<32x64xf32>, vector<8x64xf32> -> vector<8x64xf32>
    %c0_149 = arith.constant 0 : index
    %c0_150 = arith.constant 0 : index
    %337 = vector.load %arg18[%c0_149, %c0_150] : memref<1x64xf32, #tpu.memory_space<vmem>>, vector<1x64xf32>
    %338 = vector.broadcast %337 : vector<1x64xf32> to vector<8x64xf32>
    %339 = arith.addf %336, %338 : vector<8x64xf32>
    %cst_151 = arith.constant 0.000000e+00 : f32
    %340 = vector.broadcast %cst_151 : f32 to vector<8x64xf32>
    %341 = arith.maximumf %339, %340 : vector<8x64xf32>
    %c0_152 = arith.constant 0 : index
    %c0_153 = arith.constant 0 : index
    %342 = vector.load %arg19[%c0_152, %c0_153] : memref<64x32xf32, #tpu.memory_space<vmem>>, vector<64x32xf32>
    %cst_154 = arith.constant dense<0.000000e+00> : vector<8x32xf32>
    %343 = tpu.matmul %341, %342, %cst_154 {dimension_numbers = #tpu.dot_dimension_numbers<[1], [0], [0], [1], [0, 0, 1, 1], [], []>} : vector<8x64xf32>, vector<64x32xf32>, vector<8x32xf32> -> vector<8x32xf32>
    %c0_155 = arith.constant 0 : index
    %c0_156 = arith.constant 0 : index
    %344 = vector.load %arg20[%c0_155, %c0_156] : memref<1x32xf32, #tpu.memory_space<vmem>>, vector<1x32xf32>
    %345 = vector.broadcast %344 : vector<1x32xf32> to vector<8x32xf32>
    %346 = arith.addf %343, %345 : vector<8x32xf32>
    %347 = arith.addf %346, %334 : vector<8x32xf32>
    %c0_157 = arith.constant 0 : index
    %c0_158 = arith.constant 0 : index
    %348 = vector.load %arg21[%c0_157, %c0_158] : memref<1x32xf32, #tpu.memory_space<vmem>>, vector<1x32xf32>
    %c0_159 = arith.constant 0 : index
    %c0_160 = arith.constant 0 : index
    %349 = vector.load %arg22[%c0_159, %c0_160] : memref<1x32xf32, #tpu.memory_space<vmem>>, vector<1x32xf32>
    %cst_161 = arith.constant dense<0.000000e+00> : vector<8xf32>
    %350 = vector.multi_reduction <add>, %347, %cst_161 [1] : vector<8x32xf32> to vector<8xf32>
    %351 = vector.shape_cast %350 : vector<8xf32> to vector<8x1xf32>
    %cst_162 = arith.constant 3.200000e+01 : f32
    %352 = vector.broadcast %cst_162 : f32 to vector<8x1xf32>
    %353 = arith.divf %351, %352 : vector<8x1xf32>
    %354 = vector.broadcast %353 : vector<8x1xf32> to vector<8x32xf32>
    %355 = arith.subf %347, %354 : vector<8x32xf32>
    %356 = arith.mulf %355, %355 : vector<8x32xf32>
    %cst_163 = arith.constant dense<0.000000e+00> : vector<8xf32>
    %357 = vector.multi_reduction <add>, %356, %cst_163 [1] : vector<8x32xf32> to vector<8xf32>
    %358 = vector.shape_cast %357 : vector<8xf32> to vector<8x1xf32>
    %cst_164 = arith.constant 3.200000e+01 : f32
    %359 = vector.broadcast %cst_164 : f32 to vector<8x1xf32>
    %360 = arith.divf %358, %359 : vector<8x1xf32>
    %361 = vector.broadcast %353 : vector<8x1xf32> to vector<8x32xf32>
    %362 = arith.subf %347, %361 : vector<8x32xf32>
    %cst_165 = arith.constant 9.99999997E-7 : f32
    %363 = vector.broadcast %cst_165 : f32 to vector<8x1xf32>
    %364 = arith.addf %360, %363 : vector<8x1xf32>
    %365 = math.rsqrt %364 : vector<8x1xf32>
    %366 = vector.broadcast %365 : vector<8x1xf32> to vector<8x32xf32>
    %367 = arith.mulf %362, %366 : vector<8x32xf32>
    %368 = vector.broadcast %348 : vector<1x32xf32> to vector<8x32xf32>
    %369 = arith.mulf %367, %368 : vector<8x32xf32>
    %370 = vector.broadcast %349 : vector<1x32xf32> to vector<8x32xf32>
    %371 = arith.addf %369, %370 : vector<8x32xf32>
    %372 = vector.shape_cast %371 : vector<8x32xf32> to vector<1x8x32xf32>
    %c0_166 = arith.constant 0 : index
    %c0_167 = arith.constant 0 : index
    %c0_168 = arith.constant 0 : index
    %373 = vector.load %arg23[%c0_166, %c0_167, %c0_168] : memref<1x8x32xf32, #tpu.memory_space<vmem>>, vector<1x8x32xf32>
    tpu.vector_store %arg23[%c0_166, %c0_167, %c0_168], %372 {strides = array<i32>} : memref<1x8x32xf32, #tpu.memory_space<vmem>>, vector<1x8x32xf32>,
    return
  }
  func.func @transform_0(%arg0: i32) -> (i32, i32, i32) {
    %c0_i32 = arith.constant 0 : i32
    %c0_i32_0 = arith.constant 0 : i32
    %c0_i32_1 = arith.constant 0 : i32
    return %arg0, %c0_i32, %c0_i32_0 : i32, i32, i32
  }
  func.func @transform_1(%arg0: i32) -> (i32, i32, i32) {
    %c0_i32 = arith.constant 0 : i32
    %c0_i32_0 = arith.constant 0 : i32
    %c0_i32_1 = arith.constant 0 : i32
    return %arg0, %c0_i32, %c0_i32_0 : i32, i32, i32
  }
  func.func @transform_2(%arg0: i32) -> (i32, i32) {
    %c0_i32 = arith.constant 0 : i32
    %c0_i32_0 = arith.constant 0 : i32
    %c0_i32_1 = arith.constant 0 : i32
    return %c0_i32, %c0_i32_0 : i32, i32
  }
  func.func @transform_3(%arg0: i32) -> (i32, i32) {
    %c0_i32 = arith.constant 0 : i32
    %c0_i32_0 = arith.constant 0 : i32
    %c0_i32_1 = arith.constant 0 : i32
    return %c0_i32, %c0_i32_0 : i32, i32
  }
  func.func @transform_4(%arg0: i32) -> (i32, i32) {
    %c0_i32 = arith.constant 0 : i32
    %c0_i32_0 = arith.constant 0 : i32
    %c0_i32_1 = arith.constant 0 : i32
    return %c0_i32, %c0_i32_0 : i32, i32
  }
  func.func @transform_5(%arg0: i32) -> (i32, i32) {
    %c0_i32 = arith.constant 0 : i32
    %c0_i32_0 = arith.constant 0 : i32
    %c0_i32_1 = arith.constant 0 : i32
    return %c0_i32, %c0_i32_0 : i32, i32
  }
  func.func @transform_6(%arg0: i32) -> (i32, i32) {
    %c0_i32 = arith.constant 0 : i32
    %c0_i32_0 = arith.constant 0 : i32
    %c0_i32_1 = arith.constant 0 : i32
    return %c0_i32, %c0_i32_0 : i32, i32
  }
  func.func @transform_7(%arg0: i32) -> (i32, i32) {
    %c0_i32 = arith.constant 0 : i32
    %c0_i32_0 = arith.constant 0 : i32
    %c0_i32_1 = arith.constant 0 : i32
    return %c0_i32, %c0_i32_0 : i32, i32
  }
  func.func @transform_8(%arg0: i32) -> (i32, i32) {
    %c0_i32 = arith.constant 0 : i32
    %c0_i32_0 = arith.constant 0 : i32
    %c0_i32_1 = arith.constant 0 : i32
    return %c0_i32, %c0_i32_0 : i32, i32
  }
  func.func @transform_9(%arg0: i32) -> (i32, i32) {
    %c0_i32 = arith.constant 0 : i32
    %c0_i32_0 = arith.constant 0 : i32
    %c0_i32_1 = arith.constant 0 : i32
    return %c0_i32, %c0_i32_0 : i32, i32
  }
  func.func @transform_10(%arg0: i32) -> (i32, i32) {
    %c0_i32 = arith.constant 0 : i32
    %c0_i32_0 = arith.constant 0 : i32
    %c0_i32_1 = arith.constant 0 : i32
    return %c0_i32, %c0_i32_0 : i32, i32
  }
  func.func @transform_11(%arg0: i32) -> (i32, i32) {
    %c0_i32 = arith.constant 0 : i32
    %c0_i32_0 = arith.constant 0 : i32
    %c0_i32_1 = arith.constant 0 : i32
    return %c0_i32, %c0_i32_0 : i32, i32
  }
  func.func @transform_12(%arg0: i32) -> (i32, i32) {
    %c0_i32 = arith.constant 0 : i32
    %c0_i32_0 = arith.constant 0 : i32
    %c0_i32_1 = arith.constant 0 : i32
    return %c0_i32, %c0_i32_0 : i32, i32
  }
  func.func @transform_13(%arg0: i32) -> (i32, i32) {
    %c0_i32 = arith.constant 0 : i32
    %c0_i32_0 = arith.constant 0 : i32
    %c0_i32_1 = arith.constant 0 : i32
    return %c0_i32, %c0_i32_0 : i32, i32
  }
  func.func @transform_14(%arg0: i32) -> (i32, i32) {
    %c0_i32 = arith.constant 0 : i32
    %c0_i32_0 = arith.constant 0 : i32
    %c0_i32_1 = arith.constant 0 : i32
    return %c0_i32, %c0_i32_0 : i32, i32
  }
  func.func @transform_15(%arg0: i32) -> (i32, i32) {
    %c0_i32 = arith.constant 0 : i32
    %c0_i32_0 = arith.constant 0 : i32
    %c0_i32_1 = arith.constant 0 : i32
    return %c0_i32, %c0_i32_0 : i32, i32
  }
  func.func @transform_16(%arg0: i32) -> (i32, i32) {
    %c0_i32 = arith.constant 0 : i32
    %c0_i32_0 = arith.constant 0 : i32
    %c0_i32_1 = arith.constant 0 : i32
    return %c0_i32, %c0_i32_0 : i32, i32
  }
  func.func @transform_17(%arg0: i32) -> (i32, i32) {
    %c0_i32 = arith.constant 0 : i32
    %c0_i32_0 = arith.constant 0 : i32
    %c0_i32_1 = arith.constant 0 : i32
    return %c0_i32, %c0_i32_0 : i32, i32
  }
  func.func @transform_18(%arg0: i32) -> (i32, i32) {
    %c0_i32 = arith.constant 0 : i32
    %c0_i32_0 = arith.constant 0 : i32
    %c0_i32_1 = arith.constant 0 : i32
    return %c0_i32, %c0_i32_0 : i32, i32
  }
  func.func @transform_19(%arg0: i32) -> (i32, i32) {
    %c0_i32 = arith.constant 0 : i32
    %c0_i32_0 = arith.constant 0 : i32
    %c0_i32_1 = arith.constant 0 : i32
    return %c0_i32, %c0_i32_0 : i32, i32
  }
  func.func @transform_20(%arg0: i32) -> (i32, i32) {
    %c0_i32 = arith.constant 0 : i32
    %c0_i32_0 = arith.constant 0 : i32
    %c0_i32_1 = arith.constant 0 : i32
    return %c0_i32, %c0_i32_0 : i32, i32
  }
  func.func @transform_21(%arg0: i32) -> (i32, i32) {
    %c0_i32 = arith.constant 0 : i32
    %c0_i32_0 = arith.constant 0 : i32
    %c0_i32_1 = arith.constant 0 : i32
    return %c0_i32, %c0_i32_0 : i32, i32
  }
  func.func @transform_22(%arg0: i32) -> (i32, i32, i32) {
    %c0_i32 = arith.constant 0 : i32
    %c0_i32_0 = arith.constant 0 : i32
    %c0_i32_1 = arith.constant 0 : i32
    return %arg0, %c0_i32, %c0_i32_0 : i32, i32, i32
  }
  func.func @transform_23(%arg0: i32) -> (i32, i32, i32, i32) {
    %c0_i32 = arith.constant 0 : i32
    %c0_i32_0 = arith.constant 0 : i32
    %c0_i32_1 = arith.constant 0 : i32
    %c0_i32_2 = arith.constant 0 : i32
    return %arg0, %c0_i32, %c0_i32_0, %c0_i32_1 : i32, i32, i32, i32
  }
  func.func @transform_24(%arg0: i32) -> (i32, i32, i32, i32) {
    %c0_i32 = arith.constant 0 : i32
    %c0_i32_0 = arith.constant 0 : i32
    %c0_i32_1 = arith.constant 0 : i32
    %c0_i32_2 = arith.constant 0 : i32
    return %arg0, %c0_i32, %c0_i32_0, %c0_i32_1 : i32, i32, i32, i32
  }
}

</mosaic_0001>

<llo_original>
// kernel: tpu_custom_call.1
$region0: #{tpu_custom_call.1}
  #allocation0 [shape = 'u32[]', space=smem, size = 0x4, offset = 0x4, fixed_abs, tag = 'smem constant byte address 0x4 - core index']
  #allocation1 [shape = 'u32[144,128]{1,0:T(1,128)}', space=vmem, size = 0x12000, scoped, tag = 'internal scratch']
  #allocation2 [shape = 'f32[8,32]{1,0:T(8,128)}', space=vmem, size = 0x1000, scoped, tag = 'scratch operand']
  %s0 = inlined_call_operand.hbm [shape: f32[2,8,32], index: 0, kind: input, shape index: {}]
  %s1 = inlined_call_operand.hbm [shape: f32[2,8,32], index: 1, kind: input, shape index: {}]
  %s2 = inlined_call_operand.vmem [shape: f32[32,96], index: 2, kind: input, shape index: {}]
  %s3 = inlined_call_operand.hbm [shape: f32[1,96], index: 3, kind: input, shape index: {}]
  %s4 = inlined_call_operand.vmem [shape: f32[32,32], index: 4, kind: input, shape index: {}]
  %s5 = inlined_call_operand.hbm [shape: f32[1,32], index: 5, kind: input, shape index: {}]
  %s6 = inlined_call_operand.hbm [shape: f32[1,32], index: 6, kind: input, shape index: {}]
  %s7 = inlined_call_operand.hbm [shape: f32[1,32], index: 7, kind: input, shape index: {}]
  %s8 = inlined_call_operand.vmem [shape: f32[32,64], index: 8, kind: input, shape index: {}]
  %s9 = inlined_call_operand.hbm [shape: f32[1,64], index: 9, kind: input, shape index: {}]
  %s10 = inlined_call_operand.hbm [shape: f32[32,32], index: 10, kind: input, shape index: {}]
  %s11 = inlined_call_operand.hbm [shape: f32[1,32], index: 11, kind: input, shape index: {}]
  %s12 = inlined_call_operand.hbm [shape: f32[32,32], index: 12, kind: input, shape index: {}]
  %s13 = inlined_call_operand.hbm [shape: f32[1,32], index: 13, kind: input, shape index: {}]
  %s14 = inlined_call_operand.hbm [shape: f32[1,32], index: 14, kind: input, shape index: {}]
  %s15 = inlined_call_operand.hbm [shape: f32[1,32], index: 15, kind: input, shape index: {}]
  %s16 = inlined_call_operand.hbm [shape: f32[32,64], index: 16, kind: input, shape index: {}]
  %s17 = inlined_call_operand.hbm [shape: f32[1,64], index: 17, kind: input, shape index: {}]
  %s18 = inlined_call_operand.vmem [shape: f32[64,32], index: 18, kind: input, shape index: {}]
  %s19 = inlined_call_operand.vmem [shape: f32[1,32], index: 19, kind: input, shape index: {}]
  %s20 = inlined_call_operand.vmem [shape: f32[1,32], index: 20, kind: input, shape index: {}]
  %s21 = inlined_call_operand.vmem [shape: f32[1,32], index: 21, kind: input, shape index: {}]
  %s22 = inlined_call_operand.hbm [shape: f32[2,8,32], index: 22, kind: output, shape index: {0}]
  %s23 = inlined_call_operand.hbm [shape: f32[2,4,8,8], index: 23, kind: output, shape index: {1}]
  %s24 = inlined_call_operand.hbm [shape: f32[2,4,8,8], index: 24, kind: output, shape index: {2}]
  %25 = xla_tuple %s22, %s23, %s24
  %s26 = sld [smem:[#allocation0]]
  $region197: #{tpu_custom_call.1} parent=0
    _
  %s28 = ssub.s32 1, %s26
  %s29 = scalar_select 0, %s28, %s26
  $region1: #{tpu_custom_call.1} parent=0
    #allocation3 [shape = 'u8[8192]{0}', space=vmem, size = 0x2000, scoped, tag = 'input window, operand 0']
    #allocation4 [shape = 's32[2]{0}', space=sflag, size = 0x8, scoped, tag = 'scoped memory for tpu_custom_call.1']
    #allocation5 [shape = 's32[2]{0}', space=sflag, size = 0x8, scoped, tag = 'scoped memory for tpu_custom_call.1']
    #allocation6 [shape = 'u8[8192]{0}', space=vmem, size = 0x2000, scoped, tag = 'input window, operand 1']
    #allocation7 [shape = 's32[2]{0}', space=sflag, size = 0x8, scoped, tag = 'scoped memory for tpu_custom_call.1']
    #allocation8 [shape = 'u8[512]{0}', space=vmem, size = 0x400, scoped, tag = 'input window, operand 3, single buffered']
    #allocation9 [shape = 'u8[512]{0}', space=vmem, size = 0x400, scoped, tag = 'input window, operand 5, single buffered']
    #allocation10 [shape = 's32[1]{0}', space=sflag, size = 0x4, scoped, tag = 'scoped memory for tpu_custom_call.1']
    #allocation11 [shape = 'u8[512]{0}', space=vmem, size = 0x400, scoped, tag = 'input window, operand 6, single buffered']
    #allocation12 [shape = 'u8[512]{0}', space=vmem, size = 0x400, scoped, tag = 'input window, operand 7, single buffered']
    #allocation13 [shape = 's32[1]{0}', space=sflag, size = 0x4, scoped, tag = 'scoped memory for tpu_custom_call.1']
    #allocation14 [shape = 'u8[512]{0}', space=vmem, size = 0x400, scoped, tag = 'input window, operand 9, single buffered']
    #allocation15 [shape = 'u8[16384]{0}', space=vmem, size = 0x4000, scoped, tag = 'input window, operand 10, single buffered']
    #allocation16 [shape = 's32[1]{0}', space=sflag, size = 0x4, scoped, tag = 'scoped memory for tpu_custom_call.1']
    #allocation17 [shape = 'u8[512]{0}', space=vmem, size = 0x400, scoped, tag = 'input window, operand 11, single buffered']
    #allocation18 [shape = 'u8[16384]{0}', space=vmem, size = 0x4000, scoped, tag = 'input window, operand 12, single buffered']
    #allocation19 [shape = 's32[1]{0}', space=sflag, size = 0x4, scoped, tag = 'scoped memory for tpu_custom_call.1']
    #allocation20 [shape = 'u8[512]{0}', space=vmem, size = 0x400, scoped, tag = 'input window, operand 13, single buffered']
    #allocation21 [shape = 'u8[512]{0}', space=vmem, size = 0x400, scoped, tag = 'input window, operand 14, single buffered']
    #allocation22 [shape = 's32[1]{0}', space=sflag, size = 0x4, scoped, tag = 'scoped memory for tpu_custom_call.1']
    #allocation23 [shape = 'u8[512]{0}', space=vmem, size = 0x400, scoped, tag = 'input window, operand 15, single buffered']
    #allocation24 [shape = 'u8[16384]{0}', space=vmem, size = 0x4000, scoped, tag = 'input window, operand 16, single buffered']
    #allocation25 [shape = 's32[1]{0}', space=sflag, size = 0x4, scoped, tag = 'scoped memory for tpu_custom_call.1']
    #allocation26 [shape = 'u8[512]{0}', space=vmem, size = 0x400, scoped, tag = 'input window, operand 17, single buffered']
    #allocation27 [shape = 'u8[8192]{0}', space=vmem, size = 0x2000, scoped, tag = 'output window, operand 0']
    #allocation28 [shape = 'u8[32768]{0}', space=vmem, size = 0x8000, scoped, tag = 'output window, operand 1']
    #allocation29 [shape = 's32[2]{0}', space=sflag, size = 0x8, scoped, tag = 'scoped memory for tpu_custom_call.1']
    #allocation30 [shape = 'u8[32768]{0}', space=vmem, size = 0x8000, scoped, tag = 'output window, operand 2']
    %30 = vsyncpa [#allocation4], 0
    %s31 = scalar_lea.sflag [#allocation4], 1
    %32 = vsyncpa %s31, 0
    %33 = vsyncpa [#allocation7], 0
    %s34 = scalar_lea.sflag [#allocation7], 1
    %35 = vsyncpa %s34, 0
    %36 = vsyncpa [#allocation10], 0
    %37 = vsyncpa [#allocation13], 0
    %38 = vsyncpa [#allocation16], 0
    %39 = vsyncpa [#allocation19], 0
    %40 = vsyncpa [#allocation22], 0
    %41 = vsyncpa [#allocation25], 0
    %42 = vsyncpa [#allocation5], 0
    %s43 = scalar_lea.sflag [#allocation5], 1
    %44 = vsyncpa %s43, 0
    %45 = vsyncpa [#allocation29], 0
    %s46 = scalar_lea.sflag [#allocation29], 1
    %47 = vsyncpa %s46, 0
    loop: start=0, step=1, limit=4
    $region2: #{tpu_custom_call.1} parent=1 // loop_pre_header
      _
    $region3: #{tpu_custom_call.1} parent=1 // loop_header
      %s49 = sphi 0, %s53
      %p50 = scmp.ge.s32.totalorder %s49, 4
      %s59 = sphi 0, %s61
      %s62 = sphi 0, %s59
      %s63 = sphi 0, %s62
      %s79 = sphi 0, %s63
      %s85 = sphi 0, %s87
      %s88 = sphi 0, %s85
      %s89 = sphi 0, %s88
      %s105 = sphi 0, %s89
      %s109 = sphi 0, %s109
      %s111 = sphi 0, %s109
      %s112 = sphi 0, %s111
      %s126 = sphi 0, %s112
      %s130 = sphi 0, %s130
      %s132 = sphi 0, %s130
      %s133 = sphi 0, %s132
      %s147 = sphi 0, %s133
      %s151 = sphi 0, %s151
      %s153 = sphi 0, %s151
      %s154 = sphi 0, %s153
      %s168 = sphi 0, %s154
      %s172 = sphi 0, %s172
      %s174 = sphi 0, %s172
      %s175 = sphi 0, %s174
      %s189 = sphi 0, %s175
      %s193 = sphi 0, %s193
      %s195 = sphi 0, %s193
      %s196 = sphi 0, %s195
      %s210 = sphi 0, %s196
      %s214 = sphi 0, %s214
      %s216 = sphi 0, %s214
      %s217 = sphi 0, %s216
      %s231 = sphi 0, %s217
      %s235 = sphi 0, %s235
      %s237 = sphi 0, %s235
      %s238 = sphi 0, %s237
      %s252 = sphi 0, %s238
      %s256 = sphi 0, %s256
      %s258 = sphi 0, %s256
      %s259 = sphi 0, %s258
      %s273 = sphi 0, %s259
      %s277 = sphi 0, %s277
      %s279 = sphi 0, %s277
      %s280 = sphi 0, %s279
      %s294 = sphi 0, %s280
      %s298 = sphi 0, %s298
      %s300 = sphi 0, %s298
      %s301 = sphi 0, %s300
      %s315 = sphi 0, %s301
      %s319 = sphi 0, %s319
      %s321 = sphi 0, %s319
      %s322 = sphi 0, %s321
      %s336 = sphi 0, %s322
      %s340 = sphi 0, %s340
      %s342 = sphi 0, %s340
      %s343 = sphi 0, %s342
      %s357 = sphi 0, %s343
      %s361 = sphi 0, %s361
      %s363 = sphi 0, %s361
      %s364 = sphi 0, %s363
      %s378 = sphi 0, %s364
      %s382 = sphi 0, %s382
      %s384 = sphi 0, %s382
      %s385 = sphi 0, %s384
      %s399 = sphi 0, %s385
      %s403 = sphi 0, %s403
      %s405 = sphi 0, %s403
      %s406 = sphi 0, %s405
      %s420 = sphi 0, %s406
      %s424 = sphi 0, %s424
      %s426 = sphi 0, %s424
      %s427 = sphi 0, %s426
      %s441 = sphi 0, %s427
      %s445 = sphi 0, %s445
      %s447 = sphi 0, %s445
      %s448 = sphi 0, %s447
      %s462 = sphi 0, %s448
      %s466 = sphi 0, %s466
      %s468 = sphi 0, %s466
      %s469 = sphi 0, %s468
      %s483 = sphi 0, %s469
      %s487 = sphi 0, %s487
      %s489 = sphi 0, %s487
      %s490 = sphi 0, %s489
      %s504 = sphi 0, %s490
      %s508 = sphi 0, %s508
      %s510 = sphi 0, %s508
      %s511 = sphi 0, %s510
      %s525 = sphi 0, %s511
      %s531 = sphi 0, %s533
      %s534 = sphi 0, %s531
      %s535 = sphi 0, %s534
      %s551 = sphi 0, %s535
      %s557 = sphi 0, %s559
      %s560 = sphi 0, %s557
      %s561 = sphi 0, %s560
      %s577 = sphi 0, %s561
      %s583 = sphi 0, %s585
      %s586 = sphi 0, %s583
      %s587 = sphi 0, %s586
      %s603 = sphi 0, %s587
    $region4: #{tpu_custom_call.1} parent=1 // loop_header_branch
      %52 = sbr.rel (%p50) target = $region8
    $region5: #{tpu_custom_call.1} parent=1 // loop_body
      %s54 = ssub.s32 %s49, 1
      %s55 = ssub.s32 %s49, 2
      %s56 = sadd.s32 %s49, 1
      %s57 = ssub.s32 %s49, %s56
      %p58 = scmp.eq.s32.totalorder %s57, 0
      %s60 = sadd.s32 %s59, 1
      %s61 = scalar_select %p58, %s59, %s60
      %p64 = pneg %p58
      %p65 = scmp.eq.s32.totalorder %s49, 1
      %p66 = por %p64, %p65
      %p67 = scmp.ne.s32.totalorder %s59, %s62
      %p68 = scmp.eq.s32.totalorder %s49, 0
      %p69 = por %p67, %p68
      %p70 = scmp.ne.s32.totalorder %s59, %s62
      %p71 = scmp.eq.s32.totalorder %s54, 1
      %p72 = por %p70, %p71
      %p73 = scmp.ne.s32.totalorder %s62, %s63
      %p74 = scmp.eq.s32.totalorder %s54, 0
      %p75 = por %p73, %p74
      %p76 = scmp.ne.s32.totalorder %s62, %s63
      %p77 = scmp.eq.s32.totalorder %s55, 1
      %p78 = por %p76, %p77
      %p80 = scmp.ne.s32.totalorder %s63, %s79
      %p81 = scmp.eq.s32.totalorder %s55, 0
      %p82 = por %p80, %p81
      %s83 = ssub.s32 %s49, %s56
      %p84 = scmp.eq.s32.totalorder %s83, 0
      %s86 = sadd.s32 %s85, 1
      %s87 = scalar_select %p84, %s85, %s86
      %p90 = pneg %p84
      %p91 = scmp.eq.s32.totalorder %s49, 1
      %p92 = por %p90, %p91
      %p93 = scmp.ne.s32.totalorder %s85, %s88
      %p94 = scmp.eq.s32.totalorder %s49, 0
      %p95 = por %p93, %p94
      %p96 = scmp.ne.s32.totalorder %s85, %s88
      %p97 = scmp.eq.s32.totalorder %s54, 1
      %p98 = por %p96, %p97
      %p99 = scmp.ne.s32.totalorder %s88, %s89
      %p100 = scmp.eq.s32.totalorder %s54, 0
      %p101 = por %p99, %p100
      %p102 = scmp.ne.s32.totalorder %s88, %s89
      %p103 = scmp.eq.s32.totalorder %s55, 1
      %p104 = por %p102, %p103
      %p106 = scmp.ne.s32.totalorder %s89, %s105
      %p107 = scmp.eq.s32.totalorder %s55, 0
      %p108 = por %p106, %p107
      %s110 = sadd.s32 %s109, 1
      %p113 = scmp.eq.s32.totalorder %s49, 1
      %p114 = scmp.ne.s32.totalorder %s109, %s111
      %p115 = scmp.eq.s32.totalorder %s49, 0
      %p116 = por %p114, %p115
      %p117 = scmp.ne.s32.totalorder %s109, %s111
      %p118 = scmp.eq.s32.totalorder %s54, 1
      %p119 = por %p117, %p118
      %p120 = scmp.ne.s32.totalorder %s111, %s112
      %p121 = scmp.eq.s32.totalorder %s54, 0
      %p122 = por %p120, %p121
      %p123 = scmp.ne.s32.totalorder %s111, %s112
      %p124 = scmp.eq.s32.totalorder %s55, 1
      %p125 = por %p123, %p124
      %p127 = scmp.ne.s32.totalorder %s112, %s126
      %p128 = scmp.eq.s32.totalorder %s55, 0
      %p129 = por %p127, %p128
      %s131 = sadd.s32 %s130, 1
      %p134 = scmp.eq.s32.totalorder %s49, 1
      %p135 = scmp.ne.s32.totalorder %s130, %s132
      %p136 = scmp.eq.s32.totalorder %s49, 0
      %p137 = por %p135, %p136
      %p138 = scmp.ne.s32.totalorder %s130, %s132
      %p139 = scmp.eq.s32.totalorder %s54, 1
      %p140 = por %p138, %p139
      %p141 = scmp.ne.s32.totalorder %s132, %s133
      %p142 = scmp.eq.s32.totalorder %s54, 0
      %p143 = por %p141, %p142
      %p144 = scmp.ne.s32.totalorder %s132, %s133
      %p145 = scmp.eq.s32.totalorder %s55, 1
      %p146 = por %p144, %p145
      %p148 = scmp.ne.s32.totalorder %s133, %s147
      %p149 = scmp.eq.s32.totalorder %s55, 0
      %p150 = por %p148, %p149
      %s152 = sadd.s32 %s151, 1
      %p155 = scmp.eq.s32.totalorder %s49, 1
      %p156 = scmp.ne.s32.totalorder %s151, %s153
      %p157 = scmp.eq.s32.totalorder %s49, 0
      %p158 = por %p156, %p157
      %p159 = scmp.ne.s32.totalorder %s151, %s153
      %p160 = scmp.eq.s32.totalorder %s54, 1
      %p161 = por %p159, %p160
      %p162 = scmp.ne.s32.totalorder %s153, %s154
      %p163 = scmp.eq.s32.totalorder %s54, 0
      %p164 = por %p162, %p163
      %p165 = scmp.ne.s32.totalorder %s153, %s154
      %p166 = scmp.eq.s32.totalorder %s55, 1
      %p167 = por %p165, %p166
      %p169 = scmp.ne.s32.totalorder %s154, %s168
      %p170 = scmp.eq.s32.totalorder %s55, 0
      %p171 = por %p169, %p170
      %s173 = sadd.s32 %s172, 1
      %p176 = scmp.eq.s32.totalorder %s49, 1
      %p177 = scmp.ne.s32.totalorder %s172, %s174
      %p178 = scmp.eq.s32.totalorder %s49, 0
      %p179 = por %p177, %p178
      %p180 = scmp.ne.s32.totalorder %s172, %s174
      %p181 = scmp.eq.s32.totalorder %s54, 1
      %p182 = por %p180, %p181
      %p183 = scmp.ne.s32.totalorder %s174, %s175
      %p184 = scmp.eq.s32.totalorder %s54, 0
      %p185 = por %p183, %p184
      %p186 = scmp.ne.s32.totalorder %s174, %s175
      %p187 = scmp.eq.s32.totalorder %s55, 1
      %p188 = por %p186, %p187
      %p190 = scmp.ne.s32.totalorder %s175, %s189
      %p191 = scmp.eq.s32.totalorder %s55, 0
      %p192 = por %p190, %p191
      %s194 = sadd.s32 %s193, 1
      %p197 = scmp.eq.s32.totalorder %s49, 1
      %p198 = scmp.ne.s32.totalorder %s193, %s195
      %p199 = scmp.eq.s32.totalorder %s49, 0
      %p200 = por %p198, %p199
      %p201 = scmp.ne.s32.totalorder %s193, %s195
      %p202 = scmp.eq.s32.totalorder %s54, 1
      %p203 = por %p201, %p202
      %p204 = scmp.ne.s32.totalorder %s195, %s196
      %p205 = scmp.eq.s32.totalorder %s54, 0
      %p206 = por %p204, %p205
      %p207 = scmp.ne.s32.totalorder %s195, %s196
      %p208 = scmp.eq.s32.totalorder %s55, 1
      %p209 = por %p207, %p208
      %p211 = scmp.ne.s32.totalorder %s196, %s210
      %p212 = scmp.eq.s32.totalorder %s55, 0
      %p213 = por %p211, %p212
      %s215 = sadd.s32 %s214, 1
      %p218 = scmp.eq.s32.totalorder %s49, 1
      %p219 = scmp.ne.s32.totalorder %s214, %s216
      %p220 = scmp.eq.s32.totalorder %s49, 0
      %p221 = por %p219, %p220
      %p222 = scmp.ne.s32.totalorder %s214, %s216
      %p223 = scmp.eq.s32.totalorder %s54, 1
      %p224 = por %p222, %p223
      %p225 = scmp.ne.s32.totalorder %s216, %s217
      %p226 = scmp.eq.s32.totalorder %s54, 0
      %p227 = por %p225, %p226
      %p228 = scmp.ne.s32.totalorder %s216, %s217
      %p229 = scmp.eq.s32.totalorder %s55, 1
      %p230 = por %p228, %p229
      %p232 = scmp.ne.s32.totalorder %s217, %s231
      %p233 = scmp.eq.s32.totalorder %s55, 0
      %p234 = por %p232, %p233
      %s236 = sadd.s32 %s235, 1
      %p239 = scmp.eq.s32.totalorder %s49, 1
      %p240 = scmp.ne.s32.totalorder %s235, %s237
      %p241 = scmp.eq.s32.totalorder %s49, 0
      %p242 = por %p240, %p241
      %p243 = scmp.ne.s32.totalorder %s235, %s237
      %p244 = scmp.eq.s32.totalorder %s54, 1
      %p245 = por %p243, %p244
      %p246 = scmp.ne.s32.totalorder %s237, %s238
      %p247 = scmp.eq.s32.totalorder %s54, 0
      %p248 = por %p246, %p247
      %p249 = scmp.ne.s32.totalorder %s237, %s238
      %p250 = scmp.eq.s32.totalorder %s55, 1
      %p251 = por %p249, %p250
      %p253 = scmp.ne.s32.totalorder %s238, %s252
      %p254 = scmp.eq.s32.totalorder %s55, 0
      %p255 = por %p253, %p254
      %s257 = sadd.s32 %s256, 1
      %p260 = scmp.eq.s32.totalorder %s49, 1
      %p261 = scmp.ne.s32.totalorder %s256, %s258
      %p262 = scmp.eq.s32.totalorder %s49, 0
      %p263 = por %p261, %p262
      %p264 = scmp.ne.s32.totalorder %s256, %s258
      %p265 = scmp.eq.s32.totalorder %s54, 1
      %p266 = por %p264, %p265
      %p267 = scmp.ne.s32.totalorder %s258, %s259
      %p268 = scmp.eq.s32.totalorder %s54, 0
      %p269 = por %p267, %p268
      %p270 = scmp.ne.s32.totalorder %s258, %s259
      %p271 = scmp.eq.s32.totalorder %s55, 1
      %p272 = por %p270, %p271
      %p274 = scmp.ne.s32.totalorder %s259, %s273
      %p275 = scmp.eq.s32.totalorder %s55, 0
      %p276 = por %p274, %p275
      %s278 = sadd.s32 %s277, 1
      %p281 = scmp.eq.s32.totalorder %s49, 1
      %p282 = scmp.ne.s32.totalorder %s277, %s279
      %p283 = scmp.eq.s32.totalorder %s49, 0
      %p284 = por %p282, %p283
      %p285 = scmp.ne.s32.totalorder %s277, %s279
      %p286 = scmp.eq.s32.totalorder %s54, 1
      %p287 = por %p285, %p286
      %p288 = scmp.ne.s32.totalorder %s279, %s280
      %p289 = scmp.eq.s32.totalorder %s54, 0
      %p290 = por %p288, %p289
      %p291 = scmp.ne.s32.totalorder %s279, %s280
      %p292 = scmp.eq.s32.totalorder %s55, 1
      %p293 = por %p291, %p292
      %p295 = scmp.ne.s32.totalorder %s280, %s294
      %p296 = scmp.eq.s32.totalorder %s55, 0
      %p297 = por %p295, %p296
      %s299 = sadd.s32 %s298, 1
      %p302 = scmp.eq.s32.totalorder %s49, 1
      %p303 = scmp.ne.s32.totalorder %s298, %s300
      %p304 = scmp.eq.s32.totalorder %s49, 0
      %p305 = por %p303, %p304
      %p306 = scmp.ne.s32.totalorder %s298, %s300
      %p307 = scmp.eq.s32.totalorder %s54, 1
      %p308 = por %p306, %p307
      %p309 = scmp.ne.s32.totalorder %s300, %s301
      %p310 = scmp.eq.s32.totalorder %s54, 0
      %p311 = por %p309, %p310
      %p312 = scmp.ne.s32.totalorder %s300, %s301
      %p313 = scmp.eq.s32.totalorder %s55, 1
      %p314 = por %p312, %p313
      %p316 = scmp.ne.s32.totalorder %s301, %s315
      %p317 = scmp.eq.s32.totalorder %s55, 0
      %p318 = por %p316, %p317
      %s320 = sadd.s32 %s319, 1
      %p323 = scmp.eq.s32.totalorder %s49, 1
      %p324 = scmp.ne.s32.totalorder %s319, %s321
      %p325 = scmp.eq.s32.totalorder %s49, 0
      %p326 = por %p324, %p325
      %p327 = scmp.ne.s32.totalorder %s319, %s321
      %p328 = scmp.eq.s32.totalorder %s54, 1
      %p329 = por %p327, %p328
      %p330 = scmp.ne.s32.totalorder %s321, %s322
      %p331 = scmp.eq.s32.totalorder %s54, 0
      %p332 = por %p330, %p331
      %p333 = scmp.ne.s32.totalorder %s321, %s322
      %p334 = scmp.eq.s32.totalorder %s55, 1
      %p335 = por %p333, %p334
      %p337 = scmp.ne.s32.totalorder %s322, %s336
      %p338 = scmp.eq.s32.totalorder %s55, 0
      %p339 = por %p337, %p338
      %s341 = sadd.s32 %s340, 1
      %p344 = scmp.eq.s32.totalorder %s49, 1
      %p345 = scmp.ne.s32.totalorder %s340, %s342
      %p346 = scmp.eq.s32.totalorder %s49, 0
      %p347 = por %p345, %p346
      %p348 = scmp.ne.s32.totalorder %s340, %s342
      %p349 = scmp.eq.s32.totalorder %s54, 1
      %p350 = por %p348, %p349
      %p351 = scmp.ne.s32.totalorder %s342, %s343
      %p352 = scmp.eq.s32.totalorder %s54, 0
      %p353 = por %p351, %p352
      %p354 = scmp.ne.s32.totalorder %s342, %s343
      %p355 = scmp.eq.s32.totalorder %s55, 1
      %p356 = por %p354, %p355
      %p358 = scmp.ne.s32.totalorder %s343, %s357
      %p359 = scmp.eq.s32.totalorder %s55, 0
      %p360 = por %p358, %p359
      %s362 = sadd.s32 %s361, 1
      %p365 = scmp.eq.s32.totalorder %s49, 1
      %p366 = scmp.ne.s32.totalorder %s361, %s363
      %p367 = scmp.eq.s32.totalorder %s49, 0
      %p368 = por %p366, %p367
      %p369 = scmp.ne.s32.totalorder %s361, %s363
      %p370 = scmp.eq.s32.totalorder %s54, 1
      %p371 = por %p369, %p370
      %p372 = scmp.ne.s32.totalorder %s363, %s364
      %p373 = scmp.eq.s32.totalorder %s54, 0
      %p374 = por %p372, %p373
      %p375 = scmp.ne.s32.totalorder %s363, %s364
      %p376 = scmp.eq.s32.totalorder %s55, 1
      %p377 = por %p375, %p376
      %p379 = scmp.ne.s32.totalorder %s364, %s378
      %p380 = scmp.eq.s32.totalorder %s55, 0
      %p381 = por %p379, %p380
      %s383 = sadd.s32 %s382, 1
      %p386 = scmp.eq.s32.totalorder %s49, 1
      %p387 = scmp.ne.s32.totalorder %s382, %s384
      %p388 = scmp.eq.s32.totalorder %s49, 0
      %p389 = por %p387, %p388
      %p390 = scmp.ne.s32.totalorder %s382, %s384
      %p391 = scmp.eq.s32.totalorder %s54, 1
      %p392 = por %p390, %p391
      %p393 = scmp.ne.s32.totalorder %s384, %s385
      %p394 = scmp.eq.s32.totalorder %s54, 0
      %p395 = por %p393, %p394
      %p396 = scmp.ne.s32.totalorder %s384, %s385
      %p397 = scmp.eq.s32.totalorder %s55, 1
      %p398 = por %p396, %p397
      %p400 = scmp.ne.s32.totalorder %s385, %s399
      %p401 = scmp.eq.s32.totalorder %s55, 0
      %p402 = por %p400, %p401
      %s404 = sadd.s32 %s403, 1
      %p407 = scmp.eq.s32.totalorder %s49, 1
      %p408 = scmp.ne.s32.totalorder %s403, %s405
      %p409 = scmp.eq.s32.totalorder %s49, 0
      %p410 = por %p408, %p409
      %p411 = scmp.ne.s32.totalorder %s403, %s405
      %p412 = scmp.eq.s32.totalorder %s54, 1
      %p413 = por %p411, %p412
      %p414 = scmp.ne.s32.totalorder %s405, %s406
      %p415 = scmp.eq.s32.totalorder %s54, 0
      %p416 = por %p414, %p415
      %p417 = scmp.ne.s32.totalorder %s405, %s406
      %p418 = scmp.eq.s32.totalorder %s55, 1
      %p419 = por %p417, %p418
      %p421 = scmp.ne.s32.totalorder %s406, %s420
      %p422 = scmp.eq.s32.totalorder %s55, 0
      %p423 = por %p421, %p422
      %s425 = sadd.s32 %s424, 1
      %p428 = scmp.eq.s32.totalorder %s49, 1
      %p429 = scmp.ne.s32.totalorder %s424, %s426
      %p430 = scmp.eq.s32.totalorder %s49, 0
      %p431 = por %p429, %p430
      %p432 = scmp.ne.s32.totalorder %s424, %s426
      %p433 = scmp.eq.s32.totalorder %s54, 1
      %p434 = por %p432, %p433
      %p435 = scmp.ne.s32.totalorder %s426, %s427
      %p436 = scmp.eq.s32.totalorder %s54, 0
      %p437 = por %p435, %p436
      %p438 = scmp.ne.s32.totalorder %s426, %s427
      %p439 = scmp.eq.s32.totalorder %s55, 1
      %p440 = por %p438, %p439
      %p442 = scmp.ne.s32.totalorder %s427, %s441
      %p443 = scmp.eq.s32.totalorder %s55, 0
      %p444 = por %p442, %p443
      %s446 = sadd.s32 %s445, 1
      %p449 = scmp.eq.s32.totalorder %s49, 1
      %p450 = scmp.ne.s32.totalorder %s445, %s447
      %p451 = scmp.eq.s32.totalorder %s49, 0
      %p452 = por %p450, %p451
      %p453 = scmp.ne.s32.totalorder %s445, %s447
      %p454 = scmp.eq.s32.totalorder %s54, 1
      %p455 = por %p453, %p454
      %p456 = scmp.ne.s32.totalorder %s447, %s448
      %p457 = scmp.eq.s32.totalorder %s54, 0
      %p458 = por %p456, %p457
      %p459 = scmp.ne.s32.totalorder %s447, %s448
      %p460 = scmp.eq.s32.totalorder %s55, 1
      %p461 = por %p459, %p460
      %p463 = scmp.ne.s32.totalorder %s448, %s462
      %p464 = scmp.eq.s32.totalorder %s55, 0
      %p465 = por %p463, %p464
      %s467 = sadd.s32 %s466, 1
      %p470 = scmp.eq.s32.totalorder %s49, 1
      %p471 = scmp.ne.s32.totalorder %s466, %s468
      %p472 = scmp.eq.s32.totalorder %s49, 0
      %p473 = por %p471, %p472
      %p474 = scmp.ne.s32.totalorder %s466, %s468
      %p475 = scmp.eq.s32.totalorder %s54, 1
      %p476 = por %p474, %p475
      %p477 = scmp.ne.s32.totalorder %s468, %s469
      %p478 = scmp.eq.s32.totalorder %s54, 0
      %p479 = por %p477, %p478
      %p480 = scmp.ne.s32.totalorder %s468, %s469
      %p481 = scmp.eq.s32.totalorder %s55, 1
      %p482 = por %p480, %p481
      %p484 = scmp.ne.s32.totalorder %s469, %s483
      %p485 = scmp.eq.s32.totalorder %s55, 0
      %p486 = por %p484, %p485
      %s488 = sadd.s32 %s487, 1
      %p491 = scmp.eq.s32.totalorder %s49, 1
      %p492 = scmp.ne.s32.totalorder %s487, %s489
      %p493 = scmp.eq.s32.totalorder %s49, 0
      %p494 = por %p492, %p493
      %p495 = scmp.ne.s32.totalorder %s487, %s489
      %p496 = scmp.eq.s32.totalorder %s54, 1
      %p497 = por %p495, %p496
      %p498 = scmp.ne.s32.totalorder %s489, %s490
      %p499 = scmp.eq.s32.totalorder %s54, 0
      %p500 = por %p498, %p499
      %p501 = scmp.ne.s32.totalorder %s489, %s490
      %p502 = scmp.eq.s32.totalorder %s55, 1
      %p503 = por %p501, %p502
      %p505 = scmp.ne.s32.totalorder %s490, %s504
      %p506 = scmp.eq.s32.totalorder %s55, 0
      %p507 = por %p505, %p506
      %s509 = sadd.s32 %s508, 1
      %p512 = scmp.eq.s32.totalorder %s49, 1
      %p513 = scmp.ne.s32.totalorder %s508, %s510
      %p514 = scmp.eq.s32.totalorder %s49, 0
      %p515 = por %p513, %p514
      %p516 = scmp.ne.s32.totalorder %s508, %s510
      %p517 = scmp.eq.s32.totalorder %s54, 1
      %p518 = por %p516, %p517
      %p519 = scmp.ne.s32.totalorder %s510, %s511
      %p520 = scmp.eq.s32.totalorder %s54, 0
      %p521 = por %p519, %p520
      %p522 = scmp.ne.s32.totalorder %s510, %s511
      %p523 = scmp.eq.s32.totalorder %s55, 1
      %p524 = por %p522, %p523
      %p526 = scmp.ne.s32.totalorder %s511, %s525
      %p527 = scmp.eq.s32.totalorder %s55, 0
      %p528 = por %p526, %p527
      %s529 = ssub.s32 %s49, %s56
      %p530 = scmp.eq.s32.totalorder %s529, 0
      %s532 = sadd.s32 %s531, 1
      %s533 = scalar_select %p530, %s531, %s532
      %p536 = pneg %p530
      %p537 = scmp.eq.s32.totalorder %s49, 1
      %p538 = por %p536, %p537
      %p539 = scmp.ne.s32.totalorder %s531, %s534
      %p540 = scmp.eq.s32.totalorder %s49, 0
      %p541 = por %p539, %p540
      %p542 = scmp.ne.s32.totalorder %s531, %s534
      %p543 = scmp.eq.s32.totalorder %s54, 1
      %p544 = por %p542, %p543
      %p545 = scmp.ne.s32.totalorder %s534, %s535
      %p546 = scmp.eq.s32.totalorder %s54, 0
      %p547 = por %p545, %p546
      %p548 = scmp.ne.s32.totalorder %s534, %s535
      %p549 = scmp.eq.s32.totalorder %s55, 1
      %p550 = por %p548, %p549
      %p552 = scmp.ne.s32.totalorder %s535, %s551
      %p553 = scmp.eq.s32.totalorder %s55, 0
      %p554 = por %p552, %p553
      %s555 = ssub.s32 %s49, %s56
      %p556 = scmp.eq.s32.totalorder %s555, 0
      %s558 = sadd.s32 %s557, 1
      %s559 = scalar_select %p556, %s557, %s558
      %p562 = pneg %p556
      %p563 = scmp.eq.s32.totalorder %s49, 1
      %p564 = por %p562, %p563
      %p565 = scmp.ne.s32.totalorder %s557, %s560
      %p566 = scmp.eq.s32.totalorder %s49, 0
      %p567 = por %p565, %p566
      %p568 = scmp.ne.s32.totalorder %s557, %s560
      %p569 = scmp.eq.s32.totalorder %s54, 1
      %p570 = por %p568, %p569
      %p571 = scmp.ne.s32.totalorder %s560, %s561
      %p572 = scmp.eq.s32.totalorder %s54, 0
      %p573 = por %p571, %p572
      %p574 = scmp.ne.s32.totalorder %s560, %s561
      %p575 = scmp.eq.s32.totalorder %s55, 1
      %p576 = por %p574, %p575
      %p578 = scmp.ne.s32.totalorder %s561, %s577
      %p579 = scmp.eq.s32.totalorder %s55, 0
      %p580 = por %p578, %p579
      %s581 = ssub.s32 %s49, %s56
      %p582 = scmp.eq.s32.totalorder %s581, 0
      %s584 = sadd.s32 %s583, 1
      %s585 = scalar_select %p582, %s583, %s584
      %p588 = pneg %p582
      %p589 = scmp.eq.s32.totalorder %s49, 1
      %p590 = por %p588, %p589
      %p591 = scmp.ne.s32.totalorder %s583, %s586
      %p592 = scmp.eq.s32.totalorder %s49, 0
      %p593 = por %p591, %p592
      %p594 = scmp.ne.s32.totalorder %s583, %s586
      %p595 = scmp.eq.s32.totalorder %s54, 1
      %p596 = por %p594, %p595
      %p597 = scmp.ne.s32.totalorder %s586, %s587
      %p598 = scmp.eq.s32.totalorder %s54, 0
      %p599 = por %p597, %p598
      %p600 = scmp.ne.s32.totalorder %s586, %s587
      %p601 = scmp.eq.s32.totalorder %s55, 1
      %p602 = por %p600, %p601
      %p604 = scmp.ne.s32.totalorder %s587, %s603
      %p605 = scmp.eq.s32.totalorder %s55, 0
      %p606 = por %p604, %p605
      %p607 = scmp.le.s32.totalorder 1, %s49
      %p608 = scmp.lt.s32.totalorder %s49, 3
      %p609 = pnand %p607, %p608
      %p610 = pneg %p609
      // Predicated region
      $region9: #{tpu_custom_call.1} parent=5 // pred_check
        _
      $region10: #{tpu_custom_call.1} parent=5 // pred_check_branch
        %612 = sbr.rel (%p609) target = $region12
      $region11: #{tpu_custom_call.1} parent=5 // pred_region
        %s613 = ssub.s32 %s49, 1
        // Predicated region
        $region13: #{tpu_custom_call.1} parent=11 // pred_check
          %p614 = pneg %p122
        $region14: #{tpu_custom_call.1} parent=11 // pred_check_branch
          %616 = sbr.rel (%p614) target = $region16
        $region15: #{tpu_custom_call.1} parent=11 // pred_region
          _
        $region16: #{tpu_custom_call.1} parent=11 // pred_fallthru
          _
        // Predicated region
        $region17: #{tpu_custom_call.1} parent=11 // pred_check
          %p617 = pneg %p143
        $region18: #{tpu_custom_call.1} parent=11 // pred_check_branch
          %619 = sbr.rel (%p617) target = $region20
        $region19: #{tpu_custom_call.1} parent=11 // pred_region
          %s621 = ssub.s32 16, 16
          %622 = vsyncadd [#allocation7], %s621
          %s624 = sshll.u32 [#allocation8], 4
          %s625 = int_to_ptr.vmem [resolvable:$true] %s624
          %627 = dma.hbm_to_vmem [thread:$0]  %s3, 16, %s625, [#allocation7]
        $region20: #{tpu_custom_call.1} parent=11 // pred_fallthru
          _
        // Predicated region
        $region21: #{tpu_custom_call.1} parent=11 // pred_check
          %p628 = pneg %p164
        $region22: #{tpu_custom_call.1} parent=11 // pred_check_branch
          %630 = sbr.rel (%p628) target = $region24
        $region23: #{tpu_custom_call.1} parent=11 // pred_region
          _
        $region24: #{tpu_custom_call.1} parent=11 // pred_fallthru
          _
        // Predicated region
        $region25: #{tpu_custom_call.1} parent=11 // pred_check
          %p631 = pneg %p185
        $region26: #{tpu_custom_call.1} parent=11 // pred_check_branch
          %633 = sbr.rel (%p631) target = $region28
        $region27: #{tpu_custom_call.1} parent=11 // pred_region
          %s635 = ssub.s32 16, 16
          %636 = vsyncadd [#allocation10], %s635
          %s638 = sshll.u32 [#allocation9], 4
          %s639 = int_to_ptr.vmem [resolvable:$true] %s638
          %641 = dma.hbm_to_vmem [thread:$0]  %s5, 16, %s639, [#allocation10]
        $region28: #{tpu_custom_call.1} parent=11 // pred_fallthru
          _
        // Predicated region
        $region29: #{tpu_custom_call.1} parent=11 // pred_check
          %p642 = pneg %p206
        $region30: #{tpu_custom_call.1} parent=11 // pred_check_branch
          %644 = sbr.rel (%p642) target = $region32
        $region31: #{tpu_custom_call.1} parent=11 // pred_region
          %s646 = ssub.s32 16, 16
          %647 = vsyncadd [#allocation10], %s646
          %s649 = sshll.u32 [#allocation11], 4
          %s650 = int_to_ptr.vmem [resolvable:$true] %s649
          %652 = dma.hbm_to_vmem [thread:$0]  %s6, 16, %s650, [#allocation10]
        $region32: #{tpu_custom_call.1} parent=11 // pred_fallthru
          _
        // Predicated region
        $region33: #{tpu_custom_call.1} parent=11 // pred_check
          %p653 = pneg %p227
        $region34: #{tpu_custom_call.1} parent=11 // pred_check_branch
          %655 = sbr.rel (%p653) target = $region36
        $region35: #{tpu_custom_call.1} parent=11 // pred_region
          %s657 = ssub.s32 16, 16
          %658 = vsyncadd [#allocation13], %s657
          %s660 = sshll.u32 [#allocation12], 4
          %s661 = int_to_ptr.vmem [resolvable:$true] %s660
          %663 = dma.hbm_to_vmem [thread:$0]  %s7, 16, %s661, [#allocation13]
        $region36: #{tpu_custom_call.1} parent=11 // pred_fallthru
          _
        // Predicated region
        $region37: #{tpu_custom_call.1} parent=11 // pred_check
          %p664 = pneg %p248
        $region38: #{tpu_custom_call.1} parent=11 // pred_check_branch
          %666 = sbr.rel (%p664) target = $region40
        $region39: #{tpu_custom_call.1} parent=11 // pred_region
          _
        $region40: #{tpu_custom_call.1} parent=11 // pred_fallthru
          _
        // Predicated region
        $region41: #{tpu_custom_call.1} parent=11 // pred_check
          %p667 = pneg %p269
        $region42: #{tpu_custom_call.1} parent=11 // pred_check_branch
          %669 = sbr.rel (%p667) target = $region44
        $region43: #{tpu_custom_call.1} parent=11 // pred_region
          %s671 = ssub.s32 16, 16
          %672 = vsyncadd [#allocation13], %s671
          %s674 = sshll.u32 [#allocation14], 4
          %s675 = int_to_ptr.vmem [resolvable:$true] %s674
          %677 = dma.hbm_to_vmem [thread:$0]  %s9, 16, %s675, [#allocation13]
        $region44: #{tpu_custom_call.1} parent=11 // pred_fallthru
          _
        // Predicated region
        $region45: #{tpu_custom_call.1} parent=11 // pred_check
          %p678 = pneg %p290
        $region46: #{tpu_custom_call.1} parent=11 // pred_check_branch
          %680 = sbr.rel (%p678) target = $region48
        $region47: #{tpu_custom_call.1} parent=11 // pred_region
          %s682 = ssub.s32 512, 512
          %683 = vsyncadd [#allocation16], %s682
          %s684 = sshll.u32 [#allocation15], 4
          %s685 = int_to_ptr.vmem [resolvable:$true] %s684
          %690 = dma.hbm_to_vmem [thread:$0]  %s10, 512, %s685, [#allocation16], 128, 128, 8
        $region48: #{tpu_custom_call.1} parent=11 // pred_fallthru
          _
        // Predicated region
        $region49: #{tpu_custom_call.1} parent=11 // pred_check
          %p691 = pneg %p311
        $region50: #{tpu_custom_call.1} parent=11 // pred_check_branch
          %693 = sbr.rel (%p691) target = $region52
        $region51: #{tpu_custom_call.1} parent=11 // pred_region
          %s695 = ssub.s32 16, 16
          %696 = vsyncadd [#allocation16], %s695
          %s698 = sshll.u32 [#allocation17], 4
          %s699 = int_to_ptr.vmem [resolvable:$true] %s698
          %701 = dma.hbm_to_vmem [thread:$0]  %s11, 16, %s699, [#allocation16]
        $region52: #{tpu_custom_call.1} parent=11 // pred_fallthru
          _
        // Predicated region
        $region53: #{tpu_custom_call.1} parent=11 // pred_check
          %p702 = pneg %p332
        $region54: #{tpu_custom_call.1} parent=11 // pred_check_branch
          %704 = sbr.rel (%p702) target = $region56
        $region55: #{tpu_custom_call.1} parent=11 // pred_region
          %s706 = ssub.s32 512, 512
          %707 = vsyncadd [#allocation19], %s706
          %s708 = sshll.u32 [#allocation18], 4
          %s709 = int_to_ptr.vmem [resolvable:$true] %s708
          %714 = dma.hbm_to_vmem [thread:$0]  %s12, 512, %s709, [#allocation19], 128, 128, 8
        $region56: #{tpu_custom_call.1} parent=11 // pred_fallthru
          _
        // Predicated region
        $region57: #{tpu_custom_call.1} parent=11 // pred_check
          %p715 = pneg %p353
        $region58: #{tpu_custom_call.1} parent=11 // pred_check_branch
          %717 = sbr.rel (%p715) target = $region60
        $region59: #{tpu_custom_call.1} parent=11 // pred_region
          %s719 = ssub.s32 16, 16
          %720 = vsyncadd [#allocation19], %s719
          %s722 = sshll.u32 [#allocation20], 4
          %s723 = int_to_ptr.vmem [resolvable:$true] %s722
          %725 = dma.hbm_to_vmem [thread:$0]  %s13, 16, %s723, [#allocation19]
        $region60: #{tpu_custom_call.1} parent=11 // pred_fallthru
          _
        // Predicated region
        $region61: #{tpu_custom_call.1} parent=11 // pred_check
          %p726 = pneg %p374
        $region62: #{tpu_custom_call.1} parent=11 // pred_check_branch
          %728 = sbr.rel (%p726) target = $region64
        $region63: #{tpu_custom_call.1} parent=11 // pred_region
          %s730 = ssub.s32 16, 16
          %731 = vsyncadd [#allocation22], %s730
          %s733 = sshll.u32 [#allocation21], 4
          %s734 = int_to_ptr.vmem [resolvable:$true] %s733
          %736 = dma.hbm_to_vmem [thread:$0]  %s14, 16, %s734, [#allocation22]
        $region64: #{tpu_custom_call.1} parent=11 // pred_fallthru
          _
        // Predicated region
        $region65: #{tpu_custom_call.1} parent=11 // pred_check
          %p737 = pneg %p395
        $region66: #{tpu_custom_call.1} parent=11 // pred_check_branch
          %739 = sbr.rel (%p737) target = $region68
        $region67: #{tpu_custom_call.1} parent=11 // pred_region
          %s741 = ssub.s32 16, 16
          %742 = vsyncadd [#allocation22], %s741
          %s744 = sshll.u32 [#allocation23], 4
          %s745 = int_to_ptr.vmem [resolvable:$true] %s744
          %747 = dma.hbm_to_vmem [thread:$0]  %s15, 16, %s745, [#allocation22]
        $region68: #{tpu_custom_call.1} parent=11 // pred_fallthru
          _
        // Predicated region
        $region69: #{tpu_custom_call.1} parent=11 // pred_check
          %p748 = pneg %p416
        $region70: #{tpu_custom_call.1} parent=11 // pred_check_branch
          %750 = sbr.rel (%p748) target = $region72
        $region71: #{tpu_custom_call.1} parent=11 // pred_region
          %s752 = ssub.s32 512, 512
          %753 = vsyncadd [#allocation25], %s752
          %s754 = sshll.u32 [#allocation24], 4
          %s755 = int_to_ptr.vmem [resolvable:$true] %s754
          %760 = dma.hbm_to_vmem [thread:$0]  %s16, 512, %s755, [#allocation25], 128, 128, 8
        $region72: #{tpu_custom_call.1} parent=11 // pred_fallthru
          _
        // Predicated region
        $region73: #{tpu_custom_call.1} parent=11 // pred_check
          %p761 = pneg %p437
        $region74: #{tpu_custom_call.1} parent=11 // pred_check_branch
          %763 = sbr.rel (%p761) target = $region76
        $region75: #{tpu_custom_call.1} parent=11 // pred_region
          %s765 = ssub.s32 16, 16
          %766 = vsyncadd [#allocation25], %s765
          %s768 = sshll.u32 [#allocation26], 4
          %s769 = int_to_ptr.vmem [resolvable:$true] %s768
          %771 = dma.hbm_to_vmem [thread:$0]  %s17, 16, %s769, [#allocation25]
        $region76: #{tpu_custom_call.1} parent=11 // pred_fallthru
          _
        // Predicated region
        $region77: #{tpu_custom_call.1} parent=11 // pred_check
          %p772 = pneg %p458
        $region78: #{tpu_custom_call.1} parent=11 // pred_check_branch
          %774 = sbr.rel (%p772) target = $region80
        $region79: #{tpu_custom_call.1} parent=11 // pred_region
          _
        $region80: #{tpu_custom_call.1} parent=11 // pred_fallthru
          _
        // Predicated region
        $region81: #{tpu_custom_call.1} parent=11 // pred_check
          %p775 = pneg %p479
        $region82: #{tpu_custom_call.1} parent=11 // pred_check_branch
          %777 = sbr.rel (%p775) target = $region84
        $region83: #{tpu_custom_call.1} parent=11 // pred_region
          _
        $region84: #{tpu_custom_call.1} parent=11 // pred_fallthru
          _
        // Predicated region
        $region85: #{tpu_custom_call.1} parent=11 // pred_check
          %p778 = pneg %p500
        $region86: #{tpu_custom_call.1} parent=11 // pred_check_branch
          %780 = sbr.rel (%p778) target = $region88
        $region87: #{tpu_custom_call.1} parent=11 // pred_region
          _
        $region88: #{tpu_custom_call.1} parent=11 // pred_fallthru
          _
        // Predicated region
        $region89: #{tpu_custom_call.1} parent=11 // pred_check
          %p781 = pneg %p521
        $region90: #{tpu_custom_call.1} parent=11 // pred_check_branch
          %783 = sbr.rel (%p781) target = $region92
        $region91: #{tpu_custom_call.1} parent=11 // pred_region
          _
        $region92: #{tpu_custom_call.1} parent=11 // pred_fallthru
          _
      $region12: #{tpu_custom_call.1} parent=5 // pred_fallthru
        _
      %p784 = scmp.lt.s32.totalorder %s49, 2
      // Predicated region
      $region93: #{tpu_custom_call.1} parent=5 // pred_check
        %p785 = pneg %p784
      $region94: #{tpu_custom_call.1} parent=5 // pred_check_branch
        %787 = sbr.rel (%p785) target = $region96
      $region95: #{tpu_custom_call.1} parent=5 // pred_region
        // Predicated region
        $region97: #{tpu_custom_call.1} parent=95 // pred_check
          %p788 = pneg %p69
        $region98: #{tpu_custom_call.1} parent=95 // pred_check_branch
          %790 = sbr.rel (%p788) target = $region100
        $region99: #{tpu_custom_call.1} parent=95 // pred_region
          %s791 = sand.u32 %s59, 1
          %s792 = scalar_lea.sflag [#allocation4], %s791
          %s793 = sand.u32 %s59, 1
          %s794 = smul.addr %s793, 8
          %s795 = scalar_lea.vmem [#allocation3], %s794
          %s797 = ssub.s32 128, 128
          %798 = vsyncadd %s792, %s797
          %s799 = smul.addr %s49, 128
          %s800 = scalar_lea.hbm %s0, %s799
          %s802 = sshll.u32 %s795, 4
          %s803 = int_to_ptr.vmem [resolvable:$true] %s802
          %805 = dma.hbm_to_vmem [thread:$0]  %s800, 128, %s803, %s792
        $region100: #{tpu_custom_call.1} parent=95 // pred_fallthru
          _
        // Predicated region
        $region101: #{tpu_custom_call.1} parent=95 // pred_check
          %p806 = pneg %p95
        $region102: #{tpu_custom_call.1} parent=95 // pred_check_branch
          %808 = sbr.rel (%p806) target = $region104
        $region103: #{tpu_custom_call.1} parent=95 // pred_region
          %s809 = sand.u32 %s49, 1
          %s810 = scalar_lea.sflag [#allocation7], %s809
          %s811 = sand.u32 %s85, 1
          %s812 = smul.addr %s811, 8
          %s813 = scalar_lea.vmem [#allocation6], %s812
          %s815 = ssub.s32 128, 128
          %816 = vsyncadd %s810, %s815
          %s817 = smul.addr %s49, 128
          %s818 = scalar_lea.hbm %s1, %s817
          %s820 = sshll.u32 %s813, 4
          %s821 = int_to_ptr.vmem [resolvable:$true] %s820
          %823 = dma.hbm_to_vmem [thread:$0]  %s818, 128, %s821, %s810
        $region104: #{tpu_custom_call.1} parent=95 // pred_fallthru
          _
      $region96: #{tpu_custom_call.1} parent=5 // pred_fallthru
        _
      %p824 = scmp.le.s32.totalorder 1, %s49
      %p825 = scmp.lt.s32.totalorder %s49, 3
      %p826 = pnand %p824, %p825
      %p827 = pneg %p826
      // Predicated region
      $region105: #{tpu_custom_call.1} parent=5 // pred_check
        _
      $region106: #{tpu_custom_call.1} parent=5 // pred_check_branch
        %829 = sbr.rel (%p826) target = $region108
      $region107: #{tpu_custom_call.1} parent=5 // pred_region
        %s830 = ssub.s32 %s49, 1
        %s831 = sand.u32 %s62, 1
        %s832 = scalar_lea.sflag [#allocation4], %s831
        %s833 = sand.u32 %s62, 1
        %s834 = smul.addr %s833, 8
        %s835 = scalar_lea.vmem [#allocation3], %s834
        // Predicated region
        $region109: #{tpu_custom_call.1} parent=107 // pred_check
          %p836 = pneg %p75
        $region110: #{tpu_custom_call.1} parent=107 // pred_check_branch
          %838 = sbr.rel (%p836) target = $region112
        $region111: #{tpu_custom_call.1} parent=107 // pred_region
          %839 = dma.done %s832, 128
        $region112: #{tpu_custom_call.1} parent=107 // pred_fallthru
          _
        %s840 = sand.u32 %s54, 1
        %s841 = scalar_lea.sflag [#allocation7], %s840
        %s842 = sand.u32 %s88, 1
        %s843 = smul.addr %s842, 8
        %s844 = scalar_lea.vmem [#allocation6], %s843
        // Predicated region
        $region113: #{tpu_custom_call.1} parent=107 // pred_check
          %p845 = pneg %p101
        $region114: #{tpu_custom_call.1} parent=107 // pred_check_branch
          %847 = sbr.rel (%p845) target = $region116
        $region115: #{tpu_custom_call.1} parent=107 // pred_region
          %848 = dma.done %s841, 128
        $region116: #{tpu_custom_call.1} parent=107 // pred_fallthru
          _
        // Predicated region
        $region117: #{tpu_custom_call.1} parent=107 // pred_check
          %p849 = pneg %p143
        $region118: #{tpu_custom_call.1} parent=107 // pred_check_branch
          %851 = sbr.rel (%p849) target = $region120
        $region119: #{tpu_custom_call.1} parent=107 // pred_region
          %852 = dma.done [#allocation7], 16
        $region120: #{tpu_custom_call.1} parent=107 // pred_fallthru
          _
        // Predicated region
        $region121: #{tpu_custom_call.1} parent=107 // pred_check
          %p853 = pneg %p185
        $region122: #{tpu_custom_call.1} parent=107 // pred_check_branch
          %855 = sbr.rel (%p853) target = $region124
        $region123: #{tpu_custom_call.1} parent=107 // pred_region
          %856 = dma.done [#allocation10], 16
        $region124: #{tpu_custom_call.1} parent=107 // pred_fallthru
          _
        // Predicated region
        $region125: #{tpu_custom_call.1} parent=107 // pred_check
          %p857 = pneg %p206
        $region126: #{tpu_custom_call.1} parent=107 // pred_check_branch
          %859 = sbr.rel (%p857) target = $region128
        $region127: #{tpu_custom_call.1} parent=107 // pred_region
          %860 = dma.done [#allocation10], 16
        $region128: #{tpu_custom_call.1} parent=107 // pred_fallthru
          _
        // Predicated region
        $region129: #{tpu_custom_call.1} parent=107 // pred_check
          %p861 = pneg %p227
        $region130: #{tpu_custom_call.1} parent=107 // pred_check_branch
          %863 = sbr.rel (%p861) target = $region132
        $region131: #{tpu_custom_call.1} parent=107 // pred_region
          %864 = dma.done [#allocation13], 16
        $region132: #{tpu_custom_call.1} parent=107 // pred_fallthru
          _
        // Predicated region
        $region133: #{tpu_custom_call.1} parent=107 // pred_check
          %p865 = pneg %p269
        $region134: #{tpu_custom_call.1} parent=107 // pred_check_branch
          %867 = sbr.rel (%p865) target = $region136
        $region135: #{tpu_custom_call.1} parent=107 // pred_region
          %868 = dma.done [#allocation13], 16
        $region136: #{tpu_custom_call.1} parent=107 // pred_fallthru
          _
        // Predicated region
        $region137: #{tpu_custom_call.1} parent=107 // pred_check
          %p869 = pneg %p290
        $region138: #{tpu_custom_call.1} parent=107 // pred_check_branch
          %871 = sbr.rel (%p869) target = $region140
        $region139: #{tpu_custom_call.1} parent=107 // pred_region
          %872 = dma.done [#allocation16], 512
        $region140: #{tpu_custom_call.1} parent=107 // pred_fallthru
          _
        // Predicated region
        $region141: #{tpu_custom_call.1} parent=107 // pred_check
          %p873 = pneg %p311
        $region142: #{tpu_custom_call.1} parent=107 // pred_check_branch
          %875 = sbr.rel (%p873) target = $region144
        $region143: #{tpu_custom_call.1} parent=107 // pred_region
          %876 = dma.done [#allocation16], 16
        $region144: #{tpu_custom_call.1} parent=107 // pred_fallthru
          _
        // Predicated region
        $region145: #{tpu_custom_call.1} parent=107 // pred_check
          %p877 = pneg %p332
        $region146: #{tpu_custom_call.1} parent=107 // pred_check_branch
          %879 = sbr.rel (%p877) target = $region148
        $region147: #{tpu_custom_call.1} parent=107 // pred_region
          %880 = dma.done [#allocation19], 512
        $region148: #{tpu_custom_call.1} parent=107 // pred_fallthru
          _
        // Predicated region
        $region149: #{tpu_custom_call.1} parent=107 // pred_check
          %p881 = pneg %p353
        $region150: #{tpu_custom_call.1} parent=107 // pred_check_branch
          %883 = sbr.rel (%p881) target = $region152
        $region151: #{tpu_custom_call.1} parent=107 // pred_region
          %884 = dma.done [#allocation19], 16
        $region152: #{tpu_custom_call.1} parent=107 // pred_fallthru
          _
        // Predicated region
        $region153: #{tpu_custom_call.1} parent=107 // pred_check
          %p885 = pneg %p374
        $region154: #{tpu_custom_call.1} parent=107 // pred_check_branch
          %887 = sbr.rel (%p885) target = $region156
        $region155: #{tpu_custom_call.1} parent=107 // pred_region
          %888 = dma.done [#allocation22], 16
        $region156: #{tpu_custom_call.1} parent=107 // pred_fallthru
          _
        // Predicated region
        $region157: #{tpu_custom_call.1} parent=107 // pred_check
          %p889 = pneg %p395
        $region158: #{tpu_custom_call.1} parent=107 // pred_check_branch
          %891 = sbr.rel (%p889) target = $region160
        $region159: #{tpu_custom_call.1} parent=107 // pred_region
          %892 = dma.done [#allocation22], 16
        $region160: #{tpu_custom_call.1} parent=107 // pred_fallthru
          _
        // Predicated region
        $region161: #{tpu_custom_call.1} parent=107 // pred_check
          %p893 = pneg %p416
        $region162: #{tpu_custom_call.1} parent=107 // pred_check_branch
          %895 = sbr.rel (%p893) target = $region164
        $region163: #{tpu_custom_call.1} parent=107 // pred_region
          %896 = dma.done [#allocation25], 512
        $region164: #{tpu_custom_call.1} parent=107 // pred_fallthru
          _
        // Predicated region
        $region165: #{tpu_custom_call.1} parent=107 // pred_check
          %p897 = pneg %p437
        $region166: #{tpu_custom_call.1} parent=107 // pred_check_branch
          %899 = sbr.rel (%p897) target = $region168
        $region167: #{tpu_custom_call.1} parent=107 // pred_region
          %900 = dma.done [#allocation25], 16
        $region168: #{tpu_custom_call.1} parent=107 // pred_fallthru
          _
        %s901 = sand.u32 %s62, 1
        %s902 = scalar_lea.sflag [#allocation4], %s901
        %s903 = sand.u32 %s62, 1
        %s904 = smul.addr %s903, 8
        %s905 = scalar_lea.vmem [#allocation3], %s904
        %p906 = pneg %p75
        %p907 = pneg %p72
        %s908 = sand.u32 %s54, 1
        %s909 = scalar_lea.sflag [#allocation7], %s908
        %s910 = sand.u32 %s88, 1
        %s911 = smul.addr %s910, 8
        %s912 = scalar_lea.vmem [#allocation6], %s911
        %p913 = pneg %p101
        %p914 = pneg %p98
        %p915 = pneg %p122
        %p916 = pneg %p119
        %p917 = pneg %p143
        %p918 = pneg %p140
        %p919 = pneg %p164
        %p920 = pneg %p161
        %p921 = pneg %p185
        %p922 = pneg %p182
        %p923 = pneg %p206
        %p924 = pneg %p203
        %p925 = pneg %p227
        %p926 = pneg %p224
        %p927 = pneg %p248
        %p928 = pneg %p245
        %p929 = pneg %p269
        %p930 = pneg %p266
        %p931 = pneg %p290
        %p932 = pneg %p287
        %p933 = pneg %p311
        %p934 = pneg %p308
        %p935 = pneg %p332
        %p936 = pneg %p329
        %p937 = pneg %p353
        %p938 = pneg %p350
        %p939 = pneg %p374
        %p940 = pneg %p371
        %p941 = pneg %p395
        %p942 = pneg %p392
        %p943 = pneg %p416
        %p944 = pneg %p413
        %p945 = pneg %p437
        %p946 = pneg %p434
        %p947 = pneg %p458
        %p948 = pneg %p455
        %p949 = pneg %p479
        %p950 = pneg %p476
        %p951 = pneg %p500
        %p952 = pneg %p497
        %p953 = pneg %p521
        %p954 = pneg %p518
        %p955 = pneg %p547
        %p956 = pneg %p544
        %s957 = sand.u32 %s534, 1
        %s958 = scalar_lea.sflag [#allocation5], %s957
        %s959 = sand.u32 %s534, 1
        %s960 = smul.addr %s959, 8
        %s961 = scalar_lea.vmem [#allocation27], %s960
        %p962 = pneg %p573
        %p963 = pneg %p570
        %s964 = sand.u32 %s54, 1
        %s965 = scalar_lea.sflag [#allocation29], %s964
        %s966 = sand.u32 %s560, 1
        %s967 = smul.addr %s966, 32
        %s968 = scalar_lea.vmem [#allocation28], %s967
        %p969 = pneg %p599
        %p970 = pneg %p596
        %s971 = sand.u32 %s54, 1
        %s972 = scalar_lea.sflag [#allocation29], %s971
        %s973 = sand.u32 %s586, 1
        %s974 = smul.addr %s973, 32
        %s975 = scalar_lea.vmem [#allocation30], %s974
        %v976 = vlaneseq
        %v977 = vshrl.u32 %v976, 7
        %v978 = vlaneseq
        %v979 = vand.u32 %v978, 127
        %v980 = vld [vmem:[%s835] sm:$0xff]
        %v981 = vld [vmem:[%s844] sm:$0xff]
        %v982 = vld [vmem:[%s2] sm:$0xff]
        %v983 = vld [vmem:[%s2 + $0x8] sm:$0xff]
        %v984 = vld [vmem:[%s2 + $0x10] sm:$0xff]
        %v985 = vld [vmem:[%s2 + $0x18] sm:$0xff]
        %v986 = vld [vmem:[#allocation8] sm:$0x1]
        %v988 = vlaneseq
        %v989 = vshrl.u32 %v988, 7
        %v990 = vsub.s32 0, %v989
        %v991 = vrot.slane %v986, %v990
        %vm993 = vcmask 261120
        %v995 = vsel %vm993, %v980, 0
        %997 = vmatprep.subr.mxu0 0.0
        %998 = vmatpush1.msra.mxu0 0.0
        %999 = vmatprep.subr.mxu0 0.0
        %1000 = vmatpush1.msra.mxu0 0.0
        %1001 = vmatprep.subr.mxu0 0.0
        %1002 = vmatpush1.msra.mxu0 0.0
        %1003 = vmatprep.subr.mxu0 0.0
        %1004 = vmatpush1.msra.mxu0 0.0
        %1005 = vmatprep.subr.mxu0 0.0
        %1006 = vmatpush1.msra.mxu0 0.0
        %1007 = vmatprep.subr.mxu0 0.0
        %1008 = vmatpush1.msra.mxu0 0.0
        %1009 = vmatprep.subr.mxu0 0.0
        %1010 = vmatpush1.msra.mxu0 0.0
        %1011 = vmatprep.subr.mxu0 0.0
        %1012 = vmatpush1.msra.mxu0 0.0
        %1013 = vmatprep.subr.mxu0 0.0
        %1014 = vmatpush1.msra.mxu0 0.0
        %1015 = vmatprep.subr.mxu0 0.0
        %1016 = vmatpush1.msra.mxu0 0.0
        %1017 = vmatprep.subr.mxu0 0.0
        %1018 = vmatpush1.msra.mxu0 0.0
        %1019 = vmatprep.subr.mxu0 0.0
        %1020 = vmatpush1.msra.mxu0 0.0
        %1021 = vmatprep.subr.mxu0 0.0
        %1022 = vmatpush1.msra.mxu0 %v985
        %1023 = vmatprep.subr.mxu0 0.0
        %1024 = vmatpush1.msra.mxu0 %v984
        %1025 = vmatprep.subr.mxu0 0.0
        %1026 = vmatpush1.msra.mxu0 %v983
        %1027 = vmatprep.subr.mxu0 0.0
        %1028 = vmatpush1.msra.mxu0 %v982
        %1029 = vmatprep.subr.mxu0 0.0
        %1030 = vmatpush2.msra.mxu0 0.0
        %1031 = vmatprep.subr.mxu0 0.0
        %1032 = vmatpush2.msra.mxu0 0.0
        %1033 = vmatprep.subr.mxu0 0.0
        %1034 = vmatpush2.msra.mxu0 0.0
        %1035 = vmatprep.subr.mxu0 0.0
        %1036 = vmatpush2.msra.mxu0 0.0
        %1037 = vmatprep.subr.mxu0 0.0
        %1038 = vmatpush2.msra.mxu0 0.0
        %1039 = vmatprep.subr.mxu0 0.0
        %1040 = vmatpush2.msra.mxu0 0.0
        %1041 = vmatprep.subr.mxu0 0.0
        %1042 = vmatpush2.msra.mxu0 0.0
        %1043 = vmatprep.subr.mxu0 0.0
        %1044 = vmatpush2.msra.mxu0 0.0
        %1045 = vmatprep.subr.mxu0 0.0
        %1046 = vmatpush2.msra.mxu0 0.0
        %1047 = vmatprep.subr.mxu0 0.0
        %1048 = vmatpush2.msra.mxu0 0.0
        %1049 = vmatprep.subr.mxu0 0.0
        %1050 = vmatpush2.msra.mxu0 0.0
        %1051 = vmatprep.subr.mxu0 0.0
        %1052 = vmatpush2.msra.mxu0 0.0
        %1053 = vmatprep.subr.mxu0 0.0
        %1054 = vmatpush2.msra.mxu0 0.0
        %1055 = vmatprep.subr.mxu0 0.0
        %1056 = vmatpush2.msra.mxu0 0.0
        %1057 = vmatprep.subr.mxu0 0.0
        %1058 = vmatpush2.msra.mxu0 0.0
        %1059 = vmatprep.subr.mxu0 0.0
        %1060 = vmatpush2.msra.mxu0 0.0
        %1061 = vmatprep.mubr.f32.mxu0 0.0
        %1062 = vmatmul.mubr.f32.gmra.mxu0 %v995
        %v1063 = vpop.f32.mrf.mxu0
        %v1064 = vadd.f32 %v991, %v1063
        %v1065 = vpop.f32.mrf.mxu0
        %1066 = vdwg.mxu0
        %v1067 = vsub.s32 %v977, %v979
        %vm1068 = vcmp.ge.s32.totalorder %v1067, 0
        %v1069 = vsel %vm1068, 1, 0
        %v1070 = vcvt.s32.f32 %v1069
        %v1071 = vmul.f32 %v1064, 0.35355338
        %1073 = vrot.lane.b32.xlu0 %v1064, 96
        %v1074 = vpop.permute.xlu0 %1073
        %vm1075 = vcmask 64512
        %v1077 = vsel %vm1075, %v1071, 0
        %v1079 = vsel %vm1075, %v1074, 0
        %1081 = vmatprep.subr.mxu0 0.0
        %1082 = vmatpush1.xpose.msra.mxu0 0.0
        %1083 = vmatprep.subr.mxu0 0.0
        %1084 = vmatpush1.xpose.msra.mxu0 0.0
        %1085 = vmatprep.subr.mxu0 0.0
        %1086 = vmatpush1.xpose.msra.mxu0 0.0
        %1087 = vmatprep.subr.mxu0 0.0
        %1088 = vmatpush1.xpose.msra.mxu0 0.0
        %1089 = vmatprep.subr.mxu0 0.0
        %1090 = vmatpush1.xpose.msra.mxu0 0.0
        %1091 = vmatprep.subr.mxu0 0.0
        %1092 = vmatpush1.xpose.msra.mxu0 0.0
        %1093 = vmatprep.subr.mxu0 0.0
        %1094 = vmatpush1.xpose.msra.mxu0 0.0
        %1095 = vmatprep.subr.mxu0 0.0
        %1096 = vmatpush1.xpose.msra.mxu0 0.0
        %1097 = vmatprep.subr.mxu0 0.0
        %1098 = vmatpush1.xpose.msra.mxu0 0.0
        %1099 = vmatprep.subr.mxu0 0.0
        %1100 = vmatpush1.xpose.msra.mxu0 0.0
        %1101 = vmatprep.subr.mxu0 0.0
        %1102 = vmatpush1.xpose.msra.mxu0 0.0
        %1103 = vmatprep.subr.mxu0 0.0
        %1104 = vmatpush1.xpose.msra.mxu0 0.0
        %1105 = vmatprep.subr.mxu0 0.0
        %1106 = vmatpush1.xpose.msra.mxu0 0.0
        %1107 = vmatprep.subr.mxu0 0.0
        %1108 = vmatpush1.xpose.msra.mxu0 0.0
        %1109 = vmatprep.subr.mxu0 0.0
        %1110 = vmatpush1.xpose.msra.mxu0 0.0
        %1111 = vmatprep.subr.mxu0 0.0
        %1112 = vmatpush1.xpose.msra.mxu0 %v1079
        %1113 = vmatprep.subr.mxu0 0.0
        %1114 = vmatpush2.xpose.msra.mxu0 0.0
        %1115 = vmatprep.subr.mxu0 0.0
        %1116 = vmatpush2.xpose.msra.mxu0 0.0
        %1117 = vmatprep.subr.mxu0 0.0
        %1118 = vmatpush2.xpose.msra.mxu0 0.0
        %1119 = vmatprep.subr.mxu0 0.0
        %1120 = vmatpush2.xpose.msra.mxu0 0.0
        %1121 = vmatprep.subr.mxu0 0.0
        %1122 = vmatpush2.xpose.msra.mxu0 0.0
        %1123 = vmatprep.subr.mxu0 0.0
        %1124 = vmatpush2.xpose.msra.mxu0 0.0
        %1125 = vmatprep.subr.mxu0 0.0
        %1126 = vmatpush2.xpose.msra.mxu0 0.0
        %1127 = vmatprep.subr.mxu0 0.0
        %1128 = vmatpush2.xpose.msra.mxu0 0.0
        %1129 = vmatprep.subr.mxu0 0.0
        %1130 = vmatpush2.xpose.msra.mxu0 0.0
        %1131 = vmatprep.subr.mxu0 0.0
        %1132 = vmatpush2.xpose.msra.mxu0 0.0
        %1133 = vmatprep.subr.mxu0 0.0
        %1134 = vmatpush2.xpose.msra.mxu0 0.0
        %1135 = vmatprep.subr.mxu0 0.0
        %1136 = vmatpush2.xpose.msra.mxu0 0.0
        %1137 = vmatprep.subr.mxu0 0.0
        %1138 = vmatpush2.xpose.msra.mxu0 0.0
        %1139 = vmatprep.subr.mxu0 0.0
        %1140 = vmatpush2.xpose.msra.mxu0 0.0
        %1141 = vmatprep.subr.mxu0 0.0
        %1142 = vmatpush2.xpose.msra.mxu0 0.0
        %1143 = vmatprep.subr.mxu0 0.0
        %1144 = vmatpush2.xpose.msra.mxu0 0.0
        %1145 = vmatprep.mubr.f32.mxu0 0.0
        %1146 = vmatmul.mubr.f32.gmra.mxu0 %v1077
        %v1147 = vpop.f32.mrf.mxu0
        %v1148 = vadd.f32 0.0, %v1147
        %v1149 = vpop.f32.mrf.mxu0
        %1150 = vdwg.mxu0
        %v1151 = vsel %vm1068, %v1148, -1e+32
        %v1152 = vsel %vm1075, %v1151, -inf
        %1153 = vmax.xlane.f32.xlu0 %v1152
        %v1154 = vpop.xlane.xlu0 %1153
        %v1155 = vsub.f32 %v1151, %v1154
        %v1156 = vmul.f32 %v1155, 1.442695
        %v1157 = vpow.pop %v1156
        %v1158 = vsel %vm1075, %v1157, 0.0
        %1159 = vadd.xlane.f32.xlu0 %v1158
        %v1160 = vpop.xlane.xlu0 %1159
        %v1161 = vrcp.pop %v1160
        %v1162 = vmul.f32 %v1157, %v1161
        %v1163 = vmul.f32 %v1162, %v1070
        %1164 = vst.msk [vmem:[%s968] sm:$0xff] %vm1075, %v1163
        %1165 = vrot.lane.b32.xlu0 %v1064, 64
        %v1166 = vpop.permute.xlu0 %1165
        %v1169 = vsel %vm1075, %v1163, 0
        %1171 = vmatprep.subr.mxu0 0.0
        %1172 = vmatpush1.msra.mxu0 0.0
        %1173 = vmatprep.subr.mxu0 0.0
        %1174 = vmatpush1.msra.mxu0 0.0
        %1175 = vmatprep.subr.mxu0 0.0
        %1176 = vmatpush1.msra.mxu0 0.0
        %1177 = vmatprep.subr.mxu0 0.0
        %1178 = vmatpush1.msra.mxu0 0.0
        %1179 = vmatprep.subr.mxu0 0.0
        %1180 = vmatpush1.msra.mxu0 0.0
        %1181 = vmatprep.subr.mxu0 0.0
        %1182 = vmatpush1.msra.mxu0 0.0
        %1183 = vmatprep.subr.mxu0 0.0
        %1184 = vmatpush1.msra.mxu0 0.0
        %1185 = vmatprep.subr.mxu0 0.0
        %1186 = vmatpush1.msra.mxu0 0.0
        %1187 = vmatprep.subr.mxu0 0.0
        %1188 = vmatpush1.msra.mxu0 0.0
        %1189 = vmatprep.subr.mxu0 0.0
        %1190 = vmatpush1.msra.mxu0 0.0
        %1191 = vmatprep.subr.mxu0 0.0
        %1192 = vmatpush1.msra.mxu0 0.0
        %1193 = vmatprep.subr.mxu0 0.0
        %1194 = vmatpush1.msra.mxu0 0.0
        %1195 = vmatprep.subr.mxu0 0.0
        %1196 = vmatpush1.msra.mxu0 0.0
        %1197 = vmatprep.subr.mxu0 0.0
        %1198 = vmatpush1.msra.mxu0 0.0
        %1199 = vmatprep.subr.mxu0 0.0
        %1200 = vmatpush1.msra.mxu0 0.0
        %1201 = vmatprep.subr.mxu0 0.0
        %1202 = vmatpush1.msra.mxu0 %v1166
        %1203 = vmatprep.subr.mxu0 0.0
        %1204 = vmatpush2.msra.mxu0 0.0
        %1205 = vmatprep.subr.mxu0 0.0
        %1206 = vmatpush2.msra.mxu0 0.0
        %1207 = vmatprep.subr.mxu0 0.0
        %1208 = vmatpush2.msra.mxu0 0.0
        %1209 = vmatprep.subr.mxu0 0.0
        %1210 = vmatpush2.msra.mxu0 0.0
        %1211 = vmatprep.subr.mxu0 0.0
        %1212 = vmatpush2.msra.mxu0 0.0
        %1213 = vmatprep.subr.mxu0 0.0
        %1214 = vmatpush2.msra.mxu0 0.0
        %1215 = vmatprep.subr.mxu0 0.0
        %1216 = vmatpush2.msra.mxu0 0.0
        %1217 = vmatprep.subr.mxu0 0.0
        %1218 = vmatpush2.msra.mxu0 0.0
        %1219 = vmatprep.subr.mxu0 0.0
        %1220 = vmatpush2.msra.mxu0 0.0
        %1221 = vmatprep.subr.mxu0 0.0
        %1222 = vmatpush2.msra.mxu0 0.0
        %1223 = vmatprep.subr.mxu0 0.0
        %1224 = vmatpush2.msra.mxu0 0.0
        %1225 = vmatprep.subr.mxu0 0.0
        %1226 = vmatpush2.msra.mxu0 0.0
        %1227 = vmatprep.subr.mxu0 0.0
        %1228 = vmatpush2.msra.mxu0 0.0
        %1229 = vmatprep.subr.mxu0 0.0
        %1230 = vmatpush2.msra.mxu0 0.0
        %1231 = vmatprep.subr.mxu0 0.0
        %1232 = vmatpush2.msra.mxu0 0.0
        %1233 = vmatprep.subr.mxu0 0.0
        %1234 = vmatpush2.msra.mxu0 0.0
        %1235 = vmatprep.mubr.f32.mxu0 0.0
        %1236 = vmatmul.mubr.f32.gmra.mxu0 %v1169
        %v1237 = vpop.f32.mrf.mxu0
        %v1238 = vadd.f32 0.0, %v1237
        %v1239 = vpop.f32.mrf.mxu0
        %1240 = vdwg.mxu0
        %1241 = vst.msk [vmem:[#allocation2] sm:$0xff] %vm1075, %v1238
        %1242 = vrot.lane.b32.xlu0 %v1071, 120
        %v1243 = vpop.permute.xlu0 %1242
        %1244 = vrot.lane.b32.xlu0 %v1064, 88
        %v1245 = vpop.permute.xlu0 %1244
        %v1246 = vsel %vm1075, %v1243, 0
        %v1248 = vsel %vm1075, %v1245, 0
        %1250 = vmatprep.subr.mxu0 0.0
        %1251 = vmatpush1.xpose.msra.mxu0 0.0
        %1252 = vmatprep.subr.mxu0 0.0
        %1253 = vmatpush1.xpose.msra.mxu0 0.0
        %1254 = vmatprep.subr.mxu0 0.0
        %1255 = vmatpush1.xpose.msra.mxu0 0.0
        %1256 = vmatprep.subr.mxu0 0.0
        %1257 = vmatpush1.xpose.msra.mxu0 0.0
        %1258 = vmatprep.subr.mxu0 0.0
        %1259 = vmatpush1.xpose.msra.mxu0 0.0
        %1260 = vmatprep.subr.mxu0 0.0
        %1261 = vmatpush1.xpose.msra.mxu0 0.0
        %1262 = vmatprep.subr.mxu0 0.0
        %1263 = vmatpush1.xpose.msra.mxu0 0.0
        %1264 = vmatprep.subr.mxu0 0.0
        %1265 = vmatpush1.xpose.msra.mxu0 0.0
        %1266 = vmatprep.subr.mxu0 0.0
        %1267 = vmatpush1.xpose.msra.mxu0 0.0
        %1268 = vmatprep.subr.mxu0 0.0
        %1269 = vmatpush1.xpose.msra.mxu0 0.0
        %1270 = vmatprep.subr.mxu0 0.0
        %1271 = vmatpush1.xpose.msra.mxu0 0.0
        %1272 = vmatprep.subr.mxu0 0.0
        %1273 = vmatpush1.xpose.msra.mxu0 0.0
        %1274 = vmatprep.subr.mxu0 0.0
        %1275 = vmatpush1.xpose.msra.mxu0 0.0
        %1276 = vmatprep.subr.mxu0 0.0
        %1277 = vmatpush1.xpose.msra.mxu0 0.0
        %1278 = vmatprep.subr.mxu0 0.0
        %1279 = vmatpush1.xpose.msra.mxu0 0.0
        %1280 = vmatprep.subr.mxu0 0.0
        %1281 = vmatpush1.xpose.msra.mxu0 %v1248
        %1282 = vmatprep.subr.mxu0 0.0
        %1283 = vmatpush2.xpose.msra.mxu0 0.0
        %1284 = vmatprep.subr.mxu0 0.0
        %1285 = vmatpush2.xpose.msra.mxu0 0.0
        %1286 = vmatprep.subr.mxu0 0.0
        %1287 = vmatpush2.xpose.msra.mxu0 0.0
        %1288 = vmatprep.subr.mxu0 0.0
        %1289 = vmatpush2.xpose.msra.mxu0 0.0
        %1290 = vmatprep.subr.mxu0 0.0
        %1291 = vmatpush2.xpose.msra.mxu0 0.0
        %1292 = vmatprep.subr.mxu0 0.0
        %1293 = vmatpush2.xpose.msra.mxu0 0.0
        %1294 = vmatprep.subr.mxu0 0.0
        %1295 = vmatpush2.xpose.msra.mxu0 0.0
        %1296 = vmatprep.subr.mxu0 0.0
        %1297 = vmatpush2.xpose.msra.mxu0 0.0
        %1298 = vmatprep.subr.mxu0 0.0
        %1299 = vmatpush2.xpose.msra.mxu0 0.0
        %1300 = vmatprep.subr.mxu0 0.0
        %1301 = vmatpush2.xpose.msra.mxu0 0.0
        %1302 = vmatprep.subr.mxu0 0.0
        %1303 = vmatpush2.xpose.msra.mxu0 0.0
        %1304 = vmatprep.subr.mxu0 0.0
        %1305 = vmatpush2.xpose.msra.mxu0 0.0
        %1306 = vmatprep.subr.mxu0 0.0
        %1307 = vmatpush2.xpose.msra.mxu0 0.0
        %1308 = vmatprep.subr.mxu0 0.0
        %1309 = vmatpush2.xpose.msra.mxu0 0.0
        %1310 = vmatprep.subr.mxu0 0.0
        %1311 = vmatpush2.xpose.msra.mxu0 0.0
        %1312 = vmatprep.subr.mxu0 0.0
        %1313 = vmatpush2.xpose.msra.mxu0 0.0
        %1314 = vmatprep.mubr.f32.mxu0 0.0
        %1315 = vmatmul.mubr.f32.gmra.mxu0 %v1246
        %v1316 = vpop.f32.mrf.mxu0
        %v1317 = vadd.f32 0.0, %v1316
        %v1318 = vpop.f32.mrf.mxu0
        %1319 = vdwg.mxu0
        %v1320 = vsel %vm1068, %v1317, -1e+32
        %v1321 = vsel %vm1075, %v1320, -inf
        %1322 = vmax.xlane.f32.xlu0 %v1321
        %v1323 = vpop.xlane.xlu0 %1322
        %v1324 = vsub.f32 %v1320, %v1323
        %v1325 = vmul.f32 %v1324, 1.442695
        %v1326 = vpow.pop %v1325
        %v1327 = vsel %vm1075, %v1326, 0.0
        %1328 = vadd.xlane.f32.xlu0 %v1327
        %v1329 = vpop.xlane.xlu0 %1328
        %v1330 = vrcp.pop %v1329
        %v1331 = vmul.f32 %v1326, %v1330
        %v1332 = vmul.f32 %v1331, %v1070
        %s1333 = scalar_lea.vmem %s968, 8 [#allocation28]
        %1334 = vst.msk [vmem:[%s1333] sm:$0xff] %vm1075, %v1332
        %1335 = vrot.lane.b32.xlu0 %v1064, 56
        %v1336 = vpop.permute.xlu0 %1335
        %v1339 = vsel %vm1075, %v1332, 0
        %1341 = vmatprep.subr.mxu0 0.0
        %1342 = vmatpush1.msra.mxu0 0.0
        %1343 = vmatprep.subr.mxu0 0.0
        %1344 = vmatpush1.msra.mxu0 0.0
        %1345 = vmatprep.subr.mxu0 0.0
        %1346 = vmatpush1.msra.mxu0 0.0
        %1347 = vmatprep.subr.mxu0 0.0
        %1348 = vmatpush1.msra.mxu0 0.0
        %1349 = vmatprep.subr.mxu0 0.0
        %1350 = vmatpush1.msra.mxu0 0.0
        %1351 = vmatprep.subr.mxu0 0.0
        %1352 = vmatpush1.msra.mxu0 0.0
        %1353 = vmatprep.subr.mxu0 0.0
        %1354 = vmatpush1.msra.mxu0 0.0
        %1355 = vmatprep.subr.mxu0 0.0
        %1356 = vmatpush1.msra.mxu0 0.0
        %1357 = vmatprep.subr.mxu0 0.0
        %1358 = vmatpush1.msra.mxu0 0.0
        %1359 = vmatprep.subr.mxu0 0.0
        %1360 = vmatpush1.msra.mxu0 0.0
        %1361 = vmatprep.subr.mxu0 0.0
        %1362 = vmatpush1.msra.mxu0 0.0
        %1363 = vmatprep.subr.mxu0 0.0
        %1364 = vmatpush1.msra.mxu0 0.0
        %1365 = vmatprep.subr.mxu0 0.0
        %1366 = vmatpush1.msra.mxu0 0.0
        %1367 = vmatprep.subr.mxu0 0.0
        %1368 = vmatpush1.msra.mxu0 0.0
        %1369 = vmatprep.subr.mxu0 0.0
        %1370 = vmatpush1.msra.mxu0 0.0
        %1371 = vmatprep.subr.mxu0 0.0
        %1372 = vmatpush1.msra.mxu0 %v1336
        %1373 = vmatprep.subr.mxu0 0.0
        %1374 = vmatpush2.msra.mxu0 0.0
        %1375 = vmatprep.subr.mxu0 0.0
        %1376 = vmatpush2.msra.mxu0 0.0
        %1377 = vmatprep.subr.mxu0 0.0
        %1378 = vmatpush2.msra.mxu0 0.0
        %1379 = vmatprep.subr.mxu0 0.0
        %1380 = vmatpush2.msra.mxu0 0.0
        %1381 = vmatprep.subr.mxu0 0.0
        %1382 = vmatpush2.msra.mxu0 0.0
        %1383 = vmatprep.subr.mxu0 0.0
        %1384 = vmatpush2.msra.mxu0 0.0
        %1385 = vmatprep.subr.mxu0 0.0
        %1386 = vmatpush2.msra.mxu0 0.0
        %1387 = vmatprep.subr.mxu0 0.0
        %1388 = vmatpush2.msra.mxu0 0.0
        %1389 = vmatprep.subr.mxu0 0.0
        %1390 = vmatpush2.msra.mxu0 0.0
        %1391 = vmatprep.subr.mxu0 0.0
        %1392 = vmatpush2.msra.mxu0 0.0
        %1393 = vmatprep.subr.mxu0 0.0
        %1394 = vmatpush2.msra.mxu0 0.0
        %1395 = vmatprep.subr.mxu0 0.0
        %1396 = vmatpush2.msra.mxu0 0.0
        %1397 = vmatprep.subr.mxu0 0.0
        %1398 = vmatpush2.msra.mxu0 0.0
        %1399 = vmatprep.subr.mxu0 0.0
        %1400 = vmatpush2.msra.mxu0 0.0
        %1401 = vmatprep.subr.mxu0 0.0
        %1402 = vmatpush2.msra.mxu0 0.0
        %1403 = vmatprep.subr.mxu0 0.0
        %1404 = vmatpush2.msra.mxu0 0.0
        %1405 = vmatprep.mubr.f32.mxu0 0.0
        %1406 = vmatmul.mubr.f32.gmra.mxu0 %v1339
        %v1407 = vpop.f32.mrf.mxu0
        %v1408 = vadd.f32 0.0, %v1407
        %v1409 = vpop.f32.mrf.mxu0
        %1410 = vdwg.mxu0
        %1412 = vrot.lane.b32.xlu0 %v1408, 8
        %v1413 = vpop.permute.xlu0 %1412
        %vm1415 = vcmask 130112
        %1416 = vst.msk [vmem:[#allocation2] sm:$0xff] %vm1415, %v1413
        %1417 = vrot.lane.b32.xlu0 %v1071, 112
        %v1418 = vpop.permute.xlu0 %1417
        %1419 = vrot.lane.b32.xlu0 %v1064, 80
        %v1420 = vpop.permute.xlu0 %1419
        %v1421 = vsel %vm1075, %v1418, 0
        %v1423 = vsel %vm1075, %v1420, 0
        %1425 = vmatprep.subr.mxu0 0.0
        %1426 = vmatpush1.xpose.msra.mxu0 0.0
        %1427 = vmatprep.subr.mxu0 0.0
        %1428 = vmatpush1.xpose.msra.mxu0 0.0
        %1429 = vmatprep.subr.mxu0 0.0
        %1430 = vmatpush1.xpose.msra.mxu0 0.0
        %1431 = vmatprep.subr.mxu0 0.0
        %1432 = vmatpush1.xpose.msra.mxu0 0.0
        %1433 = vmatprep.subr.mxu0 0.0
        %1434 = vmatpush1.xpose.msra.mxu0 0.0
        %1435 = vmatprep.subr.mxu0 0.0
        %1436 = vmatpush1.xpose.msra.mxu0 0.0
        %1437 = vmatprep.subr.mxu0 0.0
        %1438 = vmatpush1.xpose.msra.mxu0 0.0
        %1439 = vmatprep.subr.mxu0 0.0
        %1440 = vmatpush1.xpose.msra.mxu0 0.0
        %1441 = vmatprep.subr.mxu0 0.0
        %1442 = vmatpush1.xpose.msra.mxu0 0.0
        %1443 = vmatprep.subr.mxu0 0.0
        %1444 = vmatpush1.xpose.msra.mxu0 0.0
        %1445 = vmatprep.subr.mxu0 0.0
        %1446 = vmatpush1.xpose.msra.mxu0 0.0
        %1447 = vmatprep.subr.mxu0 0.0
        %1448 = vmatpush1.xpose.msra.mxu0 0.0
        %1449 = vmatprep.subr.mxu0 0.0
        %1450 = vmatpush1.xpose.msra.mxu0 0.0
        %1451 = vmatprep.subr.mxu0 0.0
        %1452 = vmatpush1.xpose.msra.mxu0 0.0
        %1453 = vmatprep.subr.mxu0 0.0
        %1454 = vmatpush1.xpose.msra.mxu0 0.0
        %1455 = vmatprep.subr.mxu0 0.0
        %1456 = vmatpush1.xpose.msra.mxu0 %v1423
        %1457 = vmatprep.subr.mxu0 0.0
        %1458 = vmatpush2.xpose.msra.mxu0 0.0
        %1459 = vmatprep.subr.mxu0 0.0
        %1460 = vmatpush2.xpose.msra.mxu0 0.0
        %1461 = vmatprep.subr.mxu0 0.0
        %1462 = vmatpush2.xpose.msra.mxu0 0.0
        %1463 = vmatprep.subr.mxu0 0.0
        %1464 = vmatpush2.xpose.msra.mxu0 0.0
        %1465 = vmatprep.subr.mxu0 0.0
        %1466 = vmatpush2.xpose.msra.mxu0 0.0
        %1467 = vmatprep.subr.mxu0 0.0
        %1468 = vmatpush2.xpose.msra.mxu0 0.0
        %1469 = vmatprep.subr.mxu0 0.0
        %1470 = vmatpush2.xpose.msra.mxu0 0.0
        %1471 = vmatprep.subr.mxu0 0.0
        %1472 = vmatpush2.xpose.msra.mxu0 0.0
        %1473 = vmatprep.subr.mxu0 0.0
        %1474 = vmatpush2.xpose.msra.mxu0 0.0
        %1475 = vmatprep.subr.mxu0 0.0
        %1476 = vmatpush2.xpose.msra.mxu0 0.0
        %1477 = vmatprep.subr.mxu0 0.0
        %1478 = vmatpush2.xpose.msra.mxu0 0.0
        %1479 = vmatprep.subr.mxu0 0.0
        %1480 = vmatpush2.xpose.msra.mxu0 0.0
        %1481 = vmatprep.subr.mxu0 0.0
        %1482 = vmatpush2.xpose.msra.mxu0 0.0
        %1483 = vmatprep.subr.mxu0 0.0
        %1484 = vmatpush2.xpose.msra.mxu0 0.0
        %1485 = vmatprep.subr.mxu0 0.0
        %1486 = vmatpush2.xpose.msra.mxu0 0.0
        %1487 = vmatprep.subr.mxu0 0.0
        %1488 = vmatpush2.xpose.msra.mxu0 0.0
        %1489 = vmatprep.mubr.f32.mxu0 0.0
        %1490 = vmatmul.mubr.f32.gmra.mxu0 %v1421
        %v1491 = vpop.f32.mrf.mxu0
        %v1492 = vadd.f32 0.0, %v1491
        %v1493 = vpop.f32.mrf.mxu0
        %1494 = vdwg.mxu0
        %v1495 = vsel %vm1068, %v1492, -1e+32
        %v1496 = vsel %vm1075, %v1495, -inf
        %1497 = vmax.xlane.f32.xlu0 %v1496
        %v1498 = vpop.xlane.xlu0 %1497
        %v1499 = vsub.f32 %v1495, %v1498
        %v1500 = vmul.f32 %v1499, 1.442695
        %v1501 = vpow.pop %v1500
        %v1502 = vsel %vm1075, %v1501, 0.0
        %1503 = vadd.xlane.f32.xlu0 %v1502
        %v1504 = vpop.xlane.xlu0 %1503
        %v1505 = vrcp.pop %v1504
        %v1506 = vmul.f32 %v1501, %v1505
        %v1507 = vmul.f32 %v1506, %v1070
        %s1508 = scalar_lea.vmem %s968, 16 [#allocation28]
        %1509 = vst.msk [vmem:[%s1508] sm:$0xff] %vm1075, %v1507
        %1510 = vrot.lane.b32.xlu0 %v1064, 48
        %v1511 = vpop.permute.xlu0 %1510
        %v1514 = vsel %vm1075, %v1507, 0
        %1516 = vmatprep.subr.mxu0 0.0
        %1517 = vmatpush1.msra.mxu0 0.0
        %1518 = vmatprep.subr.mxu0 0.0
        %1519 = vmatpush1.msra.mxu0 0.0
        %1520 = vmatprep.subr.mxu0 0.0
        %1521 = vmatpush1.msra.mxu0 0.0
        %1522 = vmatprep.subr.mxu0 0.0
        %1523 = vmatpush1.msra.mxu0 0.0
        %1524 = vmatprep.subr.mxu0 0.0
        %1525 = vmatpush1.msra.mxu0 0.0
        %1526 = vmatprep.subr.mxu0 0.0
        %1527 = vmatpush1.msra.mxu0 0.0
        %1528 = vmatprep.subr.mxu0 0.0
        %1529 = vmatpush1.msra.mxu0 0.0
        %1530 = vmatprep.subr.mxu0 0.0
        %1531 = vmatpush1.msra.mxu0 0.0
        %1532 = vmatprep.subr.mxu0 0.0
        %1533 = vmatpush1.msra.mxu0 0.0
        %1534 = vmatprep.subr.mxu0 0.0
        %1535 = vmatpush1.msra.mxu0 0.0
        %1536 = vmatprep.subr.mxu0 0.0
        %1537 = vmatpush1.msra.mxu0 0.0
        %1538 = vmatprep.subr.mxu0 0.0
        %1539 = vmatpush1.msra.mxu0 0.0
        %1540 = vmatprep.subr.mxu0 0.0
        %1541 = vmatpush1.msra.mxu0 0.0
        %1542 = vmatprep.subr.mxu0 0.0
        %1543 = vmatpush1.msra.mxu0 0.0
        %1544 = vmatprep.subr.mxu0 0.0
        %1545 = vmatpush1.msra.mxu0 0.0
        %1546 = vmatprep.subr.mxu0 0.0
        %1547 = vmatpush1.msra.mxu0 %v1511
        %1548 = vmatprep.subr.mxu0 0.0
        %1549 = vmatpush2.msra.mxu0 0.0
        %1550 = vmatprep.subr.mxu0 0.0
        %1551 = vmatpush2.msra.mxu0 0.0
        %1552 = vmatprep.subr.mxu0 0.0
        %1553 = vmatpush2.msra.mxu0 0.0
        %1554 = vmatprep.subr.mxu0 0.0
        %1555 = vmatpush2.msra.mxu0 0.0
        %1556 = vmatprep.subr.mxu0 0.0
        %1557 = vmatpush2.msra.mxu0 0.0
        %1558 = vmatprep.subr.mxu0 0.0
        %1559 = vmatpush2.msra.mxu0 0.0
        %1560 = vmatprep.subr.mxu0 0.0
        %1561 = vmatpush2.msra.mxu0 0.0
        %1562 = vmatprep.subr.mxu0 0.0
        %1563 = vmatpush2.msra.mxu0 0.0
        %1564 = vmatprep.subr.mxu0 0.0
        %1565 = vmatpush2.msra.mxu0 0.0
        %1566 = vmatprep.subr.mxu0 0.0
        %1567 = vmatpush2.msra.mxu0 0.0
        %1568 = vmatprep.subr.mxu0 0.0
        %1569 = vmatpush2.msra.mxu0 0.0
        %1570 = vmatprep.subr.mxu0 0.0
        %1571 = vmatpush2.msra.mxu0 0.0
        %1572 = vmatprep.subr.mxu0 0.0
        %1573 = vmatpush2.msra.mxu0 0.0
        %1574 = vmatprep.subr.mxu0 0.0
        %1575 = vmatpush2.msra.mxu0 0.0
        %1576 = vmatprep.subr.mxu0 0.0
        %1577 = vmatpush2.msra.mxu0 0.0
        %1578 = vmatprep.subr.mxu0 0.0
        %1579 = vmatpush2.msra.mxu0 0.0
        %1580 = vmatprep.mubr.f32.mxu0 0.0
        %1581 = vmatmul.mubr.f32.gmra.mxu0 %v1514
        %v1582 = vpop.f32.mrf.mxu0
        %v1583 = vadd.f32 0.0, %v1582
        %v1584 = vpop.f32.mrf.mxu0
        %1585 = vdwg.mxu0
        %1587 = vrot.lane.b32.xlu0 %v1583, 16
        %v1588 = vpop.permute.xlu0 %1587
        %vm1590 = vcmask 195712
        %1591 = vst.msk [vmem:[#allocation2] sm:$0xff] %vm1590, %v1588
        %1592 = vrot.lane.b32.xlu0 %v1071, 104
        %v1593 = vpop.permute.xlu0 %1592
        %1594 = vrot.lane.b32.xlu0 %v1064, 72
        %v1595 = vpop.permute.xlu0 %1594
        %v1596 = vsel %vm1075, %v1593, 0
        %v1598 = vsel %vm1075, %v1595, 0
        %1600 = vmatprep.subr.mxu0 0.0
        %1601 = vmatpush1.xpose.msra.mxu0 0.0
        %1602 = vmatprep.subr.mxu0 0.0
        %1603 = vmatpush1.xpose.msra.mxu0 0.0
        %1604 = vmatprep.subr.mxu0 0.0
        %1605 = vmatpush1.xpose.msra.mxu0 0.0
        %1606 = vmatprep.subr.mxu0 0.0
        %1607 = vmatpush1.xpose.msra.mxu0 0.0
        %1608 = vmatprep.subr.mxu0 0.0
        %1609 = vmatpush1.xpose.msra.mxu0 0.0
        %1610 = vmatprep.subr.mxu0 0.0
        %1611 = vmatpush1.xpose.msra.mxu0 0.0
        %1612 = vmatprep.subr.mxu0 0.0
        %1613 = vmatpush1.xpose.msra.mxu0 0.0
        %1614 = vmatprep.subr.mxu0 0.0
        %1615 = vmatpush1.xpose.msra.mxu0 0.0
        %1616 = vmatprep.subr.mxu0 0.0
        %1617 = vmatpush1.xpose.msra.mxu0 0.0
        %1618 = vmatprep.subr.mxu0 0.0
        %1619 = vmatpush1.xpose.msra.mxu0 0.0
        %1620 = vmatprep.subr.mxu0 0.0
        %1621 = vmatpush1.xpose.msra.mxu0 0.0
        %1622 = vmatprep.subr.mxu0 0.0
        %1623 = vmatpush1.xpose.msra.mxu0 0.0
        %1624 = vmatprep.subr.mxu0 0.0
        %1625 = vmatpush1.xpose.msra.mxu0 0.0
        %1626 = vmatprep.subr.mxu0 0.0
        %1627 = vmatpush1.xpose.msra.mxu0 0.0
        %1628 = vmatprep.subr.mxu0 0.0
        %1629 = vmatpush1.xpose.msra.mxu0 0.0
        %1630 = vmatprep.subr.mxu0 0.0
        %1631 = vmatpush1.xpose.msra.mxu0 %v1598
        %1632 = vmatprep.subr.mxu0 0.0
        %1633 = vmatpush2.xpose.msra.mxu0 0.0
        %1634 = vmatprep.subr.mxu0 0.0
        %1635 = vmatpush2.xpose.msra.mxu0 0.0
        %1636 = vmatprep.subr.mxu0 0.0
        %1637 = vmatpush2.xpose.msra.mxu0 0.0
        %1638 = vmatprep.subr.mxu0 0.0
        %1639 = vmatpush2.xpose.msra.mxu0 0.0
        %1640 = vmatprep.subr.mxu0 0.0
        %1641 = vmatpush2.xpose.msra.mxu0 0.0
        %1642 = vmatprep.subr.mxu0 0.0
        %1643 = vmatpush2.xpose.msra.mxu0 0.0
        %1644 = vmatprep.subr.mxu0 0.0
        %1645 = vmatpush2.xpose.msra.mxu0 0.0
        %1646 = vmatprep.subr.mxu0 0.0
        %1647 = vmatpush2.xpose.msra.mxu0 0.0
        %1648 = vmatprep.subr.mxu0 0.0
        %1649 = vmatpush2.xpose.msra.mxu0 0.0
        %1650 = vmatprep.subr.mxu0 0.0
        %1651 = vmatpush2.xpose.msra.mxu0 0.0
        %1652 = vmatprep.subr.mxu0 0.0
        %1653 = vmatpush2.xpose.msra.mxu0 0.0
        %1654 = vmatprep.subr.mxu0 0.0
        %1655 = vmatpush2.xpose.msra.mxu0 0.0
        %1656 = vmatprep.subr.mxu0 0.0
        %1657 = vmatpush2.xpose.msra.mxu0 0.0
        %1658 = vmatprep.subr.mxu0 0.0
        %1659 = vmatpush2.xpose.msra.mxu0 0.0
        %1660 = vmatprep.subr.mxu0 0.0
        %1661 = vmatpush2.xpose.msra.mxu0 0.0
        %1662 = vmatprep.subr.mxu0 0.0
        %1663 = vmatpush2.xpose.msra.mxu0 0.0
        %1664 = vmatprep.mubr.f32.mxu0 0.0
        %1665 = vmatmul.mubr.f32.gmra.mxu0 %v1596
        %v1666 = vpop.f32.mrf.mxu0
        %v1667 = vadd.f32 0.0, %v1666
        %v1668 = vpop.f32.mrf.mxu0
        %1669 = vdwg.mxu0
        %v1670 = vsel %vm1068, %v1667, -1e+32
        %v1671 = vsel %vm1075, %v1670, -inf
        %1672 = vmax.xlane.f32.xlu0 %v1671
        %v1673 = vpop.xlane.xlu0 %1672
        %v1674 = vsub.f32 %v1670, %v1673
        %v1675 = vmul.f32 %v1674, 1.442695
        %v1676 = vpow.pop %v1675
        %v1677 = vsel %vm1075, %v1676, 0.0
        %1678 = vadd.xlane.f32.xlu0 %v1677
        %v1679 = vpop.xlane.xlu0 %1678
        %v1680 = vrcp.pop %v1679
        %v1681 = vmul.f32 %v1676, %v1680
        %v1682 = vmul.f32 %v1681, %v1070
        %s1683 = scalar_lea.vmem %s968, 24 [#allocation28]
        %1684 = vst.msk [vmem:[%s1683] sm:$0xff] %vm1075, %v1682
        %1685 = vrot.lane.b32.xlu0 %v1064, 40
        %v1686 = vpop.permute.xlu0 %1685
        %v1689 = vsel %vm1075, %v1682, 0
        %1691 = vmatprep.subr.mxu0 0.0
        %1692 = vmatpush1.msra.mxu0 0.0
        %1693 = vmatprep.subr.mxu0 0.0
        %1694 = vmatpush1.msra.mxu0 0.0
        %1695 = vmatprep.subr.mxu0 0.0
        %1696 = vmatpush1.msra.mxu0 0.0
        %1697 = vmatprep.subr.mxu0 0.0
        %1698 = vmatpush1.msra.mxu0 0.0
        %1699 = vmatprep.subr.mxu0 0.0
        %1700 = vmatpush1.msra.mxu0 0.0
        %1701 = vmatprep.subr.mxu0 0.0
        %1702 = vmatpush1.msra.mxu0 0.0
        %1703 = vmatprep.subr.mxu0 0.0
        %1704 = vmatpush1.msra.mxu0 0.0
        %1705 = vmatprep.subr.mxu0 0.0
        %1706 = vmatpush1.msra.mxu0 0.0
        %1707 = vmatprep.subr.mxu0 0.0
        %1708 = vmatpush1.msra.mxu0 0.0
        %1709 = vmatprep.subr.mxu0 0.0
        %1710 = vmatpush1.msra.mxu0 0.0
        %1711 = vmatprep.subr.mxu0 0.0
        %1712 = vmatpush1.msra.mxu0 0.0
        %1713 = vmatprep.subr.mxu0 0.0
        %1714 = vmatpush1.msra.mxu0 0.0
        %1715 = vmatprep.subr.mxu0 0.0
        %1716 = vmatpush1.msra.mxu0 0.0
        %1717 = vmatprep.subr.mxu0 0.0
        %1718 = vmatpush1.msra.mxu0 0.0
        %1719 = vmatprep.subr.mxu0 0.0
        %1720 = vmatpush1.msra.mxu0 0.0
        %1721 = vmatprep.subr.mxu0 0.0
        %1722 = vmatpush1.msra.mxu0 %v1686
        %1723 = vmatprep.subr.mxu0 0.0
        %1724 = vmatpush2.msra.mxu0 0.0
        %1725 = vmatprep.subr.mxu0 0.0
        %1726 = vmatpush2.msra.mxu0 0.0
        %1727 = vmatprep.subr.mxu0 0.0
        %1728 = vmatpush2.msra.mxu0 0.0
        %1729 = vmatprep.subr.mxu0 0.0
        %1730 = vmatpush2.msra.mxu0 0.0
        %1731 = vmatprep.subr.mxu0 0.0
        %1732 = vmatpush2.msra.mxu0 0.0
        %1733 = vmatprep.subr.mxu0 0.0
        %1734 = vmatpush2.msra.mxu0 0.0
        %1735 = vmatprep.subr.mxu0 0.0
        %1736 = vmatpush2.msra.mxu0 0.0
        %1737 = vmatprep.subr.mxu0 0.0
        %1738 = vmatpush2.msra.mxu0 0.0
        %1739 = vmatprep.subr.mxu0 0.0
        %1740 = vmatpush2.msra.mxu0 0.0
        %1741 = vmatprep.subr.mxu0 0.0
        %1742 = vmatpush2.msra.mxu0 0.0
        %1743 = vmatprep.subr.mxu0 0.0
        %1744 = vmatpush2.msra.mxu0 0.0
        %1745 = vmatprep.subr.mxu0 0.0
        %1746 = vmatpush2.msra.mxu0 0.0
        %1747 = vmatprep.subr.mxu0 0.0
        %1748 = vmatpush2.msra.mxu0 0.0
        %1749 = vmatprep.subr.mxu0 0.0
        %1750 = vmatpush2.msra.mxu0 0.0
        %1751 = vmatprep.subr.mxu0 0.0
        %1752 = vmatpush2.msra.mxu0 0.0
        %1753 = vmatprep.subr.mxu0 0.0
        %1754 = vmatpush2.msra.mxu0 0.0
        %1755 = vmatprep.mubr.f32.mxu0 0.0
        %1756 = vmatmul.mubr.f32.gmra.mxu0 %v1689
        %v1757 = vpop.f32.mrf.mxu0
        %v1758 = vadd.f32 0.0, %v1757
        %v1759 = vpop.f32.mrf.mxu0
        %1760 = vdwg.mxu0
        %1762 = vrot.lane.b32.xlu0 %v1758, 24
        %v1763 = vpop.permute.xlu0 %1762
        %vm1765 = vcmask 261312
        %1766 = vst.msk [vmem:[#allocation2] sm:$0xff] %vm1765, %v1763
        %v1767 = vld [vmem:[#allocation2] sm:$0xff]
        %v1768 = vld [vmem:[%s4] sm:$0xff]
        %v1769 = vld [vmem:[%s4 + $0x8] sm:$0xff]
        %v1770 = vld [vmem:[%s4 + $0x10] sm:$0xff]
        %v1771 = vld [vmem:[%s4 + $0x18] sm:$0xff]
        %v1772 = vld [vmem:[#allocation9] sm:$0x1]
        %v1774 = vlaneseq
        %v1775 = vshrl.u32 %v1774, 7
        %v1776 = vsub.s32 0, %v1775
        %v1777 = vrot.slane %v1772, %v1776
        %v1780 = vsel %vm993, %v1767, 0
        %1782 = vmatprep.subr.mxu0 0.0
        %1783 = vmatpush1.msra.mxu0 0.0
        %1784 = vmatprep.subr.mxu0 0.0
        %1785 = vmatpush1.msra.mxu0 0.0
        %1786 = vmatprep.subr.mxu0 0.0
        %1787 = vmatpush1.msra.mxu0 0.0
        %1788 = vmatprep.subr.mxu0 0.0
        %1789 = vmatpush1.msra.mxu0 0.0
        %1790 = vmatprep.subr.mxu0 0.0
        %1791 = vmatpush1.msra.mxu0 0.0
        %1792 = vmatprep.subr.mxu0 0.0
        %1793 = vmatpush1.msra.mxu0 0.0
        %1794 = vmatprep.subr.mxu0 0.0
        %1795 = vmatpush1.msra.mxu0 0.0
        %1796 = vmatprep.subr.mxu0 0.0
        %1797 = vmatpush1.msra.mxu0 0.0
        %1798 = vmatprep.subr.mxu0 0.0
        %1799 = vmatpush1.msra.mxu0 0.0
        %1800 = vmatprep.subr.mxu0 0.0
        %1801 = vmatpush1.msra.mxu0 0.0
        %1802 = vmatprep.subr.mxu0 0.0
        %1803 = vmatpush1.msra.mxu0 0.0
        %1804 = vmatprep.subr.mxu0 0.0
        %1805 = vmatpush1.msra.mxu0 0.0
        %1806 = vmatprep.subr.mxu0 0.0
        %1807 = vmatpush1.msra.mxu0 %v1771
        %1808 = vmatprep.subr.mxu0 0.0
        %1809 = vmatpush1.msra.mxu0 %v1770
        %1810 = vmatprep.subr.mxu0 0.0
        %1811 = vmatpush1.msra.mxu0 %v1769
        %1812 = vmatprep.subr.mxu0 0.0
        %1813 = vmatpush1.msra.mxu0 %v1768
        %1814 = vmatprep.subr.mxu0 0.0
        %1815 = vmatpush2.msra.mxu0 0.0
        %1816 = vmatprep.subr.mxu0 0.0
        %1817 = vmatpush2.msra.mxu0 0.0
        %1818 = vmatprep.subr.mxu0 0.0
        %1819 = vmatpush2.msra.mxu0 0.0
        %1820 = vmatprep.subr.mxu0 0.0
        %1821 = vmatpush2.msra.mxu0 0.0
        %1822 = vmatprep.subr.mxu0 0.0
        %1823 = vmatpush2.msra.mxu0 0.0
        %1824 = vmatprep.subr.mxu0 0.0
        %1825 = vmatpush2.msra.mxu0 0.0
        %1826 = vmatprep.subr.mxu0 0.0
        %1827 = vmatpush2.msra.mxu0 0.0
        %1828 = vmatprep.subr.mxu0 0.0
        %1829 = vmatpush2.msra.mxu0 0.0
        %1830 = vmatprep.subr.mxu0 0.0
        %1831 = vmatpush2.msra.mxu0 0.0
        %1832 = vmatprep.subr.mxu0 0.0
        %1833 = vmatpush2.msra.mxu0 0.0
        %1834 = vmatprep.subr.mxu0 0.0
        %1835 = vmatpush2.msra.mxu0 0.0
        %1836 = vmatprep.subr.mxu0 0.0
        %1837 = vmatpush2.msra.mxu0 0.0
        %1838 = vmatprep.subr.mxu0 0.0
        %1839 = vmatpush2.msra.mxu0 0.0
        %1840 = vmatprep.subr.mxu0 0.0
        %1841 = vmatpush2.msra.mxu0 0.0
        %1842 = vmatprep.subr.mxu0 0.0
        %1843 = vmatpush2.msra.mxu0 0.0
        %1844 = vmatprep.subr.mxu0 0.0
        %1845 = vmatpush2.msra.mxu0 0.0
        %1846 = vmatprep.mubr.f32.mxu0 0.0
        %1847 = vmatmul.mubr.f32.gmra.mxu0 %v1780
        %v1848 = vpop.f32.mrf.mxu0
        %v1849 = vadd.f32 %v1777, %v1848
        %v1850 = vpop.f32.mrf.mxu0
        %1851 = vdwg.mxu0
        %v1852 = vadd.f32 %v1849, %v980
        %v1853 = vld [vmem:[#allocation11] sm:$0x1]
        %v1854 = vld [vmem:[#allocation12] sm:$0x1]
        %v1855 = vsel %vm993, %v1852, 0.0
        %1856 = vadd.xlane.f32.xlu0 %v1855
        %v1857 = vpop.xlane.xlu0 %1856
        %v1858 = vrcp.pop 32.0
        %v1859 = vmul.f32 %v1857, %v1858
        %v1860 = vsub.f32 %v1852, %v1859
        %v1861 = vmul.f32 %v1860, %v1860
        %v1862 = vsel %vm993, %v1861, 0.0
        %1863 = vadd.xlane.f32.xlu0 %v1862
        %v1864 = vpop.xlane.xlu0 %1863
        %v1865 = vmul.f32 %v1864, %v1858
        %v1866 = vadd.f32 %v1865, 1e-05
        %v1867 = vrsqrt.pop %v1866
        %v1868 = vmul.f32 %v1860, %v1867
        %v1870 = vlaneseq
        %v1871 = vshrl.u32 %v1870, 7
        %v1872 = vsub.s32 0, %v1871
        %v1873 = vrot.slane %v1853, %v1872
        %v1875 = vmul.f32 %v1868, %v1873
        %v1877 = vlaneseq
        %v1878 = vshrl.u32 %v1877, 7
        %v1879 = vsub.s32 0, %v1878
        %v1880 = vrot.slane %v1854, %v1879
        %v1882 = vadd.f32 %v1875, %v1880
        %v1883 = vld [vmem:[%s8] sm:$0xff]
        %v1884 = vld [vmem:[%s8 + $0x8] sm:$0xff]
        %v1885 = vld [vmem:[%s8 + $0x10] sm:$0xff]
        %v1886 = vld [vmem:[%s8 + $0x18] sm:$0xff]
        %v1887 = vld [vmem:[#allocation14] sm:$0x1]
        %v1889 = vlaneseq
        %v1890 = vshrl.u32 %v1889, 7
        %v1891 = vsub.s32 0, %v1890
        %v1892 = vrot.slane %v1887, %v1891
        %v1895 = vsel %vm993, %v1882, 0
        %1897 = vmatprep.subr.mxu0 0.0
        %1898 = vmatpush1.msra.mxu0 0.0
        %1899 = vmatprep.subr.mxu0 0.0
        %1900 = vmatpush1.msra.mxu0 0.0
        %1901 = vmatprep.subr.mxu0 0.0
        %1902 = vmatpush1.msra.mxu0 0.0
        %1903 = vmatprep.subr.mxu0 0.0
        %1904 = vmatpush1.msra.mxu0 0.0
        %1905 = vmatprep.subr.mxu0 0.0
        %1906 = vmatpush1.msra.mxu0 0.0
        %1907 = vmatprep.subr.mxu0 0.0
        %1908 = vmatpush1.msra.mxu0 0.0
        %1909 = vmatprep.subr.mxu0 0.0
        %1910 = vmatpush1.msra.mxu0 0.0
        %1911 = vmatprep.subr.mxu0 0.0
        %1912 = vmatpush1.msra.mxu0 0.0
        %1913 = vmatprep.subr.mxu0 0.0
        %1914 = vmatpush1.msra.mxu0 0.0
        %1915 = vmatprep.subr.mxu0 0.0
        %1916 = vmatpush1.msra.mxu0 0.0
        %1917 = vmatprep.subr.mxu0 0.0
        %1918 = vmatpush1.msra.mxu0 0.0
        %1919 = vmatprep.subr.mxu0 0.0
        %1920 = vmatpush1.msra.mxu0 0.0
        %1921 = vmatprep.subr.mxu0 0.0
        %1922 = vmatpush1.msra.mxu0 %v1886
        %1923 = vmatprep.subr.mxu0 0.0
        %1924 = vmatpush1.msra.mxu0 %v1885
        %1925 = vmatprep.subr.mxu0 0.0
        %1926 = vmatpush1.msra.mxu0 %v1884
        %1927 = vmatprep.subr.mxu0 0.0
        %1928 = vmatpush1.msra.mxu0 %v1883
        %1929 = vmatprep.subr.mxu0 0.0
        %1930 = vmatpush2.msra.mxu0 0.0
        %1931 = vmatprep.subr.mxu0 0.0
        %1932 = vmatpush2.msra.mxu0 0.0
        %1933 = vmatprep.subr.mxu0 0.0
        %1934 = vmatpush2.msra.mxu0 0.0
        %1935 = vmatprep.subr.mxu0 0.0
        %1936 = vmatpush2.msra.mxu0 0.0
        %1937 = vmatprep.subr.mxu0 0.0
        %1938 = vmatpush2.msra.mxu0 0.0
        %1939 = vmatprep.subr.mxu0 0.0
        %1940 = vmatpush2.msra.mxu0 0.0
        %1941 = vmatprep.subr.mxu0 0.0
        %1942 = vmatpush2.msra.mxu0 0.0
        %1943 = vmatprep.subr.mxu0 0.0
        %1944 = vmatpush2.msra.mxu0 0.0
        %1945 = vmatprep.subr.mxu0 0.0
        %1946 = vmatpush2.msra.mxu0 0.0
        %1947 = vmatprep.subr.mxu0 0.0
        %1948 = vmatpush2.msra.mxu0 0.0
        %1949 = vmatprep.subr.mxu0 0.0
        %1950 = vmatpush2.msra.mxu0 0.0
        %1951 = vmatprep.subr.mxu0 0.0
        %1952 = vmatpush2.msra.mxu0 0.0
        %1953 = vmatprep.subr.mxu0 0.0
        %1954 = vmatpush2.msra.mxu0 0.0
        %1955 = vmatprep.subr.mxu0 0.0
        %1956 = vmatpush2.msra.mxu0 0.0
        %1957 = vmatprep.subr.mxu0 0.0
        %1958 = vmatpush2.msra.mxu0 0.0
        %1959 = vmatprep.subr.mxu0 0.0
        %1960 = vmatpush2.msra.mxu0 0.0
        %1961 = vmatprep.mubr.f32.mxu0 0.0
        %1962 = vmatmul.mubr.f32.gmra.mxu0 %v1895
        %v1963 = vpop.f32.mrf.mxu0
        %v1964 = vadd.f32 %v1892, %v1963
        %v1965 = vpop.f32.mrf.mxu0
        %1966 = vdwg.mxu0
        %v1967 = vld [vmem:[#allocation15] sm:$0xff]
        %v1968 = vld [vmem:[#allocation15 + $0x8] sm:$0xff]
        %v1969 = vld [vmem:[#allocation15 + $0x10] sm:$0xff]
        %v1970 = vld [vmem:[#allocation15 + $0x18] sm:$0xff]
        %v1971 = vld [vmem:[#allocation17] sm:$0x1]
        %v1973 = vlaneseq
        %v1974 = vshrl.u32 %v1973, 7
        %v1975 = vsub.s32 0, %v1974
        %v1976 = vrot.slane %v1971, %v1975
        %v1979 = vsel %vm993, %v981, 0
        %1981 = vmatprep.subr.mxu0 0.0
        %1982 = vmatpush1.msra.mxu0 0.0
        %1983 = vmatprep.subr.mxu0 0.0
        %1984 = vmatpush1.msra.mxu0 0.0
        %1985 = vmatprep.subr.mxu0 0.0
        %1986 = vmatpush1.msra.mxu0 0.0
        %1987 = vmatprep.subr.mxu0 0.0
        %1988 = vmatpush1.msra.mxu0 0.0
        %1989 = vmatprep.subr.mxu0 0.0
        %1990 = vmatpush1.msra.mxu0 0.0
        %1991 = vmatprep.subr.mxu0 0.0
        %1992 = vmatpush1.msra.mxu0 0.0
        %1993 = vmatprep.subr.mxu0 0.0
        %1994 = vmatpush1.msra.mxu0 0.0
        %1995 = vmatprep.subr.mxu0 0.0
        %1996 = vmatpush1.msra.mxu0 0.0
        %1997 = vmatprep.subr.mxu0 0.0
        %1998 = vmatpush1.msra.mxu0 0.0
        %1999 = vmatprep.subr.mxu0 0.0
        %2000 = vmatpush1.msra.mxu0 0.0
        %2001 = vmatprep.subr.mxu0 0.0
        %2002 = vmatpush1.msra.mxu0 0.0
        %2003 = vmatprep.subr.mxu0 0.0
        %2004 = vmatpush1.msra.mxu0 0.0
        %2005 = vmatprep.subr.mxu0 0.0
        %2006 = vmatpush1.msra.mxu0 %v1970
        %2007 = vmatprep.subr.mxu0 0.0
        %2008 = vmatpush1.msra.mxu0 %v1969
        %2009 = vmatprep.subr.mxu0 0.0
        %2010 = vmatpush1.msra.mxu0 %v1968
        %2011 = vmatprep.subr.mxu0 0.0
        %2012 = vmatpush1.msra.mxu0 %v1967
        %2013 = vmatprep.subr.mxu0 0.0
        %2014 = vmatpush2.msra.mxu0 0.0
        %2015 = vmatprep.subr.mxu0 0.0
        %2016 = vmatpush2.msra.mxu0 0.0
        %2017 = vmatprep.subr.mxu0 0.0
        %2018 = vmatpush2.msra.mxu0 0.0
        %2019 = vmatprep.subr.mxu0 0.0
        %2020 = vmatpush2.msra.mxu0 0.0
        %2021 = vmatprep.subr.mxu0 0.0
        %2022 = vmatpush2.msra.mxu0 0.0
        %2023 = vmatprep.subr.mxu0 0.0
        %2024 = vmatpush2.msra.mxu0 0.0
        %2025 = vmatprep.subr.mxu0 0.0
        %2026 = vmatpush2.msra.mxu0 0.0
        %2027 = vmatprep.subr.mxu0 0.0
        %2028 = vmatpush2.msra.mxu0 0.0
        %2029 = vmatprep.subr.mxu0 0.0
        %2030 = vmatpush2.msra.mxu0 0.0
        %2031 = vmatprep.subr.mxu0 0.0
        %2032 = vmatpush2.msra.mxu0 0.0
        %2033 = vmatprep.subr.mxu0 0.0
        %2034 = vmatpush2.msra.mxu0 0.0
        %2035 = vmatprep.subr.mxu0 0.0
        %2036 = vmatpush2.msra.mxu0 0.0
        %2037 = vmatprep.subr.mxu0 0.0
        %2038 = vmatpush2.msra.mxu0 0.0
        %2039 = vmatprep.subr.mxu0 0.0
        %2040 = vmatpush2.msra.mxu0 0.0
        %2041 = vmatprep.subr.mxu0 0.0
        %2042 = vmatpush2.msra.mxu0 0.0
        %2043 = vmatprep.subr.mxu0 0.0
        %2044 = vmatpush2.msra.mxu0 0.0
        %2045 = vmatprep.mubr.f32.mxu0 0.0
        %2046 = vmatmul.mubr.f32.gmra.mxu0 %v1979
        %v2047 = vpop.f32.mrf.mxu0
        %v2048 = vadd.f32 %v1976, %v2047
        %v2049 = vpop.f32.mrf.mxu0
        %2050 = vdwg.mxu0
        %vm2051 = vcmp.ge.s32.totalorder %v1067, 1
        %v2052 = vsel %vm2051, 1, 0
        %v2053 = vcvt.s32.f32 %v2052
        %vm2054 = vcmp.eq.s32.totalorder %v977, 0
        %v2055 = vmul.f32 %v1964, 0.35355338
        %2057 = vrot.lane.b32.xlu0 %v1964, 96
        %v2058 = vpop.permute.xlu0 %2057
        %v2060 = vsel %vm1075, %v2055, 0
        %v2062 = vsel %vm1075, %v2058, 0
        %2064 = vmatprep.subr.mxu0 0.0
        %2065 = vmatpush1.xpose.msra.mxu0 0.0
        %2066 = vmatprep.subr.mxu0 0.0
        %2067 = vmatpush1.xpose.msra.mxu0 0.0
        %2068 = vmatprep.subr.mxu0 0.0
        %2069 = vmatpush1.xpose.msra.mxu0 0.0
        %2070 = vmatprep.subr.mxu0 0.0
        %2071 = vmatpush1.xpose.msra.mxu0 0.0
        %2072 = vmatprep.subr.mxu0 0.0
        %2073 = vmatpush1.xpose.msra.mxu0 0.0
        %2074 = vmatprep.subr.mxu0 0.0
        %2075 = vmatpush1.xpose.msra.mxu0 0.0
        %2076 = vmatprep.subr.mxu0 0.0
        %2077 = vmatpush1.xpose.msra.mxu0 0.0
        %2078 = vmatprep.subr.mxu0 0.0
        %2079 = vmatpush1.xpose.msra.mxu0 0.0
        %2080 = vmatprep.subr.mxu0 0.0
        %2081 = vmatpush1.xpose.msra.mxu0 0.0
        %2082 = vmatprep.subr.mxu0 0.0
        %2083 = vmatpush1.xpose.msra.mxu0 0.0
        %2084 = vmatprep.subr.mxu0 0.0
        %2085 = vmatpush1.xpose.msra.mxu0 0.0
        %2086 = vmatprep.subr.mxu0 0.0
        %2087 = vmatpush1.xpose.msra.mxu0 0.0
        %2088 = vmatprep.subr.mxu0 0.0
        %2089 = vmatpush1.xpose.msra.mxu0 0.0
        %2090 = vmatprep.subr.mxu0 0.0
        %2091 = vmatpush1.xpose.msra.mxu0 0.0
        %2092 = vmatprep.subr.mxu0 0.0
        %2093 = vmatpush1.xpose.msra.mxu0 0.0
        %2094 = vmatprep.subr.mxu0 0.0
        %2095 = vmatpush1.xpose.msra.mxu0 %v2062
        %2096 = vmatprep.subr.mxu0 0.0
        %2097 = vmatpush2.xpose.msra.mxu0 0.0
        %2098 = vmatprep.subr.mxu0 0.0
        %2099 = vmatpush2.xpose.msra.mxu0 0.0
        %2100 = vmatprep.subr.mxu0 0.0
        %2101 = vmatpush2.xpose.msra.mxu0 0.0
        %2102 = vmatprep.subr.mxu0 0.0
        %2103 = vmatpush2.xpose.msra.mxu0 0.0
        %2104 = vmatprep.subr.mxu0 0.0
        %2105 = vmatpush2.xpose.msra.mxu0 0.0
        %2106 = vmatprep.subr.mxu0 0.0
        %2107 = vmatpush2.xpose.msra.mxu0 0.0
        %2108 = vmatprep.subr.mxu0 0.0
        %2109 = vmatpush2.xpose.msra.mxu0 0.0
        %2110 = vmatprep.subr.mxu0 0.0
        %2111 = vmatpush2.xpose.msra.mxu0 0.0
        %2112 = vmatprep.subr.mxu0 0.0
        %2113 = vmatpush2.xpose.msra.mxu0 0.0
        %2114 = vmatprep.subr.mxu0 0.0
        %2115 = vmatpush2.xpose.msra.mxu0 0.0
        %2116 = vmatprep.subr.mxu0 0.0
        %2117 = vmatpush2.xpose.msra.mxu0 0.0
        %2118 = vmatprep.subr.mxu0 0.0
        %2119 = vmatpush2.xpose.msra.mxu0 0.0
        %2120 = vmatprep.subr.mxu0 0.0
        %2121 = vmatpush2.xpose.msra.mxu0 0.0
        %2122 = vmatprep.subr.mxu0 0.0
        %2123 = vmatpush2.xpose.msra.mxu0 0.0
        %2124 = vmatprep.subr.mxu0 0.0
        %2125 = vmatpush2.xpose.msra.mxu0 0.0
        %2126 = vmatprep.subr.mxu0 0.0
        %2127 = vmatpush2.xpose.msra.mxu0 0.0
        %2128 = vmatprep.mubr.f32.mxu0 0.0
        %2129 = vmatmul.mubr.f32.gmra.mxu0 %v2060
        %v2130 = vpop.f32.mrf.mxu0
        %v2131 = vadd.f32 0.0, %v2130
        %v2132 = vpop.f32.mrf.mxu0
        %2133 = vdwg.mxu0
        %v2134 = vsel %vm2051, %v2131, -1e+32
        %v2135 = vsel %vm1075, %v2134, -inf
        %2136 = vmax.xlane.f32.xlu0 %v2135
        %v2137 = vpop.xlane.xlu0 %2136
        %v2138 = vsub.f32 %v2134, %v2137
        %v2139 = vmul.f32 %v2138, 1.442695
        %v2140 = vpow.pop %v2139
        %v2141 = vsel %vm1075, %v2140, 0.0
        %2142 = vadd.xlane.f32.xlu0 %v2141
        %v2143 = vpop.xlane.xlu0 %2142
        %v2144 = vrcp.pop %v2143
        %v2145 = vmul.f32 %v2140, %v2144
        %v2146 = vsel %vm2054, 0.0, %v2145
        %v2147 = vmul.f32 %v2146, %v2053
        %2148 = vst.msk [vmem:[%s975] sm:$0xff] %vm1075, %v2147
        %v2150 = vsel %vm1075, %v2147, 0
        %2152 = vmatprep.subr.mxu0 0.0
        %2153 = vmatpush1.msra.mxu0 0.0
        %2154 = vmatprep.subr.mxu0 0.0
        %2155 = vmatpush1.msra.mxu0 0.0
        %2156 = vmatprep.subr.mxu0 0.0
        %2157 = vmatpush1.msra.mxu0 0.0
        %2158 = vmatprep.subr.mxu0 0.0
        %2159 = vmatpush1.msra.mxu0 0.0
        %2160 = vmatprep.subr.mxu0 0.0
        %2161 = vmatpush1.msra.mxu0 0.0
        %2162 = vmatprep.subr.mxu0 0.0
        %2163 = vmatpush1.msra.mxu0 0.0
        %2164 = vmatprep.subr.mxu0 0.0
        %2165 = vmatpush1.msra.mxu0 0.0
        %2166 = vmatprep.subr.mxu0 0.0
        %2167 = vmatpush1.msra.mxu0 0.0
        %2168 = vmatprep.subr.mxu0 0.0
        %2169 = vmatpush1.msra.mxu0 0.0
        %2170 = vmatprep.subr.mxu0 0.0
        %2171 = vmatpush1.msra.mxu0 0.0
        %2172 = vmatprep.subr.mxu0 0.0
        %2173 = vmatpush1.msra.mxu0 0.0
        %2174 = vmatprep.subr.mxu0 0.0
        %2175 = vmatpush1.msra.mxu0 0.0
        %2176 = vmatprep.subr.mxu0 0.0
        %2177 = vmatpush1.msra.mxu0 0.0
        %2178 = vmatprep.subr.mxu0 0.0
        %2179 = vmatpush1.msra.mxu0 0.0
        %2180 = vmatprep.subr.mxu0 0.0
        %2181 = vmatpush1.msra.mxu0 0.0
        %2182 = vmatprep.subr.mxu0 0.0
        %2183 = vmatpush1.msra.mxu0 %v2048
        %2184 = vmatprep.subr.mxu0 0.0
        %2185 = vmatpush2.msra.mxu0 0.0
        %2186 = vmatprep.subr.mxu0 0.0
        %2187 = vmatpush2.msra.mxu0 0.0
        %2188 = vmatprep.subr.mxu0 0.0
        %2189 = vmatpush2.msra.mxu0 0.0
        %2190 = vmatprep.subr.mxu0 0.0
        %2191 = vmatpush2.msra.mxu0 0.0
        %2192 = vmatprep.subr.mxu0 0.0
        %2193 = vmatpush2.msra.mxu0 0.0
        %2194 = vmatprep.subr.mxu0 0.0
        %2195 = vmatpush2.msra.mxu0 0.0
        %2196 = vmatprep.subr.mxu0 0.0
        %2197 = vmatpush2.msra.mxu0 0.0
        %2198 = vmatprep.subr.mxu0 0.0
        %2199 = vmatpush2.msra.mxu0 0.0
        %2200 = vmatprep.subr.mxu0 0.0
        %2201 = vmatpush2.msra.mxu0 0.0
        %2202 = vmatprep.subr.mxu0 0.0
        %2203 = vmatpush2.msra.mxu0 0.0
        %2204 = vmatprep.subr.mxu0 0.0
        %2205 = vmatpush2.msra.mxu0 0.0
        %2206 = vmatprep.subr.mxu0 0.0
        %2207 = vmatpush2.msra.mxu0 0.0
        %2208 = vmatprep.subr.mxu0 0.0
        %2209 = vmatpush2.msra.mxu0 0.0
        %2210 = vmatprep.subr.mxu0 0.0
        %2211 = vmatpush2.msra.mxu0 0.0
        %2212 = vmatprep.subr.mxu0 0.0
        %2213 = vmatpush2.msra.mxu0 0.0
        %2214 = vmatprep.subr.mxu0 0.0
        %2215 = vmatpush2.msra.mxu0 0.0
        %2216 = vmatprep.mubr.f32.mxu0 0.0
        %2217 = vmatmul.mubr.f32.gmra.mxu0 %v2150
        %v2218 = vpop.f32.mrf.mxu0
        %v2219 = vadd.f32 0.0, %v2218
        %v2220 = vpop.f32.mrf.mxu0
        %2221 = vdwg.mxu0
        %2222 = vst.msk [vmem:[#allocation2] sm:$0xff] %vm1075, %v2219
        %2223 = vrot.lane.b32.xlu0 %v2055, 120
        %v2224 = vpop.permute.xlu0 %2223
        %2225 = vrot.lane.b32.xlu0 %v1964, 88
        %v2226 = vpop.permute.xlu0 %2225
        %v2227 = vsel %vm1075, %v2224, 0
        %v2229 = vsel %vm1075, %v2226, 0
        %2231 = vmatprep.subr.mxu0 0.0
        %2232 = vmatpush1.xpose.msra.mxu0 0.0
        %2233 = vmatprep.subr.mxu0 0.0
        %2234 = vmatpush1.xpose.msra.mxu0 0.0
        %2235 = vmatprep.subr.mxu0 0.0
        %2236 = vmatpush1.xpose.msra.mxu0 0.0
        %2237 = vmatprep.subr.mxu0 0.0
        %2238 = vmatpush1.xpose.msra.mxu0 0.0
        %2239 = vmatprep.subr.mxu0 0.0
        %2240 = vmatpush1.xpose.msra.mxu0 0.0
        %2241 = vmatprep.subr.mxu0 0.0
        %2242 = vmatpush1.xpose.msra.mxu0 0.0
        %2243 = vmatprep.subr.mxu0 0.0
        %2244 = vmatpush1.xpose.msra.mxu0 0.0
        %2245 = vmatprep.subr.mxu0 0.0
        %2246 = vmatpush1.xpose.msra.mxu0 0.0
        %2247 = vmatprep.subr.mxu0 0.0
        %2248 = vmatpush1.xpose.msra.mxu0 0.0
        %2249 = vmatprep.subr.mxu0 0.0
        %2250 = vmatpush1.xpose.msra.mxu0 0.0
        %2251 = vmatprep.subr.mxu0 0.0
        %2252 = vmatpush1.xpose.msra.mxu0 0.0
        %2253 = vmatprep.subr.mxu0 0.0
        %2254 = vmatpush1.xpose.msra.mxu0 0.0
        %2255 = vmatprep.subr.mxu0 0.0
        %2256 = vmatpush1.xpose.msra.mxu0 0.0
        %2257 = vmatprep.subr.mxu0 0.0
        %2258 = vmatpush1.xpose.msra.mxu0 0.0
        %2259 = vmatprep.subr.mxu0 0.0
        %2260 = vmatpush1.xpose.msra.mxu0 0.0
        %2261 = vmatprep.subr.mxu0 0.0
        %2262 = vmatpush1.xpose.msra.mxu0 %v2229
        %2263 = vmatprep.subr.mxu0 0.0
        %2264 = vmatpush2.xpose.msra.mxu0 0.0
        %2265 = vmatprep.subr.mxu0 0.0
        %2266 = vmatpush2.xpose.msra.mxu0 0.0
        %2267 = vmatprep.subr.mxu0 0.0
        %2268 = vmatpush2.xpose.msra.mxu0 0.0
        %2269 = vmatprep.subr.mxu0 0.0
        %2270 = vmatpush2.xpose.msra.mxu0 0.0
        %2271 = vmatprep.subr.mxu0 0.0
        %2272 = vmatpush2.xpose.msra.mxu0 0.0
        %2273 = vmatprep.subr.mxu0 0.0
        %2274 = vmatpush2.xpose.msra.mxu0 0.0
        %2275 = vmatprep.subr.mxu0 0.0
        %2276 = vmatpush2.xpose.msra.mxu0 0.0
        %2277 = vmatprep.subr.mxu0 0.0
        %2278 = vmatpush2.xpose.msra.mxu0 0.0
        %2279 = vmatprep.subr.mxu0 0.0
        %2280 = vmatpush2.xpose.msra.mxu0 0.0
        %2281 = vmatprep.subr.mxu0 0.0
        %2282 = vmatpush2.xpose.msra.mxu0 0.0
        %2283 = vmatprep.subr.mxu0 0.0
        %2284 = vmatpush2.xpose.msra.mxu0 0.0
        %2285 = vmatprep.subr.mxu0 0.0
        %2286 = vmatpush2.xpose.msra.mxu0 0.0
        %2287 = vmatprep.subr.mxu0 0.0
        %2288 = vmatpush2.xpose.msra.mxu0 0.0
        %2289 = vmatprep.subr.mxu0 0.0
        %2290 = vmatpush2.xpose.msra.mxu0 0.0
        %2291 = vmatprep.subr.mxu0 0.0
        %2292 = vmatpush2.xpose.msra.mxu0 0.0
        %2293 = vmatprep.subr.mxu0 0.0
        %2294 = vmatpush2.xpose.msra.mxu0 0.0
        %2295 = vmatprep.mubr.f32.mxu0 0.0
        %2296 = vmatmul.mubr.f32.gmra.mxu0 %v2227
        %v2297 = vpop.f32.mrf.mxu0
        %v2298 = vadd.f32 0.0, %v2297
        %v2299 = vpop.f32.mrf.mxu0
        %2300 = vdwg.mxu0
        %v2301 = vsel %vm2051, %v2298, -1e+32
        %v2302 = vsel %vm1075, %v2301, -inf
        %2303 = vmax.xlane.f32.xlu0 %v2302
        %v2304 = vpop.xlane.xlu0 %2303
        %v2305 = vsub.f32 %v2301, %v2304
        %v2306 = vmul.f32 %v2305, 1.442695
        %v2307 = vpow.pop %v2306
        %v2308 = vsel %vm1075, %v2307, 0.0
        %2309 = vadd.xlane.f32.xlu0 %v2308
        %v2310 = vpop.xlane.xlu0 %2309
        %v2311 = vrcp.pop %v2310
        %v2312 = vmul.f32 %v2307, %v2311
        %v2313 = vsel %vm2054, 0.0, %v2312
        %v2314 = vmul.f32 %v2313, %v2053
        %s2315 = scalar_lea.vmem %s975, 8 [#allocation30]
        %2316 = vst.msk [vmem:[%s2315] sm:$0xff] %vm1075, %v2314
        %2318 = vrot.lane.b32.xlu0 %v2048, 120
        %v2319 = vpop.permute.xlu0 %2318
        %v2322 = vsel %vm1075, %v2314, 0
        %2324 = vmatprep.subr.mxu0 0.0
        %2325 = vmatpush1.msra.mxu0 0.0
        %2326 = vmatprep.subr.mxu0 0.0
        %2327 = vmatpush1.msra.mxu0 0.0
        %2328 = vmatprep.subr.mxu0 0.0
        %2329 = vmatpush1.msra.mxu0 0.0
        %2330 = vmatprep.subr.mxu0 0.0
        %2331 = vmatpush1.msra.mxu0 0.0
        %2332 = vmatprep.subr.mxu0 0.0
        %2333 = vmatpush1.msra.mxu0 0.0
        %2334 = vmatprep.subr.mxu0 0.0
        %2335 = vmatpush1.msra.mxu0 0.0
        %2336 = vmatprep.subr.mxu0 0.0
        %2337 = vmatpush1.msra.mxu0 0.0
        %2338 = vmatprep.subr.mxu0 0.0
        %2339 = vmatpush1.msra.mxu0 0.0
        %2340 = vmatprep.subr.mxu0 0.0
        %2341 = vmatpush1.msra.mxu0 0.0
        %2342 = vmatprep.subr.mxu0 0.0
        %2343 = vmatpush1.msra.mxu0 0.0
        %2344 = vmatprep.subr.mxu0 0.0
        %2345 = vmatpush1.msra.mxu0 0.0
        %2346 = vmatprep.subr.mxu0 0.0
        %2347 = vmatpush1.msra.mxu0 0.0
        %2348 = vmatprep.subr.mxu0 0.0
        %2349 = vmatpush1.msra.mxu0 0.0
        %2350 = vmatprep.subr.mxu0 0.0
        %2351 = vmatpush1.msra.mxu0 0.0
        %2352 = vmatprep.subr.mxu0 0.0
        %2353 = vmatpush1.msra.mxu0 0.0
        %2354 = vmatprep.subr.mxu0 0.0
        %2355 = vmatpush1.msra.mxu0 %v2319
        %2356 = vmatprep.subr.mxu0 0.0
        %2357 = vmatpush2.msra.mxu0 0.0
        %2358 = vmatprep.subr.mxu0 0.0
        %2359 = vmatpush2.msra.mxu0 0.0
        %2360 = vmatprep.subr.mxu0 0.0
        %2361 = vmatpush2.msra.mxu0 0.0
        %2362 = vmatprep.subr.mxu0 0.0
        %2363 = vmatpush2.msra.mxu0 0.0
        %2364 = vmatprep.subr.mxu0 0.0
        %2365 = vmatpush2.msra.mxu0 0.0
        %2366 = vmatprep.subr.mxu0 0.0
        %2367 = vmatpush2.msra.mxu0 0.0
        %2368 = vmatprep.subr.mxu0 0.0
        %2369 = vmatpush2.msra.mxu0 0.0
        %2370 = vmatprep.subr.mxu0 0.0
        %2371 = vmatpush2.msra.mxu0 0.0
        %2372 = vmatprep.subr.mxu0 0.0
        %2373 = vmatpush2.msra.mxu0 0.0
        %2374 = vmatprep.subr.mxu0 0.0
        %2375 = vmatpush2.msra.mxu0 0.0
        %2376 = vmatprep.subr.mxu0 0.0
        %2377 = vmatpush2.msra.mxu0 0.0
        %2378 = vmatprep.subr.mxu0 0.0
        %2379 = vmatpush2.msra.mxu0 0.0
        %2380 = vmatprep.subr.mxu0 0.0
        %2381 = vmatpush2.msra.mxu0 0.0
        %2382 = vmatprep.subr.mxu0 0.0
        %2383 = vmatpush2.msra.mxu0 0.0
        %2384 = vmatprep.subr.mxu0 0.0
        %2385 = vmatpush2.msra.mxu0 0.0
        %2386 = vmatprep.subr.mxu0 0.0
        %2387 = vmatpush2.msra.mxu0 0.0
        %2388 = vmatprep.mubr.f32.mxu0 0.0
        %2389 = vmatmul.mubr.f32.gmra.mxu0 %v2322
        %v2390 = vpop.f32.mrf.mxu0
        %v2391 = vadd.f32 0.0, %v2390
        %v2392 = vpop.f32.mrf.mxu0
        %2393 = vdwg.mxu0
        %2395 = vrot.lane.b32.xlu0 %v2391, 8
        %v2396 = vpop.permute.xlu0 %2395
        %2398 = vst.msk [vmem:[#allocation2] sm:$0xff] %vm1415, %v2396
        %2399 = vrot.lane.b32.xlu0 %v2055, 112
        %v2400 = vpop.permute.xlu0 %2399
        %2401 = vrot.lane.b32.xlu0 %v1964, 80
        %v2402 = vpop.permute.xlu0 %2401
        %v2403 = vsel %vm1075, %v2400, 0
        %v2405 = vsel %vm1075, %v2402, 0
        %2407 = vmatprep.subr.mxu0 0.0
        %2408 = vmatpush1.xpose.msra.mxu0 0.0
        %2409 = vmatprep.subr.mxu0 0.0
        %2410 = vmatpush1.xpose.msra.mxu0 0.0
        %2411 = vmatprep.subr.mxu0 0.0
        %2412 = vmatpush1.xpose.msra.mxu0 0.0
        %2413 = vmatprep.subr.mxu0 0.0
        %2414 = vmatpush1.xpose.msra.mxu0 0.0
        %2415 = vmatprep.subr.mxu0 0.0
        %2416 = vmatpush1.xpose.msra.mxu0 0.0
        %2417 = vmatprep.subr.mxu0 0.0
        %2418 = vmatpush1.xpose.msra.mxu0 0.0
        %2419 = vmatprep.subr.mxu0 0.0
        %2420 = vmatpush1.xpose.msra.mxu0 0.0
        %2421 = vmatprep.subr.mxu0 0.0
        %2422 = vmatpush1.xpose.msra.mxu0 0.0
        %2423 = vmatprep.subr.mxu0 0.0
        %2424 = vmatpush1.xpose.msra.mxu0 0.0
        %2425 = vmatprep.subr.mxu0 0.0
        %2426 = vmatpush1.xpose.msra.mxu0 0.0
        %2427 = vmatprep.subr.mxu0 0.0
        %2428 = vmatpush1.xpose.msra.mxu0 0.0
        %2429 = vmatprep.subr.mxu0 0.0
        %2430 = vmatpush1.xpose.msra.mxu0 0.0
        %2431 = vmatprep.subr.mxu0 0.0
        %2432 = vmatpush1.xpose.msra.mxu0 0.0
        %2433 = vmatprep.subr.mxu0 0.0
        %2434 = vmatpush1.xpose.msra.mxu0 0.0
        %2435 = vmatprep.subr.mxu0 0.0
        %2436 = vmatpush1.xpose.msra.mxu0 0.0
        %2437 = vmatprep.subr.mxu0 0.0
        %2438 = vmatpush1.xpose.msra.mxu0 %v2405
        %2439 = vmatprep.subr.mxu0 0.0
        %2440 = vmatpush2.xpose.msra.mxu0 0.0
        %2441 = vmatprep.subr.mxu0 0.0
        %2442 = vmatpush2.xpose.msra.mxu0 0.0
        %2443 = vmatprep.subr.mxu0 0.0
        %2444 = vmatpush2.xpose.msra.mxu0 0.0
        %2445 = vmatprep.subr.mxu0 0.0
        %2446 = vmatpush2.xpose.msra.mxu0 0.0
        %2447 = vmatprep.subr.mxu0 0.0
        %2448 = vmatpush2.xpose.msra.mxu0 0.0
        %2449 = vmatprep.subr.mxu0 0.0
        %2450 = vmatpush2.xpose.msra.mxu0 0.0
        %2451 = vmatprep.subr.mxu0 0.0
        %2452 = vmatpush2.xpose.msra.mxu0 0.0
        %2453 = vmatprep.subr.mxu0 0.0
        %2454 = vmatpush2.xpose.msra.mxu0 0.0
        %2455 = vmatprep.subr.mxu0 0.0
        %2456 = vmatpush2.xpose.msra.mxu0 0.0
        %2457 = vmatprep.subr.mxu0 0.0
        %2458 = vmatpush2.xpose.msra.mxu0 0.0
        %2459 = vmatprep.subr.mxu0 0.0
        %2460 = vmatpush2.xpose.msra.mxu0 0.0
        %2461 = vmatprep.subr.mxu0 0.0
        %2462 = vmatpush2.xpose.msra.mxu0 0.0
        %2463 = vmatprep.subr.mxu0 0.0
        %2464 = vmatpush2.xpose.msra.mxu0 0.0
        %2465 = vmatprep.subr.mxu0 0.0
        %2466 = vmatpush2.xpose.msra.mxu0 0.0
        %2467 = vmatprep.subr.mxu0 0.0
        %2468 = vmatpush2.xpose.msra.mxu0 0.0
        %2469 = vmatprep.subr.mxu0 0.0
        %2470 = vmatpush2.xpose.msra.mxu0 0.0
        %2471 = vmatprep.mubr.f32.mxu0 0.0
        %2472 = vmatmul.mubr.f32.gmra.mxu0 %v2403
        %v2473 = vpop.f32.mrf.mxu0
        %v2474 = vadd.f32 0.0, %v2473
        %v2475 = vpop.f32.mrf.mxu0
        %2476 = vdwg.mxu0
        %v2477 = vsel %vm2051, %v2474, -1e+32
        %v2478 = vsel %vm1075, %v2477, -inf
        %2479 = vmax.xlane.f32.xlu0 %v2478
        %v2480 = vpop.xlane.xlu0 %2479
        %v2481 = vsub.f32 %v2477, %v2480
        %v2482 = vmul.f32 %v2481, 1.442695
        %v2483 = vpow.pop %v2482
        %v2484 = vsel %vm1075, %v2483, 0.0
        %2485 = vadd.xlane.f32.xlu0 %v2484
        %v2486 = vpop.xlane.xlu0 %2485
        %v2487 = vrcp.pop %v2486
        %v2488 = vmul.f32 %v2483, %v2487
        %v2489 = vsel %vm2054, 0.0, %v2488
        %v2490 = vmul.f32 %v2489, %v2053
        %s2491 = scalar_lea.vmem %s975, 16 [#allocation30]
        %2492 = vst.msk [vmem:[%s2491] sm:$0xff] %vm1075, %v2490
        %2493 = vrot.lane.b32.xlu0 %v2048, 112
        %v2494 = vpop.permute.xlu0 %2493
        %v2497 = vsel %vm1075, %v2490, 0
        %2499 = vmatprep.subr.mxu0 0.0
        %2500 = vmatpush1.msra.mxu0 0.0
        %2501 = vmatprep.subr.mxu0 0.0
        %2502 = vmatpush1.msra.mxu0 0.0
        %2503 = vmatprep.subr.mxu0 0.0
        %2504 = vmatpush1.msra.mxu0 0.0
        %2505 = vmatprep.subr.mxu0 0.0
        %2506 = vmatpush1.msra.mxu0 0.0
        %2507 = vmatprep.subr.mxu0 0.0
        %2508 = vmatpush1.msra.mxu0 0.0
        %2509 = vmatprep.subr.mxu0 0.0
        %2510 = vmatpush1.msra.mxu0 0.0
        %2511 = vmatprep.subr.mxu0 0.0
        %2512 = vmatpush1.msra.mxu0 0.0
        %2513 = vmatprep.subr.mxu0 0.0
        %2514 = vmatpush1.msra.mxu0 0.0
        %2515 = vmatprep.subr.mxu0 0.0
        %2516 = vmatpush1.msra.mxu0 0.0
        %2517 = vmatprep.subr.mxu0 0.0
        %2518 = vmatpush1.msra.mxu0 0.0
        %2519 = vmatprep.subr.mxu0 0.0
        %2520 = vmatpush1.msra.mxu0 0.0
        %2521 = vmatprep.subr.mxu0 0.0
        %2522 = vmatpush1.msra.mxu0 0.0
        %2523 = vmatprep.subr.mxu0 0.0
        %2524 = vmatpush1.msra.mxu0 0.0
        %2525 = vmatprep.subr.mxu0 0.0
        %2526 = vmatpush1.msra.mxu0 0.0
        %2527 = vmatprep.subr.mxu0 0.0
        %2528 = vmatpush1.msra.mxu0 0.0
        %2529 = vmatprep.subr.mxu0 0.0
        %2530 = vmatpush1.msra.mxu0 %v2494
        %2531 = vmatprep.subr.mxu0 0.0
        %2532 = vmatpush2.msra.mxu0 0.0
        %2533 = vmatprep.subr.mxu0 0.0
        %2534 = vmatpush2.msra.mxu0 0.0
        %2535 = vmatprep.subr.mxu0 0.0
        %2536 = vmatpush2.msra.mxu0 0.0
        %2537 = vmatprep.subr.mxu0 0.0
        %2538 = vmatpush2.msra.mxu0 0.0
        %2539 = vmatprep.subr.mxu0 0.0
        %2540 = vmatpush2.msra.mxu0 0.0
        %2541 = vmatprep.subr.mxu0 0.0
        %2542 = vmatpush2.msra.mxu0 0.0
        %2543 = vmatprep.subr.mxu0 0.0
        %2544 = vmatpush2.msra.mxu0 0.0
        %2545 = vmatprep.subr.mxu0 0.0
        %2546 = vmatpush2.msra.mxu0 0.0
        %2547 = vmatprep.subr.mxu0 0.0
        %2548 = vmatpush2.msra.mxu0 0.0
        %2549 = vmatprep.subr.mxu0 0.0
        %2550 = vmatpush2.msra.mxu0 0.0
        %2551 = vmatprep.subr.mxu0 0.0
        %2552 = vmatpush2.msra.mxu0 0.0
        %2553 = vmatprep.subr.mxu0 0.0
        %2554 = vmatpush2.msra.mxu0 0.0
        %2555 = vmatprep.subr.mxu0 0.0
        %2556 = vmatpush2.msra.mxu0 0.0
        %2557 = vmatprep.subr.mxu0 0.0
        %2558 = vmatpush2.msra.mxu0 0.0
        %2559 = vmatprep.subr.mxu0 0.0
        %2560 = vmatpush2.msra.mxu0 0.0
        %2561 = vmatprep.subr.mxu0 0.0
        %2562 = vmatpush2.msra.mxu0 0.0
        %2563 = vmatprep.mubr.f32.mxu0 0.0
        %2564 = vmatmul.mubr.f32.gmra.mxu0 %v2497
        %v2565 = vpop.f32.mrf.mxu0
        %v2566 = vadd.f32 0.0, %v2565
        %v2567 = vpop.f32.mrf.mxu0
        %2568 = vdwg.mxu0
        %2570 = vrot.lane.b32.xlu0 %v2566, 16
        %v2571 = vpop.permute.xlu0 %2570
        %2573 = vst.msk [vmem:[#allocation2] sm:$0xff] %vm1590, %v2571
        %2574 = vrot.lane.b32.xlu0 %v2055, 104
        %v2575 = vpop.permute.xlu0 %2574
        %2576 = vrot.lane.b32.xlu0 %v1964, 72
        %v2577 = vpop.permute.xlu0 %2576
        %v2578 = vsel %vm1075, %v2575, 0
        %v2580 = vsel %vm1075, %v2577, 0
        %2582 = vmatprep.subr.mxu0 0.0
        %2583 = vmatpush1.xpose.msra.mxu0 0.0
        %2584 = vmatprep.subr.mxu0 0.0
        %2585 = vmatpush1.xpose.msra.mxu0 0.0
        %2586 = vmatprep.subr.mxu0 0.0
        %2587 = vmatpush1.xpose.msra.mxu0 0.0
        %2588 = vmatprep.subr.mxu0 0.0
        %2589 = vmatpush1.xpose.msra.mxu0 0.0
        %2590 = vmatprep.subr.mxu0 0.0
        %2591 = vmatpush1.xpose.msra.mxu0 0.0
        %2592 = vmatprep.subr.mxu0 0.0
        %2593 = vmatpush1.xpose.msra.mxu0 0.0
        %2594 = vmatprep.subr.mxu0 0.0
        %2595 = vmatpush1.xpose.msra.mxu0 0.0
        %2596 = vmatprep.subr.mxu0 0.0
        %2597 = vmatpush1.xpose.msra.mxu0 0.0
        %2598 = vmatprep.subr.mxu0 0.0
        %2599 = vmatpush1.xpose.msra.mxu0 0.0
        %2600 = vmatprep.subr.mxu0 0.0
        %2601 = vmatpush1.xpose.msra.mxu0 0.0
        %2602 = vmatprep.subr.mxu0 0.0
        %2603 = vmatpush1.xpose.msra.mxu0 0.0
        %2604 = vmatprep.subr.mxu0 0.0
        %2605 = vmatpush1.xpose.msra.mxu0 0.0
        %2606 = vmatprep.subr.mxu0 0.0
        %2607 = vmatpush1.xpose.msra.mxu0 0.0
        %2608 = vmatprep.subr.mxu0 0.0
        %2609 = vmatpush1.xpose.msra.mxu0 0.0
        %2610 = vmatprep.subr.mxu0 0.0
        %2611 = vmatpush1.xpose.msra.mxu0 0.0
        %2612 = vmatprep.subr.mxu0 0.0
        %2613 = vmatpush1.xpose.msra.mxu0 %v2580
        %2614 = vmatprep.subr.mxu0 0.0
        %2615 = vmatpush2.xpose.msra.mxu0 0.0
        %2616 = vmatprep.subr.mxu0 0.0
        %2617 = vmatpush2.xpose.msra.mxu0 0.0
        %2618 = vmatprep.subr.mxu0 0.0
        %2619 = vmatpush2.xpose.msra.mxu0 0.0
        %2620 = vmatprep.subr.mxu0 0.0
        %2621 = vmatpush2.xpose.msra.mxu0 0.0
        %2622 = vmatprep.subr.mxu0 0.0
        %2623 = vmatpush2.xpose.msra.mxu0 0.0
        %2624 = vmatprep.subr.mxu0 0.0
        %2625 = vmatpush2.xpose.msra.mxu0 0.0
        %2626 = vmatprep.subr.mxu0 0.0
        %2627 = vmatpush2.xpose.msra.mxu0 0.0
        %2628 = vmatprep.subr.mxu0 0.0
        %2629 = vmatpush2.xpose.msra.mxu0 0.0
        %2630 = vmatprep.subr.mxu0 0.0
        %2631 = vmatpush2.xpose.msra.mxu0 0.0
        %2632 = vmatprep.subr.mxu0 0.0
        %2633 = vmatpush2.xpose.msra.mxu0 0.0
        %2634 = vmatprep.subr.mxu0 0.0
        %2635 = vmatpush2.xpose.msra.mxu0 0.0
        %2636 = vmatprep.subr.mxu0 0.0
        %2637 = vmatpush2.xpose.msra.mxu0 0.0
        %2638 = vmatprep.subr.mxu0 0.0
        %2639 = vmatpush2.xpose.msra.mxu0 0.0
        %2640 = vmatprep.subr.mxu0 0.0
        %2641 = vmatpush2.xpose.msra.mxu0 0.0
        %2642 = vmatprep.subr.mxu0 0.0
        %2643 = vmatpush2.xpose.msra.mxu0 0.0
        %2644 = vmatprep.subr.mxu0 0.0
        %2645 = vmatpush2.xpose.msra.mxu0 0.0
        %2646 = vmatprep.mubr.f32.mxu0 0.0
        %2647 = vmatmul.mubr.f32.gmra.mxu0 %v2578
        %v2648 = vpop.f32.mrf.mxu0
        %v2649 = vadd.f32 0.0, %v2648
        %v2650 = vpop.f32.mrf.mxu0
        %2651 = vdwg.mxu0
        %v2652 = vsel %vm2051, %v2649, -1e+32
        %v2653 = vsel %vm1075, %v2652, -inf
        %2654 = vmax.xlane.f32.xlu0 %v2653
        %v2655 = vpop.xlane.xlu0 %2654
        %v2656 = vsub.f32 %v2652, %v2655
        %v2657 = vmul.f32 %v2656, 1.442695
        %v2658 = vpow.pop %v2657
        %v2659 = vsel %vm1075, %v2658, 0.0
        %2660 = vadd.xlane.f32.xlu0 %v2659
        %v2661 = vpop.xlane.xlu0 %2660
        %v2662 = vrcp.pop %v2661
        %v2663 = vmul.f32 %v2658, %v2662
        %v2664 = vsel %vm2054, 0.0, %v2663
        %v2665 = vmul.f32 %v2664, %v2053
        %s2666 = scalar_lea.vmem %s975, 24 [#allocation30]
        %2667 = vst.msk [vmem:[%s2666] sm:$0xff] %vm1075, %v2665
        %2668 = vrot.lane.b32.xlu0 %v2048, 104
        %v2669 = vpop.permute.xlu0 %2668
        %v2672 = vsel %vm1075, %v2665, 0
        %2674 = vmatprep.subr.mxu0 0.0
        %2675 = vmatpush1.msra.mxu0 0.0
        %2676 = vmatprep.subr.mxu0 0.0
        %2677 = vmatpush1.msra.mxu0 0.0
        %2678 = vmatprep.subr.mxu0 0.0
        %2679 = vmatpush1.msra.mxu0 0.0
        %2680 = vmatprep.subr.mxu0 0.0
        %2681 = vmatpush1.msra.mxu0 0.0
        %2682 = vmatprep.subr.mxu0 0.0
        %2683 = vmatpush1.msra.mxu0 0.0
        %2684 = vmatprep.subr.mxu0 0.0
        %2685 = vmatpush1.msra.mxu0 0.0
        %2686 = vmatprep.subr.mxu0 0.0
        %2687 = vmatpush1.msra.mxu0 0.0
        %2688 = vmatprep.subr.mxu0 0.0
        %2689 = vmatpush1.msra.mxu0 0.0
        %2690 = vmatprep.subr.mxu0 0.0
        %2691 = vmatpush1.msra.mxu0 0.0
        %2692 = vmatprep.subr.mxu0 0.0
        %2693 = vmatpush1.msra.mxu0 0.0
        %2694 = vmatprep.subr.mxu0 0.0
        %2695 = vmatpush1.msra.mxu0 0.0
        %2696 = vmatprep.subr.mxu0 0.0
        %2697 = vmatpush1.msra.mxu0 0.0
        %2698 = vmatprep.subr.mxu0 0.0
        %2699 = vmatpush1.msra.mxu0 0.0
        %2700 = vmatprep.subr.mxu0 0.0
        %2701 = vmatpush1.msra.mxu0 0.0
        %2702 = vmatprep.subr.mxu0 0.0
        %2703 = vmatpush1.msra.mxu0 0.0
        %2704 = vmatprep.subr.mxu0 0.0
        %2705 = vmatpush1.msra.mxu0 %v2669
        %2706 = vmatprep.subr.mxu0 0.0
        %2707 = vmatpush2.msra.mxu0 0.0
        %2708 = vmatprep.subr.mxu0 0.0
        %2709 = vmatpush2.msra.mxu0 0.0
        %2710 = vmatprep.subr.mxu0 0.0
        %2711 = vmatpush2.msra.mxu0 0.0
        %2712 = vmatprep.subr.mxu0 0.0
        %2713 = vmatpush2.msra.mxu0 0.0
        %2714 = vmatprep.subr.mxu0 0.0
        %2715 = vmatpush2.msra.mxu0 0.0
        %2716 = vmatprep.subr.mxu0 0.0
        %2717 = vmatpush2.msra.mxu0 0.0
        %2718 = vmatprep.subr.mxu0 0.0
        %2719 = vmatpush2.msra.mxu0 0.0
        %2720 = vmatprep.subr.mxu0 0.0
        %2721 = vmatpush2.msra.mxu0 0.0
        %2722 = vmatprep.subr.mxu0 0.0
        %2723 = vmatpush2.msra.mxu0 0.0
        %2724 = vmatprep.subr.mxu0 0.0
        %2725 = vmatpush2.msra.mxu0 0.0
        %2726 = vmatprep.subr.mxu0 0.0
        %2727 = vmatpush2.msra.mxu0 0.0
        %2728 = vmatprep.subr.mxu0 0.0
        %2729 = vmatpush2.msra.mxu0 0.0
        %2730 = vmatprep.subr.mxu0 0.0
        %2731 = vmatpush2.msra.mxu0 0.0
        %2732 = vmatprep.subr.mxu0 0.0
        %2733 = vmatpush2.msra.mxu0 0.0
        %2734 = vmatprep.subr.mxu0 0.0
        %2735 = vmatpush2.msra.mxu0 0.0
        %2736 = vmatprep.subr.mxu0 0.0
        %2737 = vmatpush2.msra.mxu0 0.0
        %2738 = vmatprep.mubr.f32.mxu0 0.0
        %2739 = vmatmul.mubr.f32.gmra.mxu0 %v2672
        %v2740 = vpop.f32.mrf.mxu0
        %v2741 = vadd.f32 0.0, %v2740
        %v2742 = vpop.f32.mrf.mxu0
        %2743 = vdwg.mxu0
        %2745 = vrot.lane.b32.xlu0 %v2741, 24
        %v2746 = vpop.permute.xlu0 %2745
        %2748 = vst.msk [vmem:[#allocation2] sm:$0xff] %vm1765, %v2746
        %v2749 = vld [vmem:[#allocation2] sm:$0xff]
        %v2750 = vld [vmem:[#allocation18] sm:$0xff]
        %v2751 = vld [vmem:[#allocation18 + $0x8] sm:$0xff]
        %v2752 = vld [vmem:[#allocation18 + $0x10] sm:$0xff]
        %v2753 = vld [vmem:[#allocation18 + $0x18] sm:$0xff]
        %v2754 = vld [vmem:[#allocation20] sm:$0x1]
        %v2756 = vlaneseq
        %v2757 = vshrl.u32 %v2756, 7
        %v2758 = vsub.s32 0, %v2757
        %v2759 = vrot.slane %v2754, %v2758
        %v2762 = vsel %vm993, %v2749, 0
        %2764 = vmatprep.subr.mxu0 0.0
        %2765 = vmatpush1.msra.mxu0 0.0
        %2766 = vmatprep.subr.mxu0 0.0
        %2767 = vmatpush1.msra.mxu0 0.0
        %2768 = vmatprep.subr.mxu0 0.0
        %2769 = vmatpush1.msra.mxu0 0.0
        %2770 = vmatprep.subr.mxu0 0.0
        %2771 = vmatpush1.msra.mxu0 0.0
        %2772 = vmatprep.subr.mxu0 0.0
        %2773 = vmatpush1.msra.mxu0 0.0
        %2774 = vmatprep.subr.mxu0 0.0
        %2775 = vmatpush1.msra.mxu0 0.0
        %2776 = vmatprep.subr.mxu0 0.0
        %2777 = vmatpush1.msra.mxu0 0.0
        %2778 = vmatprep.subr.mxu0 0.0
        %2779 = vmatpush1.msra.mxu0 0.0
        %2780 = vmatprep.subr.mxu0 0.0
        %2781 = vmatpush1.msra.mxu0 0.0
        %2782 = vmatprep.subr.mxu0 0.0
        %2783 = vmatpush1.msra.mxu0 0.0
        %2784 = vmatprep.subr.mxu0 0.0
        %2785 = vmatpush1.msra.mxu0 0.0
        %2786 = vmatprep.subr.mxu0 0.0
        %2787 = vmatpush1.msra.mxu0 0.0
        %2788 = vmatprep.subr.mxu0 0.0
        %2789 = vmatpush1.msra.mxu0 %v2753
        %2790 = vmatprep.subr.mxu0 0.0
        %2791 = vmatpush1.msra.mxu0 %v2752
        %2792 = vmatprep.subr.mxu0 0.0
        %2793 = vmatpush1.msra.mxu0 %v2751
        %2794 = vmatprep.subr.mxu0 0.0
        %2795 = vmatpush1.msra.mxu0 %v2750
        %2796 = vmatprep.subr.mxu0 0.0
        %2797 = vmatpush2.msra.mxu0 0.0
        %2798 = vmatprep.subr.mxu0 0.0
        %2799 = vmatpush2.msra.mxu0 0.0
        %2800 = vmatprep.subr.mxu0 0.0
        %2801 = vmatpush2.msra.mxu0 0.0
        %2802 = vmatprep.subr.mxu0 0.0
        %2803 = vmatpush2.msra.mxu0 0.0
        %2804 = vmatprep.subr.mxu0 0.0
        %2805 = vmatpush2.msra.mxu0 0.0
        %2806 = vmatprep.subr.mxu0 0.0
        %2807 = vmatpush2.msra.mxu0 0.0
        %2808 = vmatprep.subr.mxu0 0.0
        %2809 = vmatpush2.msra.mxu0 0.0
        %2810 = vmatprep.subr.mxu0 0.0
        %2811 = vmatpush2.msra.mxu0 0.0
        %2812 = vmatprep.subr.mxu0 0.0
        %2813 = vmatpush2.msra.mxu0 0.0
        %2814 = vmatprep.subr.mxu0 0.0
        %2815 = vmatpush2.msra.mxu0 0.0
        %2816 = vmatprep.subr.mxu0 0.0
        %2817 = vmatpush2.msra.mxu0 0.0
        %2818 = vmatprep.subr.mxu0 0.0
        %2819 = vmatpush2.msra.mxu0 0.0
        %2820 = vmatprep.subr.mxu0 0.0
        %2821 = vmatpush2.msra.mxu0 0.0
        %2822 = vmatprep.subr.mxu0 0.0
        %2823 = vmatpush2.msra.mxu0 0.0
        %2824 = vmatprep.subr.mxu0 0.0
        %2825 = vmatpush2.msra.mxu0 0.0
        %2826 = vmatprep.subr.mxu0 0.0
        %2827 = vmatpush2.msra.mxu0 0.0
        %2828 = vmatprep.mubr.f32.mxu0 0.0
        %2829 = vmatmul.mubr.f32.gmra.mxu0 %v2762
        %v2830 = vpop.f32.mrf.mxu0
        %v2831 = vadd.f32 %v2759, %v2830
        %v2832 = vpop.f32.mrf.mxu0
        %2833 = vdwg.mxu0
        %v2834 = vadd.f32 %v2831, %v1882
        %v2835 = vld [vmem:[#allocation21] sm:$0x1]
        %v2836 = vld [vmem:[#allocation23] sm:$0x1]
        %v2837 = vsel %vm993, %v2834, 0.0
        %2838 = vadd.xlane.f32.xlu0 %v2837
        %v2839 = vpop.xlane.xlu0 %2838
        %v2840 = vmul.f32 %v2839, %v1858
        %v2841 = vsub.f32 %v2834, %v2840
        %v2842 = vmul.f32 %v2841, %v2841
        %v2843 = vsel %vm993, %v2842, 0.0
        %2844 = vadd.xlane.f32.xlu0 %v2843
        %v2845 = vpop.xlane.xlu0 %2844
        %v2846 = vmul.f32 %v2845, %v1858
        %v2847 = vadd.f32 %v2846, 1e-05
        %v2848 = vrsqrt.pop %v2847
        %v2849 = vmul.f32 %v2841, %v2848
        %v2851 = vlaneseq
        %v2852 = vshrl.u32 %v2851, 7
        %v2853 = vsub.s32 0, %v2852
        %v2854 = vrot.slane %v2835, %v2853
        %v2856 = vmul.f32 %v2849, %v2854
        %v2858 = vlaneseq
        %v2859 = vshrl.u32 %v2858, 7
        %v2860 = vsub.s32 0, %v2859
        %v2861 = vrot.slane %v2836, %v2860
        %v2863 = vadd.f32 %v2856, %v2861
        %v2864 = vld [vmem:[#allocation24] sm:$0xff]
        %v2865 = vld [vmem:[#allocation24 + $0x8] sm:$0xff]
        %v2866 = vld [vmem:[#allocation24 + $0x10] sm:$0xff]
        %v2867 = vld [vmem:[#allocation24 + $0x18] sm:$0xff]
        %v2868 = vld [vmem:[#allocation26] sm:$0x1]
        %v2870 = vlaneseq
        %v2871 = vshrl.u32 %v2870, 7
        %v2872 = vsub.s32 0, %v2871
        %v2873 = vrot.slane %v2868, %v2872
        %v2876 = vsel %vm993, %v2863, 0
        %2878 = vmatprep.subr.mxu0 0.0
        %2879 = vmatpush1.msra.mxu0 0.0
        %2880 = vmatprep.subr.mxu0 0.0
        %2881 = vmatpush1.msra.mxu0 0.0
        %2882 = vmatprep.subr.mxu0 0.0
        %2883 = vmatpush1.msra.mxu0 0.0
        %2884 = vmatprep.subr.mxu0 0.0
        %2885 = vmatpush1.msra.mxu0 0.0
        %2886 = vmatprep.subr.mxu0 0.0
        %2887 = vmatpush1.msra.mxu0 0.0
        %2888 = vmatprep.subr.mxu0 0.0
        %2889 = vmatpush1.msra.mxu0 0.0
        %2890 = vmatprep.subr.mxu0 0.0
        %2891 = vmatpush1.msra.mxu0 0.0
        %2892 = vmatprep.subr.mxu0 0.0
        %2893 = vmatpush1.msra.mxu0 0.0
        %2894 = vmatprep.subr.mxu0 0.0
        %2895 = vmatpush1.msra.mxu0 0.0
        %2896 = vmatprep.subr.mxu0 0.0
        %2897 = vmatpush1.msra.mxu0 0.0
        %2898 = vmatprep.subr.mxu0 0.0
        %2899 = vmatpush1.msra.mxu0 0.0
        %2900 = vmatprep.subr.mxu0 0.0
        %2901 = vmatpush1.msra.mxu0 0.0
        %2902 = vmatprep.subr.mxu0 0.0
        %2903 = vmatpush1.msra.mxu0 %v2867
        %2904 = vmatprep.subr.mxu0 0.0
        %2905 = vmatpush1.msra.mxu0 %v2866
        %2906 = vmatprep.subr.mxu0 0.0
        %2907 = vmatpush1.msra.mxu0 %v2865
        %2908 = vmatprep.subr.mxu0 0.0
        %2909 = vmatpush1.msra.mxu0 %v2864
        %2910 = vmatprep.subr.mxu0 0.0
        %2911 = vmatpush2.msra.mxu0 0.0
        %2912 = vmatprep.subr.mxu0 0.0
        %2913 = vmatpush2.msra.mxu0 0.0
        %2914 = vmatprep.subr.mxu0 0.0
        %2915 = vmatpush2.msra.mxu0 0.0
        %2916 = vmatprep.subr.mxu0 0.0
        %2917 = vmatpush2.msra.mxu0 0.0
        %2918 = vmatprep.subr.mxu0 0.0
        %2919 = vmatpush2.msra.mxu0 0.0
        %2920 = vmatprep.subr.mxu0 0.0
        %2921 = vmatpush2.msra.mxu0 0.0
        %2922 = vmatprep.subr.mxu0 0.0
        %2923 = vmatpush2.msra.mxu0 0.0
        %2924 = vmatprep.subr.mxu0 0.0
        %2925 = vmatpush2.msra.mxu0 0.0
        %2926 = vmatprep.subr.mxu0 0.0
        %2927 = vmatpush2.msra.mxu0 0.0
        %2928 = vmatprep.subr.mxu0 0.0
        %2929 = vmatpush2.msra.mxu0 0.0
        %2930 = vmatprep.subr.mxu0 0.0
        %2931 = vmatpush2.msra.mxu0 0.0
        %2932 = vmatprep.subr.mxu0 0.0
        %2933 = vmatpush2.msra.mxu0 0.0
        %2934 = vmatprep.subr.mxu0 0.0
        %2935 = vmatpush2.msra.mxu0 0.0
        %2936 = vmatprep.subr.mxu0 0.0
        %2937 = vmatpush2.msra.mxu0 0.0
        %2938 = vmatprep.subr.mxu0 0.0
        %2939 = vmatpush2.msra.mxu0 0.0
        %2940 = vmatprep.subr.mxu0 0.0
        %2941 = vmatpush2.msra.mxu0 0.0
        %2942 = vmatprep.mubr.f32.mxu0 0.0
        %2943 = vmatmul.mubr.f32.gmra.mxu0 %v2876
        %v2944 = vpop.f32.mrf.mxu0
        %v2945 = vadd.f32 %v2873, %v2944
        %v2946 = vpop.f32.mrf.mxu0
        %2947 = vdwg.mxu0
        %v2948 = vmax.f32 %v2945, 0.0
        %v2949 = vld [vmem:[%s18] sm:$0xff]
        %v2950 = vld [vmem:[%s18 + $0x8] sm:$0xff]
        %v2951 = vld [vmem:[%s18 + $0x10] sm:$0xff]
        %v2952 = vld [vmem:[%s18 + $0x18] sm:$0xff]
        %v2953 = vld [vmem:[%s18 + $0x20] sm:$0xff]
        %v2954 = vld [vmem:[%s18 + $0x28] sm:$0xff]
        %v2955 = vld [vmem:[%s18 + $0x30] sm:$0xff]
        %v2956 = vld [vmem:[%s18 + $0x38] sm:$0xff]
        %v2957 = vld [vmem:[%s19] sm:$0x1]
        %v2959 = vlaneseq
        %v2960 = vshrl.u32 %v2959, 7
        %v2961 = vsub.s32 0, %v2960
        %v2962 = vrot.slane %v2957, %v2961
        %vm2964 = vcmask 523264
        %v2966 = vsel %vm2964, %v2948, 0
        %2968 = vmatprep.subr.mxu0 0.0
        %2969 = vmatpush1.msra.mxu0 0.0
        %2970 = vmatprep.subr.mxu0 0.0
        %2971 = vmatpush1.msra.mxu0 0.0
        %2972 = vmatprep.subr.mxu0 0.0
        %2973 = vmatpush1.msra.mxu0 0.0
        %2974 = vmatprep.subr.mxu0 0.0
        %2975 = vmatpush1.msra.mxu0 0.0
        %2976 = vmatprep.subr.mxu0 0.0
        %2977 = vmatpush1.msra.mxu0 0.0
        %2978 = vmatprep.subr.mxu0 0.0
        %2979 = vmatpush1.msra.mxu0 0.0
        %2980 = vmatprep.subr.mxu0 0.0
        %2981 = vmatpush1.msra.mxu0 0.0
        %2982 = vmatprep.subr.mxu0 0.0
        %2983 = vmatpush1.msra.mxu0 0.0
        %2984 = vmatprep.subr.mxu0 0.0
        %2985 = vmatpush1.msra.mxu0 %v2956
        %2986 = vmatprep.subr.mxu0 0.0
        %2987 = vmatpush1.msra.mxu0 %v2955
        %2988 = vmatprep.subr.mxu0 0.0
        %2989 = vmatpush1.msra.mxu0 %v2954
        %2990 = vmatprep.subr.mxu0 0.0
        %2991 = vmatpush1.msra.mxu0 %v2953
        %2992 = vmatprep.subr.mxu0 0.0
        %2993 = vmatpush1.msra.mxu0 %v2952
        %2994 = vmatprep.subr.mxu0 0.0
        %2995 = vmatpush1.msra.mxu0 %v2951
        %2996 = vmatprep.subr.mxu0 0.0
        %2997 = vmatpush1.msra.mxu0 %v2950
        %2998 = vmatprep.subr.mxu0 0.0
        %2999 = vmatpush1.msra.mxu0 %v2949
        %3000 = vmatprep.subr.mxu0 0.0
        %3001 = vmatpush2.msra.mxu0 0.0
        %3002 = vmatprep.subr.mxu0 0.0
        %3003 = vmatpush2.msra.mxu0 0.0
        %3004 = vmatprep.subr.mxu0 0.0
        %3005 = vmatpush2.msra.mxu0 0.0
        %3006 = vmatprep.subr.mxu0 0.0
        %3007 = vmatpush2.msra.mxu0 0.0
        %3008 = vmatprep.subr.mxu0 0.0
        %3009 = vmatpush2.msra.mxu0 0.0
        %3010 = vmatprep.subr.mxu0 0.0
        %3011 = vmatpush2.msra.mxu0 0.0
        %3012 = vmatprep.subr.mxu0 0.0
        %3013 = vmatpush2.msra.mxu0 0.0
        %3014 = vmatprep.subr.mxu0 0.0
        %3015 = vmatpush2.msra.mxu0 0.0
        %3016 = vmatprep.subr.mxu0 0.0
        %3017 = vmatpush2.msra.mxu0 0.0
        %3018 = vmatprep.subr.mxu0 0.0
        %3019 = vmatpush2.msra.mxu0 0.0
        %3020 = vmatprep.subr.mxu0 0.0
        %3021 = vmatpush2.msra.mxu0 0.0
        %3022 = vmatprep.subr.mxu0 0.0
        %3023 = vmatpush2.msra.mxu0 0.0
        %3024 = vmatprep.subr.mxu0 0.0
        %3025 = vmatpush2.msra.mxu0 0.0
        %3026 = vmatprep.subr.mxu0 0.0
        %3027 = vmatpush2.msra.mxu0 0.0
        %3028 = vmatprep.subr.mxu0 0.0
        %3029 = vmatpush2.msra.mxu0 0.0
        %3030 = vmatprep.subr.mxu0 0.0
        %3031 = vmatpush2.msra.mxu0 0.0
        %3032 = vmatprep.mubr.f32.mxu0 0.0
        %3033 = vmatmul.mubr.f32.gmra.mxu0 %v2966
        %v3034 = vpop.f32.mrf.mxu0
        %v3035 = vadd.f32 %v2962, %v3034
        %v3036 = vpop.f32.mrf.mxu0
        %3037 = vdwg.mxu0
        %v3038 = vadd.f32 %v3035, %v2863
        %v3039 = vld [vmem:[%s20] sm:$0x1]
        %v3040 = vld [vmem:[%s21] sm:$0x1]
        %v3041 = vsel %vm993, %v3038, 0.0
        %3042 = vadd.xlane.f32.xlu0 %v3041
        %v3043 = vpop.xlane.xlu0 %3042
        %v3044 = vmul.f32 %v3043, %v1858
        %v3045 = vsub.f32 %v3038, %v3044
        %v3046 = vmul.f32 %v3045, %v3045
        %v3047 = vsel %vm993, %v3046, 0.0
        %3048 = vadd.xlane.f32.xlu0 %v3047
        %v3049 = vpop.xlane.xlu0 %3048
        %v3050 = vmul.f32 %v3049, %v1858
        %v3051 = vadd.f32 %v3050, 1e-06
        %v3052 = vrsqrt.pop %v3051
        %v3053 = vmul.f32 %v3045, %v3052
        %v3055 = vlaneseq
        %v3056 = vshrl.u32 %v3055, 7
        %v3057 = vsub.s32 0, %v3056
        %v3058 = vrot.slane %v3039, %v3057
        %v3060 = vmul.f32 %v3053, %v3058
        %v3062 = vlaneseq
        %v3063 = vshrl.u32 %v3062, 7
        %v3064 = vsub.s32 0, %v3063
        %v3065 = vrot.slane %v3040, %v3064
        %v3067 = vadd.f32 %v3060, %v3065
        %3068 = vst.msk [vmem:[%s961] sm:$0xff] %vm993, %v3067
        %s3069 = sand.u32 %s534, 1
        %s3070 = scalar_lea.sflag [#allocation5], %s3069
        %s3071 = sand.u32 %s534, 1
        %s3072 = smul.addr %s3071, 8
        %s3073 = scalar_lea.vmem [#allocation27], %s3072
        %s3074 = sand.u32 %s54, 1
        %s3075 = scalar_lea.sflag [#allocation29], %s3074
        %s3076 = sand.u32 %s560, 1
        %s3077 = smul.addr %s3076, 32
        %s3078 = scalar_lea.vmem [#allocation28], %s3077
        %s3079 = sand.u32 %s54, 1
        %s3080 = scalar_lea.sflag [#allocation29], %s3079
        %s3081 = sand.u32 %s586, 1
        %s3082 = smul.addr %s3081, 32
        %s3083 = scalar_lea.vmem [#allocation30], %s3082
        // Predicated region
        $region169: #{tpu_custom_call.1} parent=107 // pred_check
          %p3084 = pneg %p544
        $region170: #{tpu_custom_call.1} parent=107 // pred_check_branch
          %3086 = sbr.rel (%p3084) target = $region172
        $region171: #{tpu_custom_call.1} parent=107 // pred_region
          %s3088 = ssub.s32 128, 128
          %3089 = vsyncadd %s3070, %s3088
          %s3090 = smul.addr %s54, 128
          %s3091 = scalar_lea.hbm %s22, %s3090
          %s3093 = sshll.u32 %s3073, 4
          %s3094 = int_to_ptr.vmem [resolvable:$true] %s3093
          %3096 = dma.vmem_to_hbm [thread:$0]  %s3094, 128, %s3091, %s3070
        $region172: #{tpu_custom_call.1} parent=107 // pred_fallthru
          _
        // Predicated region
        $region173: #{tpu_custom_call.1} parent=107 // pred_check
          %p3097 = pneg %p570
        $region174: #{tpu_custom_call.1} parent=107 // pred_check_branch
          %3099 = sbr.rel (%p3097) target = $region176
        $region175: #{tpu_custom_call.1} parent=107 // pred_region
          %s3101 = ssub.s32 512, 512
          %3102 = vsyncadd %s3075, %s3101
          %s3103 = smul.addr %s54, 4
          %s3104 = smul.addr %s3103, 128
          %s3105 = scalar_lea.hbm %s23, %s3104
          %s3106 = sshll.u32 %s3078, 4
          %s3107 = int_to_ptr.vmem [resolvable:$true] %s3106
          %3112 = dma.vmem_to_hbm [thread:$0]  %s3107, 512, %s3105, %s3075, 128, 128, 8
        $region176: #{tpu_custom_call.1} parent=107 // pred_fallthru
          _
        // Predicated region
        $region177: #{tpu_custom_call.1} parent=107 // pred_check
          %p3113 = pneg %p596
        $region178: #{tpu_custom_call.1} parent=107 // pred_check_branch
          %3115 = sbr.rel (%p3113) target = $region180
        $region179: #{tpu_custom_call.1} parent=107 // pred_region
          %s3117 = ssub.s32 512, 512
          %3118 = vsyncadd %s3080, %s3117
          %s3119 = smul.addr %s54, 4
          %s3120 = smul.addr %s3119, 128
          %s3121 = scalar_lea.hbm %s24, %s3120
          %s3122 = sshll.u32 %s3083, 4
          %s3123 = int_to_ptr.vmem [resolvable:$true] %s3122
          %3128 = dma.vmem_to_hbm [thread:$0]  %s3123, 512, %s3121, %s3080, 128, 128, 8
        $region180: #{tpu_custom_call.1} parent=107 // pred_fallthru
          _
      $region108: #{tpu_custom_call.1} parent=5 // pred_fallthru
        _
      %p3129 = scmp.le.s32.totalorder 2, %s49
      // Predicated region
      $region181: #{tpu_custom_call.1} parent=5 // pred_check
        %p3130 = pneg %p3129
      $region182: #{tpu_custom_call.1} parent=5 // pred_check_branch
        %3132 = sbr.rel (%p3130) target = $region184
      $region183: #{tpu_custom_call.1} parent=5 // pred_region
        %s3133 = ssub.s32 %s49, 2
        // Predicated region
        $region185: #{tpu_custom_call.1} parent=183 // pred_check
          %p3134 = pneg %p550
        $region186: #{tpu_custom_call.1} parent=183 // pred_check_branch
          %3136 = sbr.rel (%p3134) target = $region188
        $region187: #{tpu_custom_call.1} parent=183 // pred_region
          %s3137 = sand.u32 %s535, 1
          %s3138 = scalar_lea.sflag [#allocation5], %s3137
          %s3139 = sand.u32 %s535, 1
          %s3140 = smul.addr %s3139, 8
          %s3141 = scalar_lea.vmem [#allocation27], %s3140
          %3142 = dma.done %s3138, 128
        $region188: #{tpu_custom_call.1} parent=183 // pred_fallthru
          _
        // Predicated region
        $region189: #{tpu_custom_call.1} parent=183 // pred_check
          %p3143 = pneg %p576
        $region190: #{tpu_custom_call.1} parent=183 // pred_check_branch
          %3145 = sbr.rel (%p3143) target = $region192
        $region191: #{tpu_custom_call.1} parent=183 // pred_region
          %s3146 = sand.u32 %s55, 1
          %s3147 = scalar_lea.sflag [#allocation29], %s3146
          %s3148 = sand.u32 %s561, 1
          %s3149 = smul.addr %s3148, 32
          %s3150 = scalar_lea.vmem [#allocation28], %s3149
          %3151 = dma.done %s3147, 512
        $region192: #{tpu_custom_call.1} parent=183 // pred_fallthru
          _
        // Predicated region
        $region193: #{tpu_custom_call.1} parent=183 // pred_check
          %p3152 = pneg %p602
        $region194: #{tpu_custom_call.1} parent=183 // pred_check_branch
          %3154 = sbr.rel (%p3152) target = $region196
        $region195: #{tpu_custom_call.1} parent=183 // pred_region
          %s3155 = sand.u32 %s55, 1
          %s3156 = scalar_lea.sflag [#allocation29], %s3155
          %s3157 = sand.u32 %s587, 1
          %s3158 = smul.addr %s3157, 32
          %s3159 = scalar_lea.vmem [#allocation30], %s3158
          %3160 = dma.done %s3156, 512
        $region196: #{tpu_custom_call.1} parent=183 // pred_fallthru
          _
      $region184: #{tpu_custom_call.1} parent=5 // pred_fallthru
        _
    $region6: #{tpu_custom_call.1} parent=1 // loop_footer
      %s53 = sadd.s32 1, %s49
    $region7: #{tpu_custom_call.1} parent=1 // loop_footer_branch
      %48 = sbr.rel target = $region3
    $region8: #{tpu_custom_call.1} parent=1 // loop_exit
      _
    %3161 = vsyncpa [#allocation4], 1
    %s3162 = scalar_lea.sflag [#allocation4], 1
    %3163 = vsyncpa %s3162, 1
    %3164 = vsyncpa [#allocation7], 1
    %s3165 = scalar_lea.sflag [#allocation7], 1
    %3166 = vsyncpa %s3165, 1
    %3167 = vsyncpa [#allocation10], 1
    %3168 = vsyncpa [#allocation13], 1
    %3169 = vsyncpa [#allocation16], 1
    %3170 = vsyncpa [#allocation19], 1
    %3171 = vsyncpa [#allocation22], 1
    %3172 = vsyncpa [#allocation25], 1
    %3173 = vsyncpa [#allocation5], 1
    %s3174 = scalar_lea.sflag [#allocation5], 1
    %3175 = vsyncpa %s3174, 1
    %3176 = vsyncpa [#allocation29], 1
    %s3177 = scalar_lea.sflag [#allocation29], 1
    %3178 = vsyncpa %s3177, 1

</llo_original>
